<compile_context>
chip_gen: v6e
topology: v6e:2x2x1
jax: 0.10.0
libtpu: 0.0.40
codegen_flags: <defaults>
</compile_context>

<pallas_src>
import jax
import jax.numpy as jnp
from jax.experimental import pallas as pl
from jax.experimental.pallas import tpu as pltpu

_VMEM_LIMIT = 48 * 1024 * 1024
_EPS = 1e-5


def _round_up(x, m):
    return (x + m - 1) // m * m


# --------------------------------------------------------------------------- #
# Kernels
# --------------------------------------------------------------------------- #
def _conv3x3_kernel(slab_ref, w_ref, out_ref, stats_ref):
    """One (TH x W) row-tile of a 3x3 'SAME' conv as a single MXU matmul.

    slab_ref : (1, TH+2, Wp, Cin)   padded input rows for this tile (1-row halo)
    w_ref    : (9*Cin, Coutp)       flattened HWIO weights (resident across grid)
    out_ref  : (1, TH, W, Coutp)    raw conv output tile (lane-dense channels)
    stats_ref: (1, 1, 2, Coutp)     per-tile [sum, sum_of_squares] over TH*W rows
    """
    _, th, w_out, coutp = out_ref.shape
    cin = slab_ref.shape[-1]

    slab = slab_ref[...]                                  # (1, TH+2, Wp, Cin)
    taps = [slab[0, dy:dy + th, dx:dx + w_out, :]         # 9 shifted (TH, W, Cin)
            for dy in range(3) for dx in range(3)]
    patches = jnp.concatenate(taps, axis=-1).reshape(th * w_out, 9 * cin)

    acc = jnp.dot(patches, w_ref[...],                    # (TH*W, Coutp), K = 9*Cin
                  preferred_element_type=jnp.float32)

    out_ref[...] = acc.reshape(out_ref.shape)

    sums = jnp.concatenate(
        [jnp.sum(acc, axis=0, keepdims=True),
         jnp.sum(acc * acc, axis=0, keepdims=True)], axis=0)   # (2, Coutp)
    stats_ref[...] = sums.reshape(stats_ref.shape)


def _bn_relu_kernel(x_ref, scale_ref, shift_ref, out_ref):
    """Elementwise y = max(x * scale + shift, 0) on a lane-dense tile."""
    out_ref[...] = jnp.maximum(x_ref[...] * scale_ref[...] + shift_ref[...], 0.0)


# --------------------------------------------------------------------------- #
# Pallas-call wrappers
# --------------------------------------------------------------------------- #
def _conv_block_pallas(x_nhwc, wflat, th):
    """3x3 SAME conv (no bias) over the whole batch, row-tiled.

    Returns (raw conv output (N, H, W, Coutp), channel stats (2, Coutp))."""
    n, h, w, cin = x_nhwc.shape
    coutp = wflat.shape[-1]
    n_h = h // th
    wp = _round_up(w + 2, 8)                               # sublane-aligned padded width

    xpad = jnp.pad(x_nhwc, ((0, 0), (1, 1), (1, wp - w - 1), (0, 0)))
    # (TH+2)-row halo slabs, flattened over (N, n_h) so blocks stay non-overlapping.
    slabs = jnp.stack([xpad[:, i * th:i * th + th + 2] for i in range(n_h)], axis=1)
    slabs = slabs.reshape(n * n_h, th + 2, wp, cin)

    conv_raw, stats = pl.pallas_call(
        _conv3x3_kernel,
        grid=(n, n_h),
        out_shape=(jax.ShapeDtypeStruct((n, h, w, coutp), jnp.float32),
                   jax.ShapeDtypeStruct((n, n_h, 2, coutp), jnp.float32)),
        in_specs=[
            pl.BlockSpec((1, th + 2, wp, cin), lambda b, i: (b * n_h + i, 0, 0, 0)),
            pl.BlockSpec((9 * cin, coutp), lambda b, i: (0, 0)),       # resident
        ],
        out_specs=(
            pl.BlockSpec((1, th, w, coutp), lambda b, i: (b, i, 0, 0)),
            pl.BlockSpec((1, 1, 2, coutp), lambda b, i: (b, i, 0, 0)),
        ),
        compiler_params=pltpu.CompilerParams(
            dimension_semantics=("parallel", "parallel"),
            vmem_limit_bytes=_VMEM_LIMIT),
    )(slabs, wflat)

    return conv_raw, jnp.sum(stats, axis=(0, 1))           # (2, Coutp)


def _bn_relu_pallas(x, scale, shift, th):
    n, h, w, c = x.shape
    n_h = h // th
    return pl.pallas_call(
        _bn_relu_kernel,
        grid=(n, n_h),
        out_shape=jax.ShapeDtypeStruct((n, h, w, c), jnp.float32),
        in_specs=[
            pl.BlockSpec((1, th, w, c), lambda b, i: (b, i, 0, 0)),
            pl.BlockSpec((1, 1, 1, c), lambda b, i: (0, 0, 0, 0)),
            pl.BlockSpec((1, 1, 1, c), lambda b, i: (0, 0, 0, 0)),
        ],
        out_specs=pl.BlockSpec((1, th, w, c), lambda b, i: (b, i, 0, 0)),
        compiler_params=pltpu.CompilerParams(
            dimension_semantics=("parallel", "parallel"),
            vmem_limit_bytes=_VMEM_LIMIT),
    )(x, scale, shift)


def _bn_fold(stats, count, gamma, beta, eps=_EPS):
    """Fold batch stats + affine params into per-channel (scale, shift)."""
    mean = stats[0] / count
    var = jnp.maximum(stats[1] / count - mean * mean, 0.0)
    scale = gamma * jax.lax.rsqrt(var + eps)
    shift = beta - mean * scale
    return scale.reshape(1, 1, 1, -1), shift.reshape(1, 1, 1, -1)


# --------------------------------------------------------------------------- #
# Forward
# --------------------------------------------------------------------------- #
def inconv_forward(x_nchw, params):
    """x_nchw: (N, C_in, H, W) float32 -> (N, C_out, H, W) float32."""
    n, cin, h, w = x_nchw.shape
    cout = params["w1"].shape[-1]
    coutp = _round_up(cout, 128)                           # lane-dense channel count
    pad_c = coutp - cout
    th = next(t for t in (8, 4, 2, 1) if h % t == 0)       # row-tile height

    x = jnp.transpose(x_nchw, (0, 2, 3, 1)).astype(jnp.float32)   # NCHW -> NHWC

    # Channel-padded, flattened (9*Cin, Coutp) weights; zero-padded gamma/beta keep
    # padded channels exactly zero.  Conv biases b1/b2 are intentionally unused:
    # a per-channel constant is exactly cancelled by the BN mean subtraction.
    w1f = jnp.pad(params["w1"], ((0, 0), (0, 0), (0, 0), (0, pad_c))
                  ).reshape(9 * cin, coutp)
    w2f = jnp.pad(params["w2"], ((0, 0), (0, 0), (0, pad_c), (0, pad_c))
                  ).reshape(9 * coutp, coutp)
    g1 = jnp.pad(params["g1"].reshape(-1), (0, pad_c))
    be1 = jnp.pad(params["be1"].reshape(-1), (0, pad_c))
    g2 = jnp.pad(params["g2"].reshape(-1), (0, pad_c))
    be2 = jnp.pad(params["be2"].reshape(-1), (0, pad_c))

    count = jnp.float32(n * h * w)

    c1, st1 = _conv_block_pallas(x, w1f, th)
    s1, sh1 = _bn_fold(st1, count, g1, be1)
    h1 = _bn_relu_pallas(c1, s1, sh1, th)

    c2, st2 = _conv_block_pallas(h1, w2f, th)
    s2, sh2 = _bn_fold(st2, count, g2, be2)
    h2 = _bn_relu_pallas(c2, s2, sh2, th)

    return jnp.transpose(h2[..., :cout], (0, 3, 1, 2))     # NHWC -> NCHW


# --------------------------------------------------------------------------- #
# Params / reference / test
# --------------------------------------------------------------------------- #
def init_params(key, in_ch, out_ch):
    """Deterministic synthetic init (xavier-uniform-ish convs, perturbed BN affine)."""
    ks = jax.random.split(key, 8)

    def conv_w(k, cin, cout):
        bound = (6.0 / (cin * 9 + cout * 9)) ** 0.5
        return jax.random.uniform(k, (3, 3, cin, cout), jnp.float32, -bound, bound)

    return dict(
        w1=conv_w(ks[0], in_ch, out_ch),
        b1=0.1 * jax.random.normal(ks[1], (1, out_ch), jnp.float32),
        g1=1.0 + 0.1 * jax.random.normal(ks[2], (1, out_ch), jnp.float32),
        be1=0.1 * jax.random.normal(ks[3], (1, out_ch), jnp.float32),
        w2=conv_w(ks[4], out_ch, out_ch),
        b2=0.1 * jax.random.normal(ks[5], (1, out_ch), jnp.float32),
        g2=1.0 + 0.1 * jax.random.normal(ks[6], (1, out_ch), jnp.float32),
        be2=0.1 * jax.random.normal(ks[7], (1, out_ch), jnp.float32),
    )


def _reference(x_nchw, params):
    """Pure-JAX reference of the same forward (conv WITH bias + two-pass BN)."""
    x = jnp.transpose(x_nchw, (0, 2, 3, 1)).astype(jnp.float32)

    def block(hh, wgt, b, g, be):
        y = jax.lax.conv_general_dilated(
            hh, wgt, window_strides=(1, 1), padding="SAME",
            dimension_numbers=("NHWC", "HWIO", "NHWC")) + b
        mu = jnp.mean(y, axis=(0, 1, 2), keepdims=True)
        var = jnp.mean((y - mu) ** 2, axis=(0, 1, 2), keepdims=True)
        y = (y - mu) * jax.lax.rsqrt(var + _EPS) * g + be
        return jnp.maximum(y, 0.0)

    hh = block(x, params["w1"], params["b1"], params["g1"], params["be1"])
    hh = block(hh, params["w2"], params["b2"], params["g2"], params["be2"])
    return jnp.transpose(hh, (0, 3, 1, 2))


if __name__ == "__main__":
    key = jax.random.PRNGKey(0)
    k_x, k_p = jax.random.split(key)

    N, Cin, Cout, H, W = 2, 4, 8, 16, 16
    x = jax.random.normal(k_x, (N, Cin, H, W), jnp.float32)
    params = init_params(k_p, Cin, Cout)

    fwd = jax.jit(inconv_forward)
    y = jax.block_until_ready(fwd(x, params))

    y_ref = jax.block_until_ready(_reference(x, params))
    assert y.shape == (N, Cout, H, W)
    err = float(jnp.max(jnp.abs(y - y_ref)))
    assert jnp.allclose(y, y_ref, atol=2e-3, rtol=2e-3), f"max abs diff {err}"

    print("KERNEL_OK")
</pallas_src>

<mosaic_0001>
module attributes {stable_mosaic.version = 11 : i64} {
  func.func @_conv3x3_kernel(%arg0: i32, %arg1: i32, %arg2: memref<1x10x24x4xf32, #tpu.memory_space<vmem>>, %arg3: memref<36x128xf32, #tpu.memory_space<vmem>>, %arg4: memref<1x8x16x128xf32, #tpu.memory_space<vmem>>, %arg5: memref<1x1x2x128xf32, #tpu.memory_space<vmem>>) attributes {dimension_semantics = [#tpu.dimension_semantics<parallel>, #tpu.dimension_semantics<parallel>], iteration_bounds = array<i64: 2, 2>, scalar_prefetch = 0 : i64, scratch_operands = 0 : i64, tpu.core_type = #tpu.core_type<tc>, window_params = [{transform_indices = @transform_0, window_bounds = array<i64: 1, 10, 24, 4>}, {pipeline_mode = #tpu.pipeline_mode<synchronous>, transform_indices = @transform_1, window_bounds = array<i64: 36, 128>}, {transform_indices = @transform_2, window_bounds = array<i64: 1, 8, 16, 128>}, {transform_indices = @transform_3, window_bounds = array<i64: 1, 1, 2, 128>}]} {
    %c0 = arith.constant 0 : index
    %c0_0 = arith.constant 0 : index
    %c0_1 = arith.constant 0 : index
    %c0_2 = arith.constant 0 : index
    %0 = vector.load %arg2[%c0, %c0_0, %c0_1, %c0_2] : memref<1x10x24x4xf32, #tpu.memory_space<vmem>>, vector<1x10x24x4xf32>
    %1 = vector.extract_strided_slice %0 {offsets = [0, 0, 0, 0], sizes = [1, 8, 16, 4], strides = [1, 1, 1, 1]} : vector<1x10x24x4xf32> to vector<1x8x16x4xf32>
    %2 = vector.shape_cast %1 : vector<1x8x16x4xf32> to vector<8x16x4xf32>
    %3 = vector.extract_strided_slice %0 {offsets = [0, 0, 1, 0], sizes = [1, 8, 16, 4], strides = [1, 1, 1, 1]} : vector<1x10x24x4xf32> to vector<1x8x16x4xf32>
    %4 = vector.shape_cast %3 : vector<1x8x16x4xf32> to vector<8x16x4xf32>
    %5 = vector.extract_strided_slice %0 {offsets = [0, 0, 2, 0], sizes = [1, 8, 16, 4], strides = [1, 1, 1, 1]} : vector<1x10x24x4xf32> to vector<1x8x16x4xf32>
    %6 = vector.shape_cast %5 : vector<1x8x16x4xf32> to vector<8x16x4xf32>
    %7 = vector.extract_strided_slice %0 {offsets = [0, 1, 0, 0], sizes = [1, 8, 16, 4], strides = [1, 1, 1, 1]} : vector<1x10x24x4xf32> to vector<1x8x16x4xf32>
    %8 = vector.shape_cast %7 : vector<1x8x16x4xf32> to vector<8x16x4xf32>
    %9 = vector.extract_strided_slice %0 {offsets = [0, 1, 1, 0], sizes = [1, 8, 16, 4], strides = [1, 1, 1, 1]} : vector<1x10x24x4xf32> to vector<1x8x16x4xf32>
    %10 = vector.shape_cast %9 : vector<1x8x16x4xf32> to vector<8x16x4xf32>
    %11 = vector.extract_strided_slice %0 {offsets = [0, 1, 2, 0], sizes = [1, 8, 16, 4], strides = [1, 1, 1, 1]} : vector<1x10x24x4xf32> to vector<1x8x16x4xf32>
    %12 = vector.shape_cast %11 : vector<1x8x16x4xf32> to vector<8x16x4xf32>
    %13 = vector.extract_strided_slice %0 {offsets = [0, 2, 0, 0], sizes = [1, 8, 16, 4], strides = [1, 1, 1, 1]} : vector<1x10x24x4xf32> to vector<1x8x16x4xf32>
    %14 = vector.shape_cast %13 : vector<1x8x16x4xf32> to vector<8x16x4xf32>
    %15 = vector.extract_strided_slice %0 {offsets = [0, 2, 1, 0], sizes = [1, 8, 16, 4], strides = [1, 1, 1, 1]} : vector<1x10x24x4xf32> to vector<1x8x16x4xf32>
    %16 = vector.shape_cast %15 : vector<1x8x16x4xf32> to vector<8x16x4xf32>
    %17 = vector.extract_strided_slice %0 {offsets = [0, 2, 2, 0], sizes = [1, 8, 16, 4], strides = [1, 1, 1, 1]} : vector<1x10x24x4xf32> to vector<1x8x16x4xf32>
    %18 = vector.shape_cast %17 : vector<1x8x16x4xf32> to vector<8x16x4xf32>
    %19 = tpu.concatenate %2, %4, %6, %8, %10, %12, %14, %16, %18 in 2 : vector<8x16x4xf32>, vector<8x16x4xf32>, vector<8x16x4xf32>, vector<8x16x4xf32>, vector<8x16x4xf32>, vector<8x16x4xf32>, vector<8x16x4xf32>, vector<8x16x4xf32>, vector<8x16x4xf32> -> vector<8x16x36xf32>
    %20 = vector.shape_cast %19 : vector<8x16x36xf32> to vector<128x36xf32>
    %c0_3 = arith.constant 0 : index
    %c0_4 = arith.constant 0 : index
    %21 = vector.load %arg3[%c0_3, %c0_4] : memref<36x128xf32, #tpu.memory_space<vmem>>, vector<36x128xf32>
    %cst = arith.constant dense<0.000000e+00> : vector<128x128xf32>
    %22 = tpu.matmul %20, %21, %cst {dimension_numbers = #tpu.dot_dimension_numbers<[1], [0], [0], [1], [0, 0, 1, 1], [], []>} : vector<128x36xf32>, vector<36x128xf32>, vector<128x128xf32> -> vector<128x128xf32>
    %23 = vector.shape_cast %22 : vector<128x128xf32> to vector<1x8x16x128xf32>
    %c0_5 = arith.constant 0 : index
    %c0_6 = arith.constant 0 : index
    %c0_7 = arith.constant 0 : index
    %c0_8 = arith.constant 0 : index
    %24 = vector.load %arg4[%c0_5, %c0_6, %c0_7, %c0_8] : memref<1x8x16x128xf32, #tpu.memory_space<vmem>>, vector<1x8x16x128xf32>
    tpu.vector_store %arg4[%c0_5, %c0_6, %c0_7, %c0_8], %23 {strides = array<i32>} : memref<1x8x16x128xf32, #tpu.memory_space<vmem>>, vector<1x8x16x128xf32>,
    %cst_9 = arith.constant dense<0.000000e+00> : vector<128xf32>
    %25 = vector.multi_reduction <add>, %22, %cst_9 [0] : vector<128x128xf32> to vector<128xf32>
    %26 = vector.shape_cast %25 : vector<128xf32> to vector<1x128xf32>
    %27 = arith.mulf %22, %22 : vector<128x128xf32>
    %cst_10 = arith.constant dense<0.000000e+00> : vector<128xf32>
    %28 = vector.multi_reduction <add>, %27, %cst_10 [0] : vector<128x128xf32> to vector<128xf32>
    %29 = vector.shape_cast %28 : vector<128xf32> to vector<1x128xf32>
    %30 = tpu.concatenate %26, %29 in 0 : vector<1x128xf32>, vector<1x128xf32> -> vector<2x128xf32>
    %31 = vector.shape_cast %30 : vector<2x128xf32> to vector<1x1x2x128xf32>
    %c0_11 = arith.constant 0 : index
    %c0_12 = arith.constant 0 : index
    %c0_13 = arith.constant 0 : index
    %c0_14 = arith.constant 0 : index
    %32 = vector.load %arg5[%c0_11, %c0_12, %c0_13, %c0_14] : memref<1x1x2x128xf32, #tpu.memory_space<vmem>>, vector<1x1x2x128xf32>
    tpu.vector_store %arg5[%c0_11, %c0_12, %c0_13, %c0_14], %31 {strides = array<i32>} : memref<1x1x2x128xf32, #tpu.memory_space<vmem>>, vector<1x1x2x128xf32>,
    return
  }
  func.func @transform_0(%arg0: i32, %arg1: i32) -> (i32, i32, i32, i32) {
    %c2_i32 = arith.constant 2 : i32
    %0 = arith.muli %arg0, %c2_i32 : i32
    %1 = arith.addi %0, %arg1 : i32
    %c0_i32 = arith.constant 0 : i32
    %c0_i32_0 = arith.constant 0 : i32
    %c0_i32_1 = arith.constant 0 : i32
    %c0_i32_2 = arith.constant 0 : i32
    return %1, %c0_i32, %c0_i32_0, %c0_i32_1 : i32, i32, i32, i32
  }
  func.func @transform_1(%arg0: i32, %arg1: i32) -> (i32, i32) {
    %c0_i32 = arith.constant 0 : i32
    %c0_i32_0 = arith.constant 0 : i32
    %c0_i32_1 = arith.constant 0 : i32
    return %c0_i32, %c0_i32_0 : i32, i32
  }
  func.func @transform_2(%arg0: i32, %arg1: i32) -> (i32, i32, i32, i32) {
    %c0_i32 = arith.constant 0 : i32
    %c0_i32_0 = arith.constant 0 : i32
    %c0_i32_1 = arith.constant 0 : i32
    return %arg0, %arg1, %c0_i32, %c0_i32_0 : i32, i32, i32, i32
  }
  func.func @transform_3(%arg0: i32, %arg1: i32) -> (i32, i32, i32, i32) {
    %c0_i32 = arith.constant 0 : i32
    %c0_i32_0 = arith.constant 0 : i32
    %c0_i32_1 = arith.constant 0 : i32
    return %arg0, %arg1, %c0_i32, %c0_i32_0 : i32, i32, i32, i32
  }
}

module attributes {stable_mosaic.version = 11 : i64} {
  func.func @_bn_relu_kernel(%arg0: i32, %arg1: i32, %arg2: memref<1x8x16x128xf32, #tpu.memory_space<vmem>>, %arg3: memref<1x1x1x128xf32, #tpu.memory_space<vmem>>, %arg4: memref<1x1x1x128xf32, #tpu.memory_space<vmem>>, %arg5: memref<1x8x16x128xf32, #tpu.memory_space<vmem>>) attributes {dimension_semantics = [#tpu.dimension_semantics<parallel>, #tpu.dimension_semantics<parallel>], iteration_bounds = array<i64: 2, 2>, scalar_prefetch = 0 : i64, scratch_operands = 0 : i64, tpu.core_type = #tpu.core_type<tc>, window_params = [{transform_indices = @transform_0, window_bounds = array<i64: 1, 8, 16, 128>}, {pipeline_mode = #tpu.pipeline_mode<synchronous>, transform_indices = @transform_1, window_bounds = array<i64: 1, 1, 1, 128>}, {pipeline_mode = #tpu.pipeline_mode<synchronous>, transform_indices = @transform_2, window_bounds = array<i64: 1, 1, 1, 128>}, {transform_indices = @transform_3, window_bounds = array<i64: 1, 8, 16, 128>}]} {
    %c0 = arith.constant 0 : index
    %c0_0 = arith.constant 0 : index
    %c0_1 = arith.constant 0 : index
    %c0_2 = arith.constant 0 : index
    %0 = vector.load %arg2[%c0, %c0_0, %c0_1, %c0_2] : memref<1x8x16x128xf32, #tpu.memory_space<vmem>>, vector<1x8x16x128xf32>
    %c0_3 = arith.constant 0 : index
    %c0_4 = arith.constant 0 : index
    %c0_5 = arith.constant 0 : index
    %c0_6 = arith.constant 0 : index
    %1 = vector.load %arg3[%c0_3, %c0_4, %c0_5, %c0_6] : memref<1x1x1x128xf32, #tpu.memory_space<vmem>>, vector<1x1x1x128xf32>
    %2 = vector.broadcast %1 : vector<1x1x1x128xf32> to vector<1x8x16x128xf32>
    %3 = arith.mulf %0, %2 : vector<1x8x16x128xf32>
    %c0_7 = arith.constant 0 : index
    %c0_8 = arith.constant 0 : index
    %c0_9 = arith.constant 0 : index
    %c0_10 = arith.constant 0 : index
    %4 = vector.load %arg4[%c0_7, %c0_8, %c0_9, %c0_10] : memref<1x1x1x128xf32, #tpu.memory_space<vmem>>, vector<1x1x1x128xf32>
    %5 = vector.broadcast %4 : vector<1x1x1x128xf32> to vector<1x8x16x128xf32>
    %6 = arith.addf %3, %5 : vector<1x8x16x128xf32>
    %cst = arith.constant 0.000000e+00 : f32
    %7 = vector.broadcast %cst : f32 to vector<1x8x16x128xf32>
    %8 = arith.maximumf %6, %7 : vector<1x8x16x128xf32>
    %c0_11 = arith.constant 0 : index
    %c0_12 = arith.constant 0 : index
    %c0_13 = arith.constant 0 : index
    %c0_14 = arith.constant 0 : index
    %9 = vector.load %arg5[%c0_11, %c0_12, %c0_13, %c0_14] : memref<1x8x16x128xf32, #tpu.memory_space<vmem>>, vector<1x8x16x128xf32>
    tpu.vector_store %arg5[%c0_11, %c0_12, %c0_13, %c0_14], %8 {strides = array<i32>} : memref<1x8x16x128xf32, #tpu.memory_space<vmem>>, vector<1x8x16x128xf32>,
    return
  }
  func.func @transform_0(%arg0: i32, %arg1: i32) -> (i32, i32, i32, i32) {
    %c0_i32 = arith.constant 0 : i32
    %c0_i32_0 = arith.constant 0 : i32
    %c0_i32_1 = arith.constant 0 : i32
    return %arg0, %arg1, %c0_i32, %c0_i32_0 : i32, i32, i32, i32
  }
  func.func @transform_1(%arg0: i32, %arg1: i32) -> (i32, i32, i32, i32) {
    %c0_i32 = arith.constant 0 : i32
    %c0_i32_0 = arith.constant 0 : i32
    %c0_i32_1 = arith.constant 0 : i32
    %c0_i32_2 = arith.constant 0 : i32
    %c0_i32_3 = arith.constant 0 : i32
    return %c0_i32, %c0_i32_0, %c0_i32_1, %c0_i32_2 : i32, i32, i32, i32
  }
  func.func @transform_2(%arg0: i32, %arg1: i32) -> (i32, i32, i32, i32) {
    %c0_i32 = arith.constant 0 : i32
    %c0_i32_0 = arith.constant 0 : i32
    %c0_i32_1 = arith.constant 0 : i32
    %c0_i32_2 = arith.constant 0 : i32
    %c0_i32_3 = arith.constant 0 : i32
    return %c0_i32, %c0_i32_0, %c0_i32_1, %c0_i32_2 : i32, i32, i32, i32
  }
  func.func @transform_3(%arg0: i32, %arg1: i32) -> (i32, i32, i32, i32) {
    %c0_i32 = arith.constant 0 : i32
    %c0_i32_0 = arith.constant 0 : i32
    %c0_i32_1 = arith.constant 0 : i32
    return %arg0, %arg1, %c0_i32, %c0_i32_0 : i32, i32, i32, i32
  }
}

module attributes {stable_mosaic.version = 11 : i64} {
  func.func @_conv3x3_kernel(%arg0: i32, %arg1: i32, %arg2: memref<1x10x24x128xf32, #tpu.memory_space<vmem>>, %arg3: memref<1152x128xf32, #tpu.memory_space<vmem>>, %arg4: memref<1x8x16x128xf32, #tpu.memory_space<vmem>>, %arg5: memref<1x1x2x128xf32, #tpu.memory_space<vmem>>) attributes {dimension_semantics = [#tpu.dimension_semantics<parallel>, #tpu.dimension_semantics<parallel>], iteration_bounds = array<i64: 2, 2>, scalar_prefetch = 0 : i64, scratch_operands = 0 : i64, tpu.core_type = #tpu.core_type<tc>, window_params = [{transform_indices = @transform_0, window_bounds = array<i64: 1, 10, 24, 128>}, {pipeline_mode = #tpu.pipeline_mode<synchronous>, transform_indices = @transform_1, window_bounds = array<i64: 1152, 128>}, {transform_indices = @transform_2, window_bounds = array<i64: 1, 8, 16, 128>}, {transform_indices = @transform_3, window_bounds = array<i64: 1, 1, 2, 128>}]} {
    %c0 = arith.constant 0 : index
    %c0_0 = arith.constant 0 : index
    %c0_1 = arith.constant 0 : index
    %c0_2 = arith.constant 0 : index
    %0 = vector.load %arg2[%c0, %c0_0, %c0_1, %c0_2] : memref<1x10x24x128xf32, #tpu.memory_space<vmem>>, vector<1x10x24x128xf32>
    %1 = vector.extract_strided_slice %0 {offsets = [0, 0, 0, 0], sizes = [1, 8, 16, 128], strides = [1, 1, 1, 1]} : vector<1x10x24x128xf32> to vector<1x8x16x128xf32>
    %2 = vector.shape_cast %1 : vector<1x8x16x128xf32> to vector<8x16x128xf32>
    %3 = vector.extract_strided_slice %0 {offsets = [0, 0, 1, 0], sizes = [1, 8, 16, 128], strides = [1, 1, 1, 1]} : vector<1x10x24x128xf32> to vector<1x8x16x128xf32>
    %4 = vector.shape_cast %3 : vector<1x8x16x128xf32> to vector<8x16x128xf32>
    %5 = vector.extract_strided_slice %0 {offsets = [0, 0, 2, 0], sizes = [1, 8, 16, 128], strides = [1, 1, 1, 1]} : vector<1x10x24x128xf32> to vector<1x8x16x128xf32>
    %6 = vector.shape_cast %5 : vector<1x8x16x128xf32> to vector<8x16x128xf32>
    %7 = vector.extract_strided_slice %0 {offsets = [0, 1, 0, 0], sizes = [1, 8, 16, 128], strides = [1, 1, 1, 1]} : vector<1x10x24x128xf32> to vector<1x8x16x128xf32>
    %8 = vector.shape_cast %7 : vector<1x8x16x128xf32> to vector<8x16x128xf32>
    %9 = vector.extract_strided_slice %0 {offsets = [0, 1, 1, 0], sizes = [1, 8, 16, 128], strides = [1, 1, 1, 1]} : vector<1x10x24x128xf32> to vector<1x8x16x128xf32>
    %10 = vector.shape_cast %9 : vector<1x8x16x128xf32> to vector<8x16x128xf32>
    %11 = vector.extract_strided_slice %0 {offsets = [0, 1, 2, 0], sizes = [1, 8, 16, 128], strides = [1, 1, 1, 1]} : vector<1x10x24x128xf32> to vector<1x8x16x128xf32>
    %12 = vector.shape_cast %11 : vector<1x8x16x128xf32> to vector<8x16x128xf32>
    %13 = vector.extract_strided_slice %0 {offsets = [0, 2, 0, 0], sizes = [1, 8, 16, 128], strides = [1, 1, 1, 1]} : vector<1x10x24x128xf32> to vector<1x8x16x128xf32>
    %14 = vector.shape_cast %13 : vector<1x8x16x128xf32> to vector<8x16x128xf32>
    %15 = vector.extract_strided_slice %0 {offsets = [0, 2, 1, 0], sizes = [1, 8, 16, 128], strides = [1, 1, 1, 1]} : vector<1x10x24x128xf32> to vector<1x8x16x128xf32>
    %16 = vector.shape_cast %15 : vector<1x8x16x128xf32> to vector<8x16x128xf32>
    %17 = vector.extract_strided_slice %0 {offsets = [0, 2, 2, 0], sizes = [1, 8, 16, 128], strides = [1, 1, 1, 1]} : vector<1x10x24x128xf32> to vector<1x8x16x128xf32>
    %18 = vector.shape_cast %17 : vector<1x8x16x128xf32> to vector<8x16x128xf32>
    %19 = tpu.concatenate %2, %4, %6, %8, %10, %12, %14, %16, %18 in 2 : vector<8x16x128xf32>, vector<8x16x128xf32>, vector<8x16x128xf32>, vector<8x16x128xf32>, vector<8x16x128xf32>, vector<8x16x128xf32>, vector<8x16x128xf32>, vector<8x16x128xf32>, vector<8x16x128xf32> -> vector<8x16x1152xf32>
    %20 = vector.shape_cast %19 : vector<8x16x1152xf32> to vector<128x1152xf32>
    %c0_3 = arith.constant 0 : index
    %c0_4 = arith.constant 0 : index
    %21 = vector.load %arg3[%c0_3, %c0_4] : memref<1152x128xf32, #tpu.memory_space<vmem>>, vector<1152x128xf32>
    %cst = arith.constant dense<0.000000e+00> : vector<128x128xf32>
    %22 = tpu.matmul %20, %21, %cst {dimension_numbers = #tpu.dot_dimension_numbers<[1], [0], [0], [1], [0, 0, 1, 1], [], []>} : vector<128x1152xf32>, vector<1152x128xf32>, vector<128x128xf32> -> vector<128x128xf32>
    %23 = vector.shape_cast %22 : vector<128x128xf32> to vector<1x8x16x128xf32>
    %c0_5 = arith.constant 0 : index
    %c0_6 = arith.constant 0 : index
    %c0_7 = arith.constant 0 : index
    %c0_8 = arith.constant 0 : index
    %24 = vector.load %arg4[%c0_5, %c0_6, %c0_7, %c0_8] : memref<1x8x16x128xf32, #tpu.memory_space<vmem>>, vector<1x8x16x128xf32>
    tpu.vector_store %arg4[%c0_5, %c0_6, %c0_7, %c0_8], %23 {strides = array<i32>} : memref<1x8x16x128xf32, #tpu.memory_space<vmem>>, vector<1x8x16x128xf32>,
    %cst_9 = arith.constant dense<0.000000e+00> : vector<128xf32>
    %25 = vector.multi_reduction <add>, %22, %cst_9 [0] : vector<128x128xf32> to vector<128xf32>
    %26 = vector.shape_cast %25 : vector<128xf32> to vector<1x128xf32>
    %27 = arith.mulf %22, %22 : vector<128x128xf32>
    %cst_10 = arith.constant dense<0.000000e+00> : vector<128xf32>
    %28 = vector.multi_reduction <add>, %27, %cst_10 [0] : vector<128x128xf32> to vector<128xf32>
    %29 = vector.shape_cast %28 : vector<128xf32> to vector<1x128xf32>
    %30 = tpu.concatenate %26, %29 in 0 : vector<1x128xf32>, vector<1x128xf32> -> vector<2x128xf32>
    %31 = vector.shape_cast %30 : vector<2x128xf32> to vector<1x1x2x128xf32>
    %c0_11 = arith.constant 0 : index
    %c0_12 = arith.constant 0 : index
    %c0_13 = arith.constant 0 : index
    %c0_14 = arith.constant 0 : index
    %32 = vector.load %arg5[%c0_11, %c0_12, %c0_13, %c0_14] : memref<1x1x2x128xf32, #tpu.memory_space<vmem>>, vector<1x1x2x128xf32>
    tpu.vector_store %arg5[%c0_11, %c0_12, %c0_13, %c0_14], %31 {strides = array<i32>} : memref<1x1x2x128xf32, #tpu.memory_space<vmem>>, vector<1x1x2x128xf32>,
    return
  }
  func.func @transform_0(%arg0: i32, %arg1: i32) -> (i32, i32, i32, i32) {
    %c2_i32 = arith.constant 2 : i32
    %0 = arith.muli %arg0, %c2_i32 : i32
    %1 = arith.addi %0, %arg1 : i32
    %c0_i32 = arith.constant 0 : i32
    %c0_i32_0 = arith.constant 0 : i32
    %c0_i32_1 = arith.constant 0 : i32
    %c0_i32_2 = arith.constant 0 : i32
    return %1, %c0_i32, %c0_i32_0, %c0_i32_1 : i32, i32, i32, i32
  }
  func.func @transform_1(%arg0: i32, %arg1: i32) -> (i32, i32) {
    %c0_i32 = arith.constant 0 : i32
    %c0_i32_0 = arith.constant 0 : i32
    %c0_i32_1 = arith.constant 0 : i32
    return %c0_i32, %c0_i32_0 : i32, i32
  }
  func.func @transform_2(%arg0: i32, %arg1: i32) -> (i32, i32, i32, i32) {
    %c0_i32 = arith.constant 0 : i32
    %c0_i32_0 = arith.constant 0 : i32
    %c0_i32_1 = arith.constant 0 : i32
    return %arg0, %arg1, %c0_i32, %c0_i32_0 : i32, i32, i32, i32
  }
  func.func @transform_3(%arg0: i32, %arg1: i32) -> (i32, i32, i32, i32) {
    %c0_i32 = arith.constant 0 : i32
    %c0_i32_0 = arith.constant 0 : i32
    %c0_i32_1 = arith.constant 0 : i32
    return %arg0, %arg1, %c0_i32, %c0_i32_0 : i32, i32, i32, i32
  }
}

</mosaic_0001>

<llo_original>
// kernel: inconv_forward.5
$region0: #{inconv_forward.5}
  #allocation0 [shape = 'u32[]', space=smem, size = 0x4, offset = 0x4, fixed_abs, tag = 'smem constant byte address 0x4 - core index']
  #allocation1 [shape = 'u32[144,128]{1,0:T(1,128)}', space=vmem, size = 0x12000, scoped, tag = 'internal scratch']
  %s0 = inlined_call_operand.vmem [shape: f32[2,16,16,128], index: 0, kind: input, shape index: {}]
  %s1 = inlined_call_operand.vmem [shape: f32[1,1,1,128], index: 1, kind: input, shape index: {}]
  %s2 = inlined_call_operand.vmem [shape: f32[1,1,1,128], index: 2, kind: input, shape index: {}]
  %s3 = inlined_call_operand.vmem [shape: f32[2,16,16,128], index: 3, kind: output, shape index: {}]
  %s4 = sld [smem:[#allocation0]]
  $region45: #{inconv_forward.5} parent=0
    _
  %s6 = ssub.s32 1, %s4
  %s7 = scalar_select 0, %s6, %s4
  loop: start=0, step=1, limit=6
  $region2: #{inconv_forward.5} parent=0 // loop_pre_header
    _
  $region3: #{inconv_forward.5} parent=0 // loop_header
    %s9 = sphi 0, %s13
    %p10 = scmp.ge.s32.totalorder %s9, 6
    %s16 = sphi 0, %s28
    %s17 = sphi 0, %s24
    %s18 = sphi 0, %s16
    %s19 = sphi 0, %s17
    %s20 = sphi 0, %s18
    %s21 = sphi 0, %s19
    %s33 = sphi 0, %s35
    %s36 = sphi 0, %s33
    %s37 = sphi 0, %s36
    %s53 = sphi 0, %s37
    %s57 = sphi 0, %s57
    %s59 = sphi 0, %s57
    %s60 = sphi 0, %s59
    %s74 = sphi 0, %s60
    %s78 = sphi 0, %s78
    %s80 = sphi 0, %s78
    %s81 = sphi 0, %s80
    %s95 = sphi 0, %s81
    %s103 = sphi 0, %s105
    %s106 = sphi 0, %s103
    %s107 = sphi 0, %s106
    %s123 = sphi 0, %s107
  $region4: #{inconv_forward.5} parent=0 // loop_header_branch
    %12 = sbr.rel (%p10) target = $region8
  $region5: #{inconv_forward.5} parent=0 // loop_body
    %s14 = ssub.s32 %s9, 1
    %s15 = ssub.s32 %s9, 2
    %s22 = sadd.s32 1, %s17
    %p23 = scmp.ge.s32.totalorder %s22, 2
    %s24 = scalar_select %p23, 0, %s22
    %s25 = sadd.s32 1, %s16
    %s26 = scalar_select %p23, %s25, %s16
    %p27 = scmp.ge.s32.totalorder %s26, 2
    %s28 = scalar_select %p27, 0, %s26
    %s29 = ssub.s32 %s16, %s28
    %s30 = ssub.s32 %s17, %s24
    %s31 = sor.u32 %s29, %s30
    %p32 = scmp.eq.s32.totalorder %s31, 0
    %s34 = sadd.s32 %s33, 1
    %s35 = scalar_select %p32, %s33, %s34
    %p38 = pneg %p32
    %p39 = scmp.eq.s32.totalorder %s9, 3
    %p40 = por %p38, %p39
    %p41 = scmp.ne.s32.totalorder %s33, %s36
    %p42 = scmp.eq.s32.totalorder %s9, 0
    %p43 = por %p41, %p42
    %p44 = scmp.ne.s32.totalorder %s33, %s36
    %p45 = scmp.eq.s32.totalorder %s14, 3
    %p46 = por %p44, %p45
    %p47 = scmp.ne.s32.totalorder %s36, %s37
    %p48 = scmp.eq.s32.totalorder %s14, 0
    %p49 = por %p47, %p48
    %p50 = scmp.ne.s32.totalorder %s36, %s37
    %p51 = scmp.eq.s32.totalorder %s15, 3
    %p52 = por %p50, %p51
    %p54 = scmp.ne.s32.totalorder %s37, %s53
    %p55 = scmp.eq.s32.totalorder %s15, 0
    %p56 = por %p54, %p55
    %s58 = sadd.s32 %s57, 1
    %p61 = scmp.eq.s32.totalorder %s9, 3
    %p62 = scmp.ne.s32.totalorder %s57, %s59
    %p63 = scmp.eq.s32.totalorder %s9, 0
    %p64 = por %p62, %p63
    %p65 = scmp.ne.s32.totalorder %s57, %s59
    %p66 = scmp.eq.s32.totalorder %s14, 3
    %p67 = por %p65, %p66
    %p68 = scmp.ne.s32.totalorder %s59, %s60
    %p69 = scmp.eq.s32.totalorder %s14, 0
    %p70 = por %p68, %p69
    %p71 = scmp.ne.s32.totalorder %s59, %s60
    %p72 = scmp.eq.s32.totalorder %s15, 3
    %p73 = por %p71, %p72
    %p75 = scmp.ne.s32.totalorder %s60, %s74
    %p76 = scmp.eq.s32.totalorder %s15, 0
    %p77 = por %p75, %p76
    %s79 = sadd.s32 %s78, 1
    %p82 = scmp.eq.s32.totalorder %s9, 3
    %p83 = scmp.ne.s32.totalorder %s78, %s80
    %p84 = scmp.eq.s32.totalorder %s9, 0
    %p85 = por %p83, %p84
    %p86 = scmp.ne.s32.totalorder %s78, %s80
    %p87 = scmp.eq.s32.totalorder %s14, 3
    %p88 = por %p86, %p87
    %p89 = scmp.ne.s32.totalorder %s80, %s81
    %p90 = scmp.eq.s32.totalorder %s14, 0
    %p91 = por %p89, %p90
    %p92 = scmp.ne.s32.totalorder %s80, %s81
    %p93 = scmp.eq.s32.totalorder %s15, 3
    %p94 = por %p92, %p93
    %p96 = scmp.ne.s32.totalorder %s81, %s95
    %p97 = scmp.eq.s32.totalorder %s15, 0
    %p98 = por %p96, %p97
    %s99 = ssub.s32 %s16, %s28
    %s100 = ssub.s32 %s17, %s24
    %s101 = sor.u32 %s99, %s100
    %p102 = scmp.eq.s32.totalorder %s101, 0
    %s104 = sadd.s32 %s103, 1
    %s105 = scalar_select %p102, %s103, %s104
    %p108 = pneg %p102
    %p109 = scmp.eq.s32.totalorder %s9, 3
    %p110 = por %p108, %p109
    %p111 = scmp.ne.s32.totalorder %s103, %s106
    %p112 = scmp.eq.s32.totalorder %s9, 0
    %p113 = por %p111, %p112
    %p114 = scmp.ne.s32.totalorder %s103, %s106
    %p115 = scmp.eq.s32.totalorder %s14, 3
    %p116 = por %p114, %p115
    %p117 = scmp.ne.s32.totalorder %s106, %s107
    %p118 = scmp.eq.s32.totalorder %s14, 0
    %p119 = por %p117, %p118
    %p120 = scmp.ne.s32.totalorder %s106, %s107
    %p121 = scmp.eq.s32.totalorder %s15, 3
    %p122 = por %p120, %p121
    %p124 = scmp.ne.s32.totalorder %s107, %s123
    %p125 = scmp.eq.s32.totalorder %s15, 0
    %p126 = por %p124, %p125
    %p127 = scmp.le.s32.totalorder 1, %s9
    %p128 = scmp.lt.s32.totalorder %s9, 5
    %p129 = pnand %p127, %p128
    %p130 = pneg %p129
    // Predicated region
    $region9: #{inconv_forward.5} parent=5 // pred_check
      _
    $region10: #{inconv_forward.5} parent=5 // pred_check_branch
      %132 = sbr.rel (%p129) target = $region12
    $region11: #{inconv_forward.5} parent=5 // pred_region
      %s133 = ssub.s32 %s9, 1
      // Predicated region
      $region13: #{inconv_forward.5} parent=11 // pred_check
        %p134 = pneg %p70
      $region14: #{inconv_forward.5} parent=11 // pred_check_branch
        %136 = sbr.rel (%p134) target = $region16
      $region15: #{inconv_forward.5} parent=11 // pred_region
        _
      $region16: #{inconv_forward.5} parent=11 // pred_fallthru
        _
      // Predicated region
      $region17: #{inconv_forward.5} parent=11 // pred_check
        %p137 = pneg %p91
      $region18: #{inconv_forward.5} parent=11 // pred_check_branch
        %139 = sbr.rel (%p137) target = $region20
      $region19: #{inconv_forward.5} parent=11 // pred_region
        _
      $region20: #{inconv_forward.5} parent=11 // pred_fallthru
        _
    $region12: #{inconv_forward.5} parent=5 // pred_fallthru
      _
    %p140 = scmp.lt.s32.totalorder %s9, 4
    // Predicated region
    $region21: #{inconv_forward.5} parent=5 // pred_check
      %p141 = pneg %p140
    $region22: #{inconv_forward.5} parent=5 // pred_check_branch
      %143 = sbr.rel (%p141) target = $region24
    $region23: #{inconv_forward.5} parent=5 // pred_region
      // Predicated region
      $region25: #{inconv_forward.5} parent=23 // pred_check
        %p144 = pneg %p43
      $region26: #{inconv_forward.5} parent=23 // pred_check_branch
        %146 = sbr.rel (%p144) target = $region28
      $region27: #{inconv_forward.5} parent=23 // pred_region
        %s147 = smul.u32 8, %s17
        %p148 = scmp.lt.s32.totalorder %s16, 1
        %s149 = scalar_select %p148, %s16, 1
        %p150 = scmp.lt.s32.totalorder %s147, 15
        %s151 = scalar_select %p150, %s147, 15
        %s152 = smul.addr %s151, 2
        %s153 = smul.addr %s149, 32
        %s154 = sadd.s32 %s152, %s153
        %s155 = smul.addr %s154, 8
        %s156 = scalar_lea.vmem %s0, %s155
        %s157 = smul.u32 8, %s17
      $region28: #{inconv_forward.5} parent=23 // pred_fallthru
        _
    $region24: #{inconv_forward.5} parent=5 // pred_fallthru
      _
    %p158 = scmp.le.s32.totalorder 1, %s9
    %p159 = scmp.lt.s32.totalorder %s9, 5
    %p160 = pnand %p158, %p159
    %p161 = pneg %p160
    // Predicated region
    $region29: #{inconv_forward.5} parent=5 // pred_check
      _
    $region30: #{inconv_forward.5} parent=5 // pred_check_branch
      %163 = sbr.rel (%p160) target = $region32
    $region31: #{inconv_forward.5} parent=5 // pred_region
      %s164 = ssub.s32 %s9, 1
      %s165 = smul.u32 8, %s19
      %p166 = scmp.lt.s32.totalorder %s18, 1
      %s167 = scalar_select %p166, %s18, 1
      %p168 = scmp.lt.s32.totalorder %s165, 15
      %s169 = scalar_select %p168, %s165, 15
      %s170 = smul.addr %s169, 2
      %s171 = smul.addr %s167, 32
      %s172 = sadd.s32 %s170, %s171
      %s173 = smul.addr %s172, 8
      %s174 = scalar_lea.vmem %s0, %s173
      %p175 = pneg %p49
      %p176 = pneg %p46
      %p177 = pneg %p70
      %p178 = pneg %p67
      %p179 = pneg %p91
      %p180 = pneg %p88
      %p181 = pneg %p119
      %p182 = pneg %p116
      %s183 = smul.u32 8, %s19
      %p184 = scmp.lt.s32.totalorder %s18, 1
      %s185 = scalar_select %p184, %s18, 1
      %p186 = scmp.lt.s32.totalorder %s183, 15
      %s187 = scalar_select %p186, %s183, 15
      %s188 = smul.addr %s187, 2
      %s189 = smul.addr %s185, 32
      %s190 = sadd.s32 %s188, %s189
      %s191 = smul.addr %s190, 8
      %s192 = scalar_lea.vmem %s3, %s191
      %s193 = smul.u32 8, %s19
      %p194 = scmp.lt.s32.totalorder %s18, 1
      %s195 = scalar_select %p194, %s18, 1
      %p196 = scmp.lt.s32.totalorder %s193, 15
      %s197 = scalar_select %p196, %s193, 15
      %s198 = smul.addr %s197, 2
      %s199 = smul.addr %s195, 32
      %s200 = sadd.s32 %s198, %s199
      %s201 = smul.addr %s200, 8
      %s202 = scalar_lea.vmem %s0, %s201
      %s203 = smul.u32 8, %s19
      %s204 = smul.u32 8, %s19
      %p205 = scmp.lt.s32.totalorder %s18, 1
      %s206 = scalar_select %p205, %s18, 1
      %p207 = scmp.lt.s32.totalorder %s204, 15
      %s208 = scalar_select %p207, %s204, 15
      %s209 = smul.addr %s208, 2
      %s210 = smul.addr %s206, 32
      %s211 = sadd.s32 %s209, %s210
      %s212 = smul.addr %s211, 8
      %s213 = scalar_lea.vmem %s3, %s212
      %s214 = smul.u32 8, %s19
      %v215 = vld [vmem:[%s202] sm:$0xff]
      %v216 = vld [vmem:[%s202 + $0x8] sm:$0xff]
      %v217 = vld [vmem:[%s202 + $0x10] sm:$0xff]
      %v218 = vld [vmem:[%s202 + $0x18] sm:$0xff]
      %v219 = vld [vmem:[%s202 + $0x20] sm:$0xff]
      %v220 = vld [vmem:[%s202 + $0x28] sm:$0xff]
      %v221 = vld [vmem:[%s202 + $0x30] sm:$0xff]
      %v222 = vld [vmem:[%s202 + $0x38] sm:$0xff]
      %v223 = vld [vmem:[%s202 + $0x40] sm:$0xff]
      %v224 = vld [vmem:[%s202 + $0x48] sm:$0xff]
      %v225 = vld [vmem:[%s202 + $0x50] sm:$0xff]
      %v226 = vld [vmem:[%s202 + $0x58] sm:$0xff]
      %v227 = vld [vmem:[%s202 + $0x60] sm:$0xff]
      %v228 = vld [vmem:[%s202 + $0x68] sm:$0xff]
      %v229 = vld [vmem:[%s202 + $0x70] sm:$0xff]
      %v230 = vld [vmem:[%s202 + $0x78] sm:$0xff]
      %v231 = vld [vmem:[%s1] sm:$0x1]
      %v233 = vlaneseq
      %v234 = vshrl.u32 %v233, 7
      %v235 = vsub.s32 0, %v234
      %v236 = vrot.slane %v231, %v235
      %v238 = vmul.f32 %v215, %v236
      %v239 = vmul.f32 %v216, %v236
      %v240 = vmul.f32 %v217, %v236
      %v241 = vmul.f32 %v218, %v236
      %v242 = vmul.f32 %v219, %v236
      %v243 = vmul.f32 %v220, %v236
      %v244 = vmul.f32 %v221, %v236
      %v245 = vmul.f32 %v222, %v236
      %v246 = vmul.f32 %v223, %v236
      %v247 = vmul.f32 %v224, %v236
      %v248 = vmul.f32 %v225, %v236
      %v249 = vmul.f32 %v226, %v236
      %v250 = vmul.f32 %v227, %v236
      %v251 = vmul.f32 %v228, %v236
      %v252 = vmul.f32 %v229, %v236
      %v253 = vmul.f32 %v230, %v236
      %v254 = vld [vmem:[%s2] sm:$0x1]
      %v256 = vlaneseq
      %v257 = vshrl.u32 %v256, 7
      %v258 = vsub.s32 0, %v257
      %v259 = vrot.slane %v254, %v258
      %v261 = vadd.f32 %v238, %v259
      %v262 = vadd.f32 %v239, %v259
      %v263 = vadd.f32 %v240, %v259
      %v264 = vadd.f32 %v241, %v259
      %v265 = vadd.f32 %v242, %v259
      %v266 = vadd.f32 %v243, %v259
      %v267 = vadd.f32 %v244, %v259
      %v268 = vadd.f32 %v245, %v259
      %v269 = vadd.f32 %v246, %v259
      %v270 = vadd.f32 %v247, %v259
      %v271 = vadd.f32 %v248, %v259
      %v272 = vadd.f32 %v249, %v259
      %v273 = vadd.f32 %v250, %v259
      %v274 = vadd.f32 %v251, %v259
      %v275 = vadd.f32 %v252, %v259
      %v276 = vadd.f32 %v253, %v259
      %v277 = vmax.f32 %v261, 0.0
      %v278 = vmax.f32 %v262, 0.0
      %v279 = vmax.f32 %v263, 0.0
      %v280 = vmax.f32 %v264, 0.0
      %v281 = vmax.f32 %v265, 0.0
      %v282 = vmax.f32 %v266, 0.0
      %v283 = vmax.f32 %v267, 0.0
      %v284 = vmax.f32 %v268, 0.0
      %v285 = vmax.f32 %v269, 0.0
      %v286 = vmax.f32 %v270, 0.0
      %v287 = vmax.f32 %v271, 0.0
      %v288 = vmax.f32 %v272, 0.0
      %v289 = vmax.f32 %v273, 0.0
      %v290 = vmax.f32 %v274, 0.0
      %v291 = vmax.f32 %v275, 0.0
      %v292 = vmax.f32 %v276, 0.0
      %293 = vst [vmem:[%s213] sm:$0xff] %v277
      %294 = vst [vmem:[%s213 + $0x8] sm:$0xff] %v278
      %295 = vst [vmem:[%s213 + $0x10] sm:$0xff] %v279
      %296 = vst [vmem:[%s213 + $0x18] sm:$0xff] %v280
      %297 = vst [vmem:[%s213 + $0x20] sm:$0xff] %v281
      %298 = vst [vmem:[%s213 + $0x28] sm:$0xff] %v282
      %299 = vst [vmem:[%s213 + $0x30] sm:$0xff] %v283
      %300 = vst [vmem:[%s213 + $0x38] sm:$0xff] %v284
      %301 = vst [vmem:[%s213 + $0x40] sm:$0xff] %v285
      %302 = vst [vmem:[%s213 + $0x48] sm:$0xff] %v286
      %303 = vst [vmem:[%s213 + $0x50] sm:$0xff] %v287
      %304 = vst [vmem:[%s213 + $0x58] sm:$0xff] %v288
      %305 = vst [vmem:[%s213 + $0x60] sm:$0xff] %v289
      %306 = vst [vmem:[%s213 + $0x68] sm:$0xff] %v290
      %307 = vst [vmem:[%s213 + $0x70] sm:$0xff] %v291
      %308 = vst [vmem:[%s213 + $0x78] sm:$0xff] %v292
      %s309 = smul.u32 8, %s19
      %p310 = scmp.lt.s32.totalorder %s18, 1
      %s311 = scalar_select %p310, %s18, 1
      %p312 = scmp.lt.s32.totalorder %s309, 15
      %s313 = scalar_select %p312, %s309, 15
      %s314 = smul.addr %s313, 2
      %s315 = smul.addr %s311, 32
      %s316 = sadd.s32 %s314, %s315
      %s317 = smul.addr %s316, 8
      %s318 = scalar_lea.vmem %s3, %s317
      // Predicated region
      $region33: #{inconv_forward.5} parent=31 // pred_check
        %p319 = pneg %p116
      $region34: #{inconv_forward.5} parent=31 // pred_check_branch
        %321 = sbr.rel (%p319) target = $region36
      $region35: #{inconv_forward.5} parent=31 // pred_region
        %s322 = smul.u32 8, %s19
      $region36: #{inconv_forward.5} parent=31 // pred_fallthru
        _
    $region32: #{inconv_forward.5} parent=5 // pred_fallthru
      _
    %p323 = scmp.le.s32.totalorder 2, %s9
    // Predicated region
    $region37: #{inconv_forward.5} parent=5 // pred_check
      %p324 = pneg %p323
    $region38: #{inconv_forward.5} parent=5 // pred_check_branch
      %326 = sbr.rel (%p324) target = $region40
    $region39: #{inconv_forward.5} parent=5 // pred_region
      %s327 = ssub.s32 %s9, 2
      // Predicated region
      $region41: #{inconv_forward.5} parent=39 // pred_check
        %p328 = pneg %p122
      $region42: #{inconv_forward.5} parent=39 // pred_check_branch
        %330 = sbr.rel (%p328) target = $region44
      $region43: #{inconv_forward.5} parent=39 // pred_region
        %s331 = smul.u32 8, %s21
        %p332 = scmp.lt.s32.totalorder %s20, 1
        %s333 = scalar_select %p332, %s20, 1
        %p334 = scmp.lt.s32.totalorder %s331, 15
        %s335 = scalar_select %p334, %s331, 15
        %s336 = smul.addr %s335, 2
        %s337 = smul.addr %s333, 32
        %s338 = sadd.s32 %s336, %s337
        %s339 = smul.addr %s338, 8
        %s340 = scalar_lea.vmem %s3, %s339
      $region44: #{inconv_forward.5} parent=39 // pred_fallthru
        _
    $region40: #{inconv_forward.5} parent=5 // pred_fallthru
      _
  $region6: #{inconv_forward.5} parent=0 // loop_footer
    %s13 = sadd.s32 1, %s9
  $region7: #{inconv_forward.5} parent=0 // loop_footer_branch
    %8 = sbr.rel target = $region3
  $region8: #{inconv_forward.5} parent=0 // loop_exit
    _

// kernel: inconv_forward.4
$region0: #{inconv_forward.4}
  #allocation0 [shape = 'u32[]', space=smem, size = 0x4, offset = 0x4, fixed_abs, tag = 'smem constant byte address 0x4 - core index']
  #allocation1 [shape = 'u32[144,128]{1,0:T(1,128)}', space=vmem, size = 0x12000, scoped, tag = 'internal scratch']
  %s0 = inlined_call_operand.vmem [shape: f32[4,10,24,4], index: 0, kind: input, shape index: {}]
  %s1 = inlined_call_operand.vmem [shape: f32[36,128], index: 1, kind: input, shape index: {}]
  %s2 = inlined_call_operand.vmem [shape: f32[2,16,16,128], index: 2, kind: output, shape index: {0}]
  %s3 = inlined_call_operand.vmem [shape: f32[2,2,2,128], index: 3, kind: output, shape index: {1}]
  %4 = xla_tuple %s2, %s3
  %s5 = sld [smem:[#allocation0]]
  $region49: #{inconv_forward.4} parent=0
    _
  %s7 = ssub.s32 1, %s5
  %s8 = scalar_select 0, %s7, %s5
  loop: start=0, step=1, limit=6
  $region2: #{inconv_forward.4} parent=0 // loop_pre_header
    _
  $region3: #{inconv_forward.4} parent=0 // loop_header
    %s10 = sphi 0, %s14
    %p11 = scmp.ge.s32.totalorder %s10, 6
    %s17 = sphi 0, %s29
    %s18 = sphi 0, %s25
    %s19 = sphi 0, %s17
    %s20 = sphi 0, %s18
    %s21 = sphi 0, %s19
    %s22 = sphi 0, %s20
    %s36 = sphi 0, %s38
    %s39 = sphi 0, %s36
    %s40 = sphi 0, %s39
    %s56 = sphi 0, %s40
    %s60 = sphi 0, %s60
    %s62 = sphi 0, %s60
    %s63 = sphi 0, %s62
    %s77 = sphi 0, %s63
    %s85 = sphi 0, %s87
    %s88 = sphi 0, %s85
    %s89 = sphi 0, %s88
    %s105 = sphi 0, %s89
    %s113 = sphi 0, %s115
    %s116 = sphi 0, %s113
    %s117 = sphi 0, %s116
    %s133 = sphi 0, %s117
  $region4: #{inconv_forward.4} parent=0 // loop_header_branch
    %13 = sbr.rel (%p11) target = $region8
  $region5: #{inconv_forward.4} parent=0 // loop_body
    %s15 = ssub.s32 %s10, 1
    %s16 = ssub.s32 %s10, 2
    %s23 = sadd.s32 1, %s18
    %p24 = scmp.ge.s32.totalorder %s23, 2
    %s25 = scalar_select %p24, 0, %s23
    %s26 = sadd.s32 1, %s17
    %s27 = scalar_select %p24, %s26, %s17
    %p28 = scmp.ge.s32.totalorder %s27, 2
    %s29 = scalar_select %p28, 0, %s27
    %s30 = smul.u32 %s17, 2
    %s31 = sadd.s32 %s30, %s18
    %s32 = smul.u32 %s29, 2
    %s33 = sadd.s32 %s32, %s25
    %s34 = ssub.s32 %s31, %s33
    %p35 = scmp.eq.s32.totalorder %s34, 0
    %s37 = sadd.s32 %s36, 1
    %s38 = scalar_select %p35, %s36, %s37
    %p41 = pneg %p35
    %p42 = scmp.eq.s32.totalorder %s10, 3
    %p43 = por %p41, %p42
    %p44 = scmp.ne.s32.totalorder %s36, %s39
    %p45 = scmp.eq.s32.totalorder %s10, 0
    %p46 = por %p44, %p45
    %p47 = scmp.ne.s32.totalorder %s36, %s39
    %p48 = scmp.eq.s32.totalorder %s15, 3
    %p49 = por %p47, %p48
    %p50 = scmp.ne.s32.totalorder %s39, %s40
    %p51 = scmp.eq.s32.totalorder %s15, 0
    %p52 = por %p50, %p51
    %p53 = scmp.ne.s32.totalorder %s39, %s40
    %p54 = scmp.eq.s32.totalorder %s16, 3
    %p55 = por %p53, %p54
    %p57 = scmp.ne.s32.totalorder %s40, %s56
    %p58 = scmp.eq.s32.totalorder %s16, 0
    %p59 = por %p57, %p58
    %s61 = sadd.s32 %s60, 1
    %p64 = scmp.eq.s32.totalorder %s10, 3
    %p65 = scmp.ne.s32.totalorder %s60, %s62
    %p66 = scmp.eq.s32.totalorder %s10, 0
    %p67 = por %p65, %p66
    %p68 = scmp.ne.s32.totalorder %s60, %s62
    %p69 = scmp.eq.s32.totalorder %s15, 3
    %p70 = por %p68, %p69
    %p71 = scmp.ne.s32.totalorder %s62, %s63
    %p72 = scmp.eq.s32.totalorder %s15, 0
    %p73 = por %p71, %p72
    %p74 = scmp.ne.s32.totalorder %s62, %s63
    %p75 = scmp.eq.s32.totalorder %s16, 3
    %p76 = por %p74, %p75
    %p78 = scmp.ne.s32.totalorder %s63, %s77
    %p79 = scmp.eq.s32.totalorder %s16, 0
    %p80 = por %p78, %p79
    %s81 = ssub.s32 %s17, %s29
    %s82 = ssub.s32 %s18, %s25
    %s83 = sor.u32 %s81, %s82
    %p84 = scmp.eq.s32.totalorder %s83, 0
    %s86 = sadd.s32 %s85, 1
    %s87 = scalar_select %p84, %s85, %s86
    %p90 = pneg %p84
    %p91 = scmp.eq.s32.totalorder %s10, 3
    %p92 = por %p90, %p91
    %p93 = scmp.ne.s32.totalorder %s85, %s88
    %p94 = scmp.eq.s32.totalorder %s10, 0
    %p95 = por %p93, %p94
    %p96 = scmp.ne.s32.totalorder %s85, %s88
    %p97 = scmp.eq.s32.totalorder %s15, 3
    %p98 = por %p96, %p97
    %p99 = scmp.ne.s32.totalorder %s88, %s89
    %p100 = scmp.eq.s32.totalorder %s15, 0
    %p101 = por %p99, %p100
    %p102 = scmp.ne.s32.totalorder %s88, %s89
    %p103 = scmp.eq.s32.totalorder %s16, 3
    %p104 = por %p102, %p103
    %p106 = scmp.ne.s32.totalorder %s89, %s105
    %p107 = scmp.eq.s32.totalorder %s16, 0
    %p108 = por %p106, %p107
    %s109 = ssub.s32 %s17, %s29
    %s110 = ssub.s32 %s18, %s25
    %s111 = sor.u32 %s109, %s110
    %p112 = scmp.eq.s32.totalorder %s111, 0
    %s114 = sadd.s32 %s113, 1
    %s115 = scalar_select %p112, %s113, %s114
    %p118 = pneg %p112
    %p119 = scmp.eq.s32.totalorder %s10, 3
    %p120 = por %p118, %p119
    %p121 = scmp.ne.s32.totalorder %s113, %s116
    %p122 = scmp.eq.s32.totalorder %s10, 0
    %p123 = por %p121, %p122
    %p124 = scmp.ne.s32.totalorder %s113, %s116
    %p125 = scmp.eq.s32.totalorder %s15, 3
    %p126 = por %p124, %p125
    %p127 = scmp.ne.s32.totalorder %s116, %s117
    %p128 = scmp.eq.s32.totalorder %s15, 0
    %p129 = por %p127, %p128
    %p130 = scmp.ne.s32.totalorder %s116, %s117
    %p131 = scmp.eq.s32.totalorder %s16, 3
    %p132 = por %p130, %p131
    %p134 = scmp.ne.s32.totalorder %s117, %s133
    %p135 = scmp.eq.s32.totalorder %s16, 0
    %p136 = por %p134, %p135
    %p137 = scmp.le.s32.totalorder 1, %s10
    %p138 = scmp.lt.s32.totalorder %s10, 5
    %p139 = pnand %p137, %p138
    %p140 = pneg %p139
    // Predicated region
    $region9: #{inconv_forward.4} parent=5 // pred_check
      _
    $region10: #{inconv_forward.4} parent=5 // pred_check_branch
      %142 = sbr.rel (%p139) target = $region12
    $region11: #{inconv_forward.4} parent=5 // pred_region
      %s143 = ssub.s32 %s10, 1
      // Predicated region
      $region13: #{inconv_forward.4} parent=11 // pred_check
        %p144 = pneg %p73
      $region14: #{inconv_forward.4} parent=11 // pred_check_branch
        %146 = sbr.rel (%p144) target = $region16
      $region15: #{inconv_forward.4} parent=11 // pred_region
        _
      $region16: #{inconv_forward.4} parent=11 // pred_fallthru
        _
    $region12: #{inconv_forward.4} parent=5 // pred_fallthru
      _
    %p147 = scmp.lt.s32.totalorder %s10, 4
    // Predicated region
    $region17: #{inconv_forward.4} parent=5 // pred_check
      %p148 = pneg %p147
    $region18: #{inconv_forward.4} parent=5 // pred_check_branch
      %150 = sbr.rel (%p148) target = $region20
    $region19: #{inconv_forward.4} parent=5 // pred_region
      // Predicated region
      $region21: #{inconv_forward.4} parent=19 // pred_check
        %p151 = pneg %p46
      $region22: #{inconv_forward.4} parent=19 // pred_check_branch
        %153 = sbr.rel (%p151) target = $region24
      $region23: #{inconv_forward.4} parent=19 // pred_region
        %s154 = smul.u32 %s17, 2
        %s155 = sadd.s32 %s154, %s18
        %p156 = scmp.lt.s32.totalorder %s155, 3
        %s157 = scalar_select %p156, %s155, 3
        %s158 = smul.addr %s157, 30
        %s159 = smul.addr %s158, 8
        %s160 = scalar_lea.vmem %s0, %s159
        %s161 = smul.u32 %s17, 2
        %s162 = sadd.s32 %s161, %s18
      $region24: #{inconv_forward.4} parent=19 // pred_fallthru
        _
    $region20: #{inconv_forward.4} parent=5 // pred_fallthru
      _
    %p163 = scmp.le.s32.totalorder 1, %s10
    %p164 = scmp.lt.s32.totalorder %s10, 5
    %p165 = pnand %p163, %p164
    %p166 = pneg %p165
    // Predicated region
    $region25: #{inconv_forward.4} parent=5 // pred_check
      _
    $region26: #{inconv_forward.4} parent=5 // pred_check_branch
      %168 = sbr.rel (%p165) target = $region28
    $region27: #{inconv_forward.4} parent=5 // pred_region
      %s169 = ssub.s32 %s10, 1
      %s170 = smul.u32 %s19, 2
      %s171 = sadd.s32 %s170, %s20
      %p172 = scmp.lt.s32.totalorder %s171, 3
      %s173 = scalar_select %p172, %s171, 3
      %s174 = smul.addr %s173, 30
      %s175 = smul.addr %s174, 8
      %s176 = scalar_lea.vmem %s0, %s175
      %p177 = pneg %p52
      %p178 = pneg %p49
      %p179 = pneg %p73
      %p180 = pneg %p70
      %p181 = pneg %p101
      %p182 = pneg %p98
      %s183 = smul.u32 8, %s20
      %p184 = scmp.lt.s32.totalorder %s19, 1
      %s185 = scalar_select %p184, %s19, 1
      %p186 = scmp.lt.s32.totalorder %s183, 15
      %s187 = scalar_select %p186, %s183, 15
      %s188 = smul.addr %s187, 2
      %s189 = smul.addr %s185, 32
      %s190 = sadd.s32 %s188, %s189
      %s191 = smul.addr %s190, 8
      %s192 = scalar_lea.vmem %s2, %s191
      %p193 = pneg %p129
      %p194 = pneg %p126
      %p195 = scmp.lt.s32.totalorder %s19, 1
      %s196 = scalar_select %p195, %s19, 1
      %p197 = scmp.lt.s32.totalorder %s20, 1
      %s198 = scalar_select %p197, %s20, 1
      %s199 = smul.addr %s196, 2
      %s200 = sadd.s32 %s198, %s199
      %s201 = smul.addr %s200, 2
      %s202 = scalar_lea.vmem %s3, %s201
      %s203 = smul.u32 %s19, 2
      %s204 = sadd.s32 %s203, %s20
      %p205 = scmp.lt.s32.totalorder %s204, 3
      %s206 = scalar_select %p205, %s204, 3
      %s207 = smul.addr %s206, 30
      %s208 = smul.addr %s207, 8
      %s209 = scalar_lea.vmem %s0, %s208
      %s210 = smul.u32 %s19, 2
      %s211 = sadd.s32 %s210, %s20
      %s212 = smul.u32 8, %s20
      %p213 = scmp.lt.s32.totalorder %s19, 1
      %s214 = scalar_select %p213, %s19, 1
      %p215 = scmp.lt.s32.totalorder %s212, 15
      %s216 = scalar_select %p215, %s212, 15
      %s217 = smul.addr %s216, 2
      %s218 = smul.addr %s214, 32
      %s219 = sadd.s32 %s217, %s218
      %s220 = smul.addr %s219, 8
      %s221 = scalar_lea.vmem %s2, %s220
      %s222 = smul.u32 8, %s20
      %p223 = scmp.lt.s32.totalorder %s19, 1
      %s224 = scalar_select %p223, %s19, 1
      %p225 = scmp.lt.s32.totalorder %s20, 1
      %s226 = scalar_select %p225, %s20, 1
      %s227 = smul.addr %s224, 2
      %s228 = sadd.s32 %s226, %s227
      %s229 = smul.addr %s228, 2
      %s230 = scalar_lea.vmem %s3, %s229
      %v231 = vld [vmem:[%s209] sm:$0xff]
      %v232 = vld [vmem:[%s209 + $0x8] sm:$0xff]
      %v233 = vld [vmem:[%s209 + $0x10] sm:$0xff]
      %v234 = vld [vmem:[%s209 + $0x18] sm:$0xff]
      %v235 = vld [vmem:[%s209 + $0x20] sm:$0xff]
      %v236 = vld [vmem:[%s209 + $0x28] sm:$0xff]
      %v237 = vld [vmem:[%s209 + $0x30] sm:$0xff]
      %v238 = vld [vmem:[%s209 + $0x38] sm:$0xff]
      %v239 = vld [vmem:[%s209 + $0x40] sm:$0xff]
      %v240 = vld [vmem:[%s209 + $0x48] sm:$0xff]
      %v241 = vld [vmem:[%s209 + $0x50] sm:$0xff]
      %v242 = vld [vmem:[%s209 + $0x58] sm:$0xff]
      %v243 = vld [vmem:[%s209 + $0x60] sm:$0xff]
      %v244 = vld [vmem:[%s209 + $0x68] sm:$0xff]
      %v245 = vld [vmem:[%s209 + $0x70] sm:$0xff]
      %v246 = vld [vmem:[%s209 + $0x78] sm:$0xff]
      %v247 = vld [vmem:[%s209 + $0x80] sm:$0xff]
      %v248 = vld [vmem:[%s209 + $0x88] sm:$0xff]
      %v249 = vld [vmem:[%s209 + $0x90] sm:$0xff]
      %v250 = vld [vmem:[%s209 + $0x98] sm:$0xff]
      %v251 = vld [vmem:[%s209 + $0xa0] sm:$0xff]
      %v252 = vld [vmem:[%s209 + $0xa8] sm:$0xff]
      %v253 = vld [vmem:[%s209 + $0xb0] sm:$0xff]
      %v254 = vld [vmem:[%s209 + $0xb8] sm:$0xff]
      %v255 = vld [vmem:[%s209 + $0xc0] sm:$0xff]
      %v256 = vld [vmem:[%s209 + $0xc8] sm:$0xff]
      %v257 = vld [vmem:[%s209 + $0xd0] sm:$0xff]
      %v258 = vld [vmem:[%s209 + $0xd8] sm:$0xff]
      %v259 = vld [vmem:[%s209 + $0xe0] sm:$0xff]
      %v260 = vld [vmem:[%s209 + $0xe8] sm:$0xff]
      %vm285 = vcmask 1046528
      %v286 = vrot.slane %v231, 1
      %v287 = vrot.slane %v232, 1
      %v288 = vsel %vm285, %v286, %v287
      %v289 = vrot.slane %v233, 1
      %v290 = vsel %vm285, %v287, %v289
      %v291 = vrot.slane %v234, 1
      %v292 = vrot.slane %v235, 1
      %v293 = vsel %vm285, %v291, %v292
      %v294 = vrot.slane %v236, 1
      %v295 = vsel %vm285, %v292, %v294
      %v296 = vrot.slane %v237, 1
      %v297 = vrot.slane %v238, 1
      %v298 = vsel %vm285, %v296, %v297
      %v299 = vrot.slane %v239, 1
      %v300 = vsel %vm285, %v297, %v299
      %v301 = vrot.slane %v240, 1
      %v302 = vrot.slane %v241, 1
      %v303 = vsel %vm285, %v301, %v302
      %v304 = vrot.slane %v242, 1
      %v305 = vsel %vm285, %v302, %v304
      %v306 = vrot.slane %v243, 1
      %v307 = vrot.slane %v244, 1
      %v308 = vsel %vm285, %v306, %v307
      %v309 = vrot.slane %v245, 1
      %v310 = vsel %vm285, %v307, %v309
      %v311 = vrot.slane %v246, 1
      %v312 = vrot.slane %v247, 1
      %v313 = vsel %vm285, %v311, %v312
      %v314 = vrot.slane %v248, 1
      %v315 = vsel %vm285, %v312, %v314
      %v316 = vrot.slane %v249, 1
      %v317 = vrot.slane %v250, 1
      %v318 = vsel %vm285, %v316, %v317
      %v319 = vrot.slane %v251, 1
      %v320 = vsel %vm285, %v317, %v319
      %v321 = vrot.slane %v252, 1
      %v322 = vrot.slane %v253, 1
      %v323 = vsel %vm285, %v321, %v322
      %v324 = vrot.slane %v254, 1
      %v325 = vsel %vm285, %v322, %v324
      %326 = vrot.lane.b32.xlu0 %v288, 4
      %v327 = vpop.permute.xlu0 %326
      %328 = vrot.lane.b32.xlu0 %v290, 4
      %v329 = vpop.permute.xlu0 %328
      %330 = vrot.lane.b32.xlu0 %v293, 4
      %v331 = vpop.permute.xlu0 %330
      %332 = vrot.lane.b32.xlu0 %v295, 4
      %v333 = vpop.permute.xlu0 %332
      %334 = vrot.lane.b32.xlu0 %v298, 4
      %v335 = vpop.permute.xlu0 %334
      %336 = vrot.lane.b32.xlu0 %v300, 4
      %v337 = vpop.permute.xlu0 %336
      %338 = vrot.lane.b32.xlu0 %v303, 4
      %v339 = vpop.permute.xlu0 %338
      %340 = vrot.lane.b32.xlu0 %v305, 4
      %v341 = vpop.permute.xlu0 %340
      %342 = vrot.lane.b32.xlu0 %v308, 4
      %v343 = vpop.permute.xlu0 %342
      %344 = vrot.lane.b32.xlu0 %v310, 4
      %v345 = vpop.permute.xlu0 %344
      %346 = vrot.lane.b32.xlu0 %v313, 4
      %v347 = vpop.permute.xlu0 %346
      %348 = vrot.lane.b32.xlu0 %v315, 4
      %v349 = vpop.permute.xlu0 %348
      %350 = vrot.lane.b32.xlu0 %v318, 4
      %v351 = vpop.permute.xlu0 %350
      %352 = vrot.lane.b32.xlu0 %v320, 4
      %v353 = vpop.permute.xlu0 %352
      %354 = vrot.lane.b32.xlu0 %v323, 4
      %v355 = vpop.permute.xlu0 %354
      %356 = vrot.lane.b32.xlu0 %v325, 4
      %v357 = vpop.permute.xlu0 %356
      %vm374 = vcmask 1045504
      %v375 = vrot.slane %v231, 2
      %v376 = vrot.slane %v232, 2
      %v377 = vsel %vm374, %v375, %v376
      %v378 = vrot.slane %v233, 2
      %v379 = vsel %vm374, %v376, %v378
      %v380 = vrot.slane %v234, 2
      %v381 = vrot.slane %v235, 2
      %v382 = vsel %vm374, %v380, %v381
      %v383 = vrot.slane %v236, 2
      %v384 = vsel %vm374, %v381, %v383
      %v385 = vrot.slane %v237, 2
      %v386 = vrot.slane %v238, 2
      %v387 = vsel %vm374, %v385, %v386
      %v388 = vrot.slane %v239, 2
      %v389 = vsel %vm374, %v386, %v388
      %v390 = vrot.slane %v240, 2
      %v391 = vrot.slane %v241, 2
      %v392 = vsel %vm374, %v390, %v391
      %v393 = vrot.slane %v242, 2
      %v394 = vsel %vm374, %v391, %v393
      %v395 = vrot.slane %v243, 2
      %v396 = vrot.slane %v244, 2
      %v397 = vsel %vm374, %v395, %v396
      %v398 = vrot.slane %v245, 2
      %v399 = vsel %vm374, %v396, %v398
      %v400 = vrot.slane %v246, 2
      %v401 = vrot.slane %v247, 2
      %v402 = vsel %vm374, %v400, %v401
      %v403 = vrot.slane %v248, 2
      %v404 = vsel %vm374, %v401, %v403
      %v405 = vrot.slane %v249, 2
      %v406 = vrot.slane %v250, 2
      %v407 = vsel %vm374, %v405, %v406
      %v408 = vrot.slane %v251, 2
      %v409 = vsel %vm374, %v406, %v408
      %v410 = vrot.slane %v252, 2
      %v411 = vrot.slane %v253, 2
      %v412 = vsel %vm374, %v410, %v411
      %v413 = vrot.slane %v254, 2
      %v414 = vsel %vm374, %v411, %v413
      %415 = vrot.lane.b32.xlu0 %v377, 8
      %v416 = vpop.permute.xlu0 %415
      %417 = vrot.lane.b32.xlu0 %v379, 8
      %v418 = vpop.permute.xlu0 %417
      %419 = vrot.lane.b32.xlu0 %v382, 8
      %v420 = vpop.permute.xlu0 %419
      %421 = vrot.lane.b32.xlu0 %v384, 8
      %v422 = vpop.permute.xlu0 %421
      %423 = vrot.lane.b32.xlu0 %v387, 8
      %v424 = vpop.permute.xlu0 %423
      %425 = vrot.lane.b32.xlu0 %v389, 8
      %v426 = vpop.permute.xlu0 %425
      %427 = vrot.lane.b32.xlu0 %v392, 8
      %v428 = vpop.permute.xlu0 %427
      %429 = vrot.lane.b32.xlu0 %v394, 8
      %v430 = vpop.permute.xlu0 %429
      %431 = vrot.lane.b32.xlu0 %v397, 8
      %v432 = vpop.permute.xlu0 %431
      %433 = vrot.lane.b32.xlu0 %v399, 8
      %v434 = vpop.permute.xlu0 %433
      %435 = vrot.lane.b32.xlu0 %v402, 8
      %v436 = vpop.permute.xlu0 %435
      %437 = vrot.lane.b32.xlu0 %v404, 8
      %v438 = vpop.permute.xlu0 %437
      %439 = vrot.lane.b32.xlu0 %v407, 8
      %v440 = vpop.permute.xlu0 %439
      %441 = vrot.lane.b32.xlu0 %v409, 8
      %v442 = vpop.permute.xlu0 %441
      %443 = vrot.lane.b32.xlu0 %v412, 8
      %v444 = vpop.permute.xlu0 %443
      %445 = vrot.lane.b32.xlu0 %v414, 8
      %v446 = vpop.permute.xlu0 %445
      %465 = vrot.lane.b32.xlu0 %v234, 12
      %v466 = vpop.permute.xlu0 %465
      %467 = vrot.lane.b32.xlu0 %v235, 12
      %v468 = vpop.permute.xlu0 %467
      %469 = vrot.lane.b32.xlu0 %v237, 12
      %v470 = vpop.permute.xlu0 %469
      %471 = vrot.lane.b32.xlu0 %v238, 12
      %v472 = vpop.permute.xlu0 %471
      %473 = vrot.lane.b32.xlu0 %v240, 12
      %v474 = vpop.permute.xlu0 %473
      %475 = vrot.lane.b32.xlu0 %v241, 12
      %v476 = vpop.permute.xlu0 %475
      %477 = vrot.lane.b32.xlu0 %v243, 12
      %v478 = vpop.permute.xlu0 %477
      %479 = vrot.lane.b32.xlu0 %v244, 12
      %v480 = vpop.permute.xlu0 %479
      %481 = vrot.lane.b32.xlu0 %v246, 12
      %v482 = vpop.permute.xlu0 %481
      %483 = vrot.lane.b32.xlu0 %v247, 12
      %v484 = vpop.permute.xlu0 %483
      %485 = vrot.lane.b32.xlu0 %v249, 12
      %v486 = vpop.permute.xlu0 %485
      %487 = vrot.lane.b32.xlu0 %v250, 12
      %v488 = vpop.permute.xlu0 %487
      %489 = vrot.lane.b32.xlu0 %v252, 12
      %v490 = vpop.permute.xlu0 %489
      %491 = vrot.lane.b32.xlu0 %v253, 12
      %v492 = vpop.permute.xlu0 %491
      %493 = vrot.lane.b32.xlu0 %v255, 12
      %v494 = vpop.permute.xlu0 %493
      %495 = vrot.lane.b32.xlu0 %v256, 12
      %v496 = vpop.permute.xlu0 %495
      %v514 = vrot.slane %v255, 1
      %v515 = vrot.slane %v256, 1
      %v516 = vsel %vm285, %v514, %v515
      %v517 = vrot.slane %v257, 1
      %v518 = vsel %vm285, %v515, %v517
      %519 = vrot.lane.b32.xlu0 %v293, 16
      %v520 = vpop.permute.xlu0 %519
      %521 = vrot.lane.b32.xlu0 %v295, 16
      %v522 = vpop.permute.xlu0 %521
      %523 = vrot.lane.b32.xlu0 %v298, 16
      %v524 = vpop.permute.xlu0 %523
      %525 = vrot.lane.b32.xlu0 %v300, 16
      %v526 = vpop.permute.xlu0 %525
      %527 = vrot.lane.b32.xlu0 %v303, 16
      %v528 = vpop.permute.xlu0 %527
      %529 = vrot.lane.b32.xlu0 %v305, 16
      %v530 = vpop.permute.xlu0 %529
      %531 = vrot.lane.b32.xlu0 %v308, 16
      %v532 = vpop.permute.xlu0 %531
      %533 = vrot.lane.b32.xlu0 %v310, 16
      %v534 = vpop.permute.xlu0 %533
      %535 = vrot.lane.b32.xlu0 %v313, 16
      %v536 = vpop.permute.xlu0 %535
      %537 = vrot.lane.b32.xlu0 %v315, 16
      %v538 = vpop.permute.xlu0 %537
      %539 = vrot.lane.b32.xlu0 %v318, 16
      %v540 = vpop.permute.xlu0 %539
      %541 = vrot.lane.b32.xlu0 %v320, 16
      %v542 = vpop.permute.xlu0 %541
      %543 = vrot.lane.b32.xlu0 %v323, 16
      %v544 = vpop.permute.xlu0 %543
      %545 = vrot.lane.b32.xlu0 %v325, 16
      %v546 = vpop.permute.xlu0 %545
      %547 = vrot.lane.b32.xlu0 %v516, 16
      %v548 = vpop.permute.xlu0 %547
      %549 = vrot.lane.b32.xlu0 %v518, 16
      %v550 = vpop.permute.xlu0 %549
      %v567 = vrot.slane %v255, 2
      %v568 = vrot.slane %v256, 2
      %v569 = vsel %vm374, %v567, %v568
      %v570 = vrot.slane %v257, 2
      %v571 = vsel %vm374, %v568, %v570
      %572 = vrot.lane.b32.xlu0 %v382, 20
      %v573 = vpop.permute.xlu0 %572
      %574 = vrot.lane.b32.xlu0 %v384, 20
      %v575 = vpop.permute.xlu0 %574
      %576 = vrot.lane.b32.xlu0 %v387, 20
      %v577 = vpop.permute.xlu0 %576
      %578 = vrot.lane.b32.xlu0 %v389, 20
      %v579 = vpop.permute.xlu0 %578
      %580 = vrot.lane.b32.xlu0 %v392, 20
      %v581 = vpop.permute.xlu0 %580
      %582 = vrot.lane.b32.xlu0 %v394, 20
      %v583 = vpop.permute.xlu0 %582
      %584 = vrot.lane.b32.xlu0 %v397, 20
      %v585 = vpop.permute.xlu0 %584
      %586 = vrot.lane.b32.xlu0 %v399, 20
      %v587 = vpop.permute.xlu0 %586
      %588 = vrot.lane.b32.xlu0 %v402, 20
      %v589 = vpop.permute.xlu0 %588
      %590 = vrot.lane.b32.xlu0 %v404, 20
      %v591 = vpop.permute.xlu0 %590
      %592 = vrot.lane.b32.xlu0 %v407, 20
      %v593 = vpop.permute.xlu0 %592
      %594 = vrot.lane.b32.xlu0 %v409, 20
      %v595 = vpop.permute.xlu0 %594
      %596 = vrot.lane.b32.xlu0 %v412, 20
      %v597 = vpop.permute.xlu0 %596
      %598 = vrot.lane.b32.xlu0 %v414, 20
      %v599 = vpop.permute.xlu0 %598
      %600 = vrot.lane.b32.xlu0 %v569, 20
      %v601 = vpop.permute.xlu0 %600
      %602 = vrot.lane.b32.xlu0 %v571, 20
      %v603 = vpop.permute.xlu0 %602
      %622 = vrot.lane.b32.xlu0 %v237, 24
      %v623 = vpop.permute.xlu0 %622
      %624 = vrot.lane.b32.xlu0 %v238, 24
      %v625 = vpop.permute.xlu0 %624
      %626 = vrot.lane.b32.xlu0 %v240, 24
      %v627 = vpop.permute.xlu0 %626
      %628 = vrot.lane.b32.xlu0 %v241, 24
      %v629 = vpop.permute.xlu0 %628
      %630 = vrot.lane.b32.xlu0 %v243, 24
      %v631 = vpop.permute.xlu0 %630
      %632 = vrot.lane.b32.xlu0 %v244, 24
      %v633 = vpop.permute.xlu0 %632
      %634 = vrot.lane.b32.xlu0 %v246, 24
      %v635 = vpop.permute.xlu0 %634
      %636 = vrot.lane.b32.xlu0 %v247, 24
      %v637 = vpop.permute.xlu0 %636
      %638 = vrot.lane.b32.xlu0 %v249, 24
      %v639 = vpop.permute.xlu0 %638
      %640 = vrot.lane.b32.xlu0 %v250, 24
      %v641 = vpop.permute.xlu0 %640
      %642 = vrot.lane.b32.xlu0 %v252, 24
      %v643 = vpop.permute.xlu0 %642
      %644 = vrot.lane.b32.xlu0 %v253, 24
      %v645 = vpop.permute.xlu0 %644
      %646 = vrot.lane.b32.xlu0 %v255, 24
      %v647 = vpop.permute.xlu0 %646
      %648 = vrot.lane.b32.xlu0 %v256, 24
      %v649 = vpop.permute.xlu0 %648
      %650 = vrot.lane.b32.xlu0 %v258, 24
      %v651 = vpop.permute.xlu0 %650
      %652 = vrot.lane.b32.xlu0 %v259, 24
      %v653 = vpop.permute.xlu0 %652
      %v671 = vrot.slane %v258, 1
      %v672 = vrot.slane %v259, 1
      %v673 = vsel %vm285, %v671, %v672
      %v674 = vrot.slane %v260, 1
      %v675 = vsel %vm285, %v672, %v674
      %676 = vrot.lane.b32.xlu0 %v298, 28
      %v677 = vpop.permute.xlu0 %676
      %678 = vrot.lane.b32.xlu0 %v300, 28
      %v679 = vpop.permute.xlu0 %678
      %680 = vrot.lane.b32.xlu0 %v303, 28
      %v681 = vpop.permute.xlu0 %680
      %682 = vrot.lane.b32.xlu0 %v305, 28
      %v683 = vpop.permute.xlu0 %682
      %684 = vrot.lane.b32.xlu0 %v308, 28
      %v685 = vpop.permute.xlu0 %684
      %686 = vrot.lane.b32.xlu0 %v310, 28
      %v687 = vpop.permute.xlu0 %686
      %688 = vrot.lane.b32.xlu0 %v313, 28
      %v689 = vpop.permute.xlu0 %688
      %690 = vrot.lane.b32.xlu0 %v315, 28
      %v691 = vpop.permute.xlu0 %690
      %692 = vrot.lane.b32.xlu0 %v318, 28
      %v693 = vpop.permute.xlu0 %692
      %694 = vrot.lane.b32.xlu0 %v320, 28
      %v695 = vpop.permute.xlu0 %694
      %696 = vrot.lane.b32.xlu0 %v323, 28
      %v697 = vpop.permute.xlu0 %696
      %698 = vrot.lane.b32.xlu0 %v325, 28
      %v699 = vpop.permute.xlu0 %698
      %700 = vrot.lane.b32.xlu0 %v516, 28
      %v701 = vpop.permute.xlu0 %700
      %702 = vrot.lane.b32.xlu0 %v518, 28
      %v703 = vpop.permute.xlu0 %702
      %704 = vrot.lane.b32.xlu0 %v673, 28
      %v705 = vpop.permute.xlu0 %704
      %706 = vrot.lane.b32.xlu0 %v675, 28
      %v707 = vpop.permute.xlu0 %706
      %v724 = vrot.slane %v258, 2
      %v725 = vrot.slane %v259, 2
      %v726 = vsel %vm374, %v724, %v725
      %v727 = vrot.slane %v260, 2
      %v728 = vsel %vm374, %v725, %v727
      %729 = vrot.lane.b32.xlu0 %v387, 32
      %v730 = vpop.permute.xlu0 %729
      %731 = vrot.lane.b32.xlu0 %v389, 32
      %v732 = vpop.permute.xlu0 %731
      %733 = vrot.lane.b32.xlu0 %v392, 32
      %v734 = vpop.permute.xlu0 %733
      %735 = vrot.lane.b32.xlu0 %v394, 32
      %v736 = vpop.permute.xlu0 %735
      %737 = vrot.lane.b32.xlu0 %v397, 32
      %v738 = vpop.permute.xlu0 %737
      %739 = vrot.lane.b32.xlu0 %v399, 32
      %v740 = vpop.permute.xlu0 %739
      %741 = vrot.lane.b32.xlu0 %v402, 32
      %v742 = vpop.permute.xlu0 %741
      %743 = vrot.lane.b32.xlu0 %v404, 32
      %v744 = vpop.permute.xlu0 %743
      %745 = vrot.lane.b32.xlu0 %v407, 32
      %v746 = vpop.permute.xlu0 %745
      %747 = vrot.lane.b32.xlu0 %v409, 32
      %v748 = vpop.permute.xlu0 %747
      %749 = vrot.lane.b32.xlu0 %v412, 32
      %v750 = vpop.permute.xlu0 %749
      %751 = vrot.lane.b32.xlu0 %v414, 32
      %v752 = vpop.permute.xlu0 %751
      %753 = vrot.lane.b32.xlu0 %v569, 32
      %v754 = vpop.permute.xlu0 %753
      %755 = vrot.lane.b32.xlu0 %v571, 32
      %v756 = vpop.permute.xlu0 %755
      %757 = vrot.lane.b32.xlu0 %v726, 32
      %v758 = vpop.permute.xlu0 %757
      %759 = vrot.lane.b32.xlu0 %v728, 32
      %v760 = vpop.permute.xlu0 %759
      %vm777 = vcmask 31744
      %v778 = vsel %vm777, %v231, %v327
      %v779 = vsel %vm777, %v232, %v329
      %v780 = vsel %vm777, %v234, %v331
      %v781 = vsel %vm777, %v235, %v333
      %v782 = vsel %vm777, %v237, %v335
      %v783 = vsel %vm777, %v238, %v337
      %v784 = vsel %vm777, %v240, %v339
      %v785 = vsel %vm777, %v241, %v341
      %v786 = vsel %vm777, %v243, %v343
      %v787 = vsel %vm777, %v244, %v345
      %v788 = vsel %vm777, %v246, %v347
      %v789 = vsel %vm777, %v247, %v349
      %v790 = vsel %vm777, %v249, %v351
      %v791 = vsel %vm777, %v250, %v353
      %v792 = vsel %vm777, %v252, %v355
      %v793 = vsel %vm777, %v253, %v357
      %vm794 = vcmask 64512
      %v795 = vsel %vm794, %v778, %v416
      %v796 = vsel %vm794, %v779, %v418
      %v797 = vsel %vm794, %v780, %v420
      %v798 = vsel %vm794, %v781, %v422
      %v799 = vsel %vm794, %v782, %v424
      %v800 = vsel %vm794, %v783, %v426
      %v801 = vsel %vm794, %v784, %v428
      %v802 = vsel %vm794, %v785, %v430
      %v803 = vsel %vm794, %v786, %v432
      %v804 = vsel %vm794, %v787, %v434
      %v805 = vsel %vm794, %v788, %v436
      %v806 = vsel %vm794, %v789, %v438
      %v807 = vsel %vm794, %v790, %v440
      %v808 = vsel %vm794, %v791, %v442
      %v809 = vsel %vm794, %v792, %v444
      %v810 = vsel %vm794, %v793, %v446
      %vm811 = vcmask 97280
      %v812 = vsel %vm811, %v795, %v466
      %v813 = vsel %vm811, %v796, %v468
      %v814 = vsel %vm811, %v797, %v470
      %v815 = vsel %vm811, %v798, %v472
      %v816 = vsel %vm811, %v799, %v474
      %v817 = vsel %vm811, %v800, %v476
      %v818 = vsel %vm811, %v801, %v478
      %v819 = vsel %vm811, %v802, %v480
      %v820 = vsel %vm811, %v803, %v482
      %v821 = vsel %vm811, %v804, %v484
      %v822 = vsel %vm811, %v805, %v486
      %v823 = vsel %vm811, %v806, %v488
      %v824 = vsel %vm811, %v807, %v490
      %v825 = vsel %vm811, %v808, %v492
      %v826 = vsel %vm811, %v809, %v494
      %v827 = vsel %vm811, %v810, %v496
      %vm828 = vcmask 130048
      %v829 = vsel %vm828, %v812, %v520
      %v830 = vsel %vm828, %v813, %v522
      %v831 = vsel %vm828, %v814, %v524
      %v832 = vsel %vm828, %v815, %v526
      %v833 = vsel %vm828, %v816, %v528
      %v834 = vsel %vm828, %v817, %v530
      %v835 = vsel %vm828, %v818, %v532
      %v836 = vsel %vm828, %v819, %v534
      %v837 = vsel %vm828, %v820, %v536
      %v838 = vsel %vm828, %v821, %v538
      %v839 = vsel %vm828, %v822, %v540
      %v840 = vsel %vm828, %v823, %v542
      %v841 = vsel %vm828, %v824, %v544
      %v842 = vsel %vm828, %v825, %v546
      %v843 = vsel %vm828, %v826, %v548
      %v844 = vsel %vm828, %v827, %v550
      %vm845 = vcmask 162816
      %v846 = vsel %vm845, %v829, %v573
      %v847 = vsel %vm845, %v830, %v575
      %v848 = vsel %vm845, %v831, %v577
      %v849 = vsel %vm845, %v832, %v579
      %v850 = vsel %vm845, %v833, %v581
      %v851 = vsel %vm845, %v834, %v583
      %v852 = vsel %vm845, %v835, %v585
      %v853 = vsel %vm845, %v836, %v587
      %v854 = vsel %vm845, %v837, %v589
      %v855 = vsel %vm845, %v838, %v591
      %v856 = vsel %vm845, %v839, %v593
      %v857 = vsel %vm845, %v840, %v595
      %v858 = vsel %vm845, %v841, %v597
      %v859 = vsel %vm845, %v842, %v599
      %v860 = vsel %vm845, %v843, %v601
      %v861 = vsel %vm845, %v844, %v603
      %vm862 = vcmask 195584
      %v863 = vsel %vm862, %v846, %v623
      %v864 = vsel %vm862, %v847, %v625
      %v865 = vsel %vm862, %v848, %v627
      %v866 = vsel %vm862, %v849, %v629
      %v867 = vsel %vm862, %v850, %v631
      %v868 = vsel %vm862, %v851, %v633
      %v869 = vsel %vm862, %v852, %v635
      %v870 = vsel %vm862, %v853, %v637
      %v871 = vsel %vm862, %v854, %v639
      %v872 = vsel %vm862, %v855, %v641
      %v873 = vsel %vm862, %v856, %v643
      %v874 = vsel %vm862, %v857, %v645
      %v875 = vsel %vm862, %v858, %v647
      %v876 = vsel %vm862, %v859, %v649
      %v877 = vsel %vm862, %v860, %v651
      %v878 = vsel %vm862, %v861, %v653
      %vm879 = vcmask 228352
      %v880 = vsel %vm879, %v863, %v677
      %v881 = vsel %vm879, %v864, %v679
      %v882 = vsel %vm879, %v865, %v681
      %v883 = vsel %vm879, %v866, %v683
      %v884 = vsel %vm879, %v867, %v685
      %v885 = vsel %vm879, %v868, %v687
      %v886 = vsel %vm879, %v869, %v689
      %v887 = vsel %vm879, %v870, %v691
      %v888 = vsel %vm879, %v871, %v693
      %v889 = vsel %vm879, %v872, %v695
      %v890 = vsel %vm879, %v873, %v697
      %v891 = vsel %vm879, %v874, %v699
      %v892 = vsel %vm879, %v875, %v701
      %v893 = vsel %vm879, %v876, %v703
      %v894 = vsel %vm879, %v877, %v705
      %v895 = vsel %vm879, %v878, %v707
      %vm896 = vcmask 261120
      %v897 = vsel %vm896, %v880, %v730
      %v898 = vsel %vm896, %v881, %v732
      %v899 = vsel %vm896, %v882, %v734
      %v900 = vsel %vm896, %v883, %v736
      %v901 = vsel %vm896, %v884, %v738
      %v902 = vsel %vm896, %v885, %v740
      %v903 = vsel %vm896, %v886, %v742
      %v904 = vsel %vm896, %v887, %v744
      %v905 = vsel %vm896, %v888, %v746
      %v906 = vsel %vm896, %v889, %v748
      %v907 = vsel %vm896, %v890, %v750
      %v908 = vsel %vm896, %v891, %v752
      %v909 = vsel %vm896, %v892, %v754
      %v910 = vsel %vm896, %v893, %v756
      %v911 = vsel %vm896, %v894, %v758
      %v912 = vsel %vm896, %v895, %v760
      %v913 = vld [vmem:[%s1] sm:$0xff]
      %v914 = vld [vmem:[%s1 + $0x8] sm:$0xff]
      %v915 = vld [vmem:[%s1 + $0x10] sm:$0xff]
      %v916 = vld [vmem:[%s1 + $0x18] sm:$0xff]
      %v917 = vld [vmem:[%s1 + $0x20] sm:$0xf]
      %vm918 = vcmask 293888
      %v920 = vsel %vm918, %v897, 0
      %v923 = vsel %vm918, %v898, 0
      %v926 = vsel %vm918, %v899, 0
      %v929 = vsel %vm918, %v900, 0
      %v932 = vsel %vm918, %v901, 0
      %v935 = vsel %vm918, %v902, 0
      %v938 = vsel %vm918, %v903, 0
      %v941 = vsel %vm918, %v904, 0
      %v944 = vsel %vm918, %v905, 0
      %v947 = vsel %vm918, %v906, 0
      %v950 = vsel %vm918, %v907, 0
      %v953 = vsel %vm918, %v908, 0
      %v956 = vsel %vm918, %v909, 0
      %v959 = vsel %vm918, %v910, 0
      %v962 = vsel %vm918, %v911, 0
      %v965 = vsel %vm918, %v912, 0
      %vm967 = vcmask 1043456
      %v969 = vsel %vm967, %v917, 0
      %971 = vmatprep.subr.mxu0 0.0
      %972 = vmatpush1.msra.mxu0 0.0
      %973 = vmatprep.subr.mxu0 0.0
      %974 = vmatpush1.msra.mxu0 0.0
      %975 = vmatprep.subr.mxu0 0.0
      %976 = vmatpush1.msra.mxu0 0.0
      %977 = vmatprep.subr.mxu0 0.0
      %978 = vmatpush1.msra.mxu0 0.0
      %979 = vmatprep.subr.mxu0 0.0
      %980 = vmatpush1.msra.mxu0 0.0
      %981 = vmatprep.subr.mxu0 0.0
      %982 = vmatpush1.msra.mxu0 0.0
      %983 = vmatprep.subr.mxu0 0.0
      %984 = vmatpush1.msra.mxu0 0.0
      %985 = vmatprep.subr.mxu0 0.0
      %986 = vmatpush1.msra.mxu0 0.0
      %987 = vmatprep.subr.mxu0 0.0
      %988 = vmatpush1.msra.mxu0 0.0
      %989 = vmatprep.subr.mxu0 0.0
      %990 = vmatpush1.msra.mxu0 0.0
      %991 = vmatprep.subr.mxu0 0.0
      %992 = vmatpush1.msra.mxu0 0.0
      %993 = vmatprep.subr.mxu0 0.0
      %994 = vmatpush1.msra.mxu0 %v969
      %995 = vmatprep.subr.mxu0 0.0
      %996 = vmatpush1.msra.mxu0 %v916
      %997 = vmatprep.subr.mxu0 0.0
      %998 = vmatpush1.msra.mxu0 %v915
      %999 = vmatprep.subr.mxu0 0.0
      %1000 = vmatpush1.msra.mxu0 %v914
      %1001 = vmatprep.subr.mxu0 0.0
      %1002 = vmatpush1.msra.mxu0 %v913
      %1003 = vmatprep.subr.mxu0 0.0
      %1004 = vmatpush2.msra.mxu0 0.0
      %1005 = vmatprep.subr.mxu0 0.0
      %1006 = vmatpush2.msra.mxu0 0.0
      %1007 = vmatprep.subr.mxu0 0.0
      %1008 = vmatpush2.msra.mxu0 0.0
      %1009 = vmatprep.subr.mxu0 0.0
      %1010 = vmatpush2.msra.mxu0 0.0
      %1011 = vmatprep.subr.mxu0 0.0
      %1012 = vmatpush2.msra.mxu0 0.0
      %1013 = vmatprep.subr.mxu0 0.0
      %1014 = vmatpush2.msra.mxu0 0.0
      %1015 = vmatprep.subr.mxu0 0.0
      %1016 = vmatpush2.msra.mxu0 0.0
      %1017 = vmatprep.subr.mxu0 0.0
      %1018 = vmatpush2.msra.mxu0 0.0
      %1019 = vmatprep.subr.mxu0 0.0
      %1020 = vmatpush2.msra.mxu0 0.0
      %1021 = vmatprep.subr.mxu0 0.0
      %1022 = vmatpush2.msra.mxu0 0.0
      %1023 = vmatprep.subr.mxu0 0.0
      %1024 = vmatpush2.msra.mxu0 0.0
      %1025 = vmatprep.subr.mxu0 0.0
      %1026 = vmatpush2.msra.mxu0 0.0
      %1027 = vmatprep.subr.mxu0 0.0
      %1028 = vmatpush2.msra.mxu0 0.0
      %1029 = vmatprep.subr.mxu0 0.0
      %1030 = vmatpush2.msra.mxu0 0.0
      %1031 = vmatprep.subr.mxu0 0.0
      %1032 = vmatpush2.msra.mxu0 0.0
      %1033 = vmatprep.subr.mxu0 0.0
      %1034 = vmatpush2.msra.mxu0 0.0
      %1035 = vmatprep.mubr.f32.mxu0 0.0
      %1036 = vmatmul.mubr.f32.gmra.mxu0 %v920
      %v1037 = vpop.f32.mrf.mxu0
      %v1038 = vadd.f32 0.0, %v1037
      %v1039 = vpop.f32.mrf.mxu0
      %1040 = vmatprep.mubr.f32.mxu0 0.0
      %1041 = vmatmul.mubr.f32.gmra.mxu0 %v923
      %v1042 = vpop.f32.mrf.mxu0
      %v1043 = vadd.f32 0.0, %v1042
      %v1044 = vpop.f32.mrf.mxu0
      %1045 = vmatprep.mubr.f32.mxu0 0.0
      %1046 = vmatmul.mubr.f32.gmra.mxu0 %v926
      %v1047 = vpop.f32.mrf.mxu0
      %v1048 = vadd.f32 0.0, %v1047
      %v1049 = vpop.f32.mrf.mxu0
      %1050 = vmatprep.mubr.f32.mxu0 0.0
      %1051 = vmatmul.mubr.f32.gmra.mxu0 %v929
      %v1052 = vpop.f32.mrf.mxu0
      %v1053 = vadd.f32 0.0, %v1052
      %v1054 = vpop.f32.mrf.mxu0
      %1055 = vmatprep.mubr.f32.mxu0 0.0
      %1056 = vmatmul.mubr.f32.gmra.mxu0 %v932
      %v1057 = vpop.f32.mrf.mxu0
      %v1058 = vadd.f32 0.0, %v1057
      %v1059 = vpop.f32.mrf.mxu0
      %1060 = vmatprep.mubr.f32.mxu0 0.0
      %1061 = vmatmul.mubr.f32.gmra.mxu0 %v935
      %v1062 = vpop.f32.mrf.mxu0
      %v1063 = vadd.f32 0.0, %v1062
      %v1064 = vpop.f32.mrf.mxu0
      %1065 = vmatprep.mubr.f32.mxu0 0.0
      %1066 = vmatmul.mubr.f32.gmra.mxu0 %v938
      %v1067 = vpop.f32.mrf.mxu0
      %v1068 = vadd.f32 0.0, %v1067
      %v1069 = vpop.f32.mrf.mxu0
      %1070 = vmatprep.mubr.f32.mxu0 0.0
      %1071 = vmatmul.mubr.f32.gmra.mxu0 %v941
      %v1072 = vpop.f32.mrf.mxu0
      %v1073 = vadd.f32 0.0, %v1072
      %v1074 = vpop.f32.mrf.mxu0
      %1075 = vmatprep.mubr.f32.mxu0 0.0
      %1076 = vmatmul.mubr.f32.gmra.mxu0 %v944
      %v1077 = vpop.f32.mrf.mxu0
      %v1078 = vadd.f32 0.0, %v1077
      %v1079 = vpop.f32.mrf.mxu0
      %1080 = vmatprep.mubr.f32.mxu0 0.0
      %1081 = vmatmul.mubr.f32.gmra.mxu0 %v947
      %v1082 = vpop.f32.mrf.mxu0
      %v1083 = vadd.f32 0.0, %v1082
      %v1084 = vpop.f32.mrf.mxu0
      %1085 = vmatprep.mubr.f32.mxu0 0.0
      %1086 = vmatmul.mubr.f32.gmra.mxu0 %v950
      %v1087 = vpop.f32.mrf.mxu0
      %v1088 = vadd.f32 0.0, %v1087
      %v1089 = vpop.f32.mrf.mxu0
      %1090 = vmatprep.mubr.f32.mxu0 0.0
      %1091 = vmatmul.mubr.f32.gmra.mxu0 %v953
      %v1092 = vpop.f32.mrf.mxu0
      %v1093 = vadd.f32 0.0, %v1092
      %v1094 = vpop.f32.mrf.mxu0
      %1095 = vmatprep.mubr.f32.mxu0 0.0
      %1096 = vmatmul.mubr.f32.gmra.mxu0 %v956
      %v1097 = vpop.f32.mrf.mxu0
      %v1098 = vadd.f32 0.0, %v1097
      %v1099 = vpop.f32.mrf.mxu0
      %1100 = vmatprep.mubr.f32.mxu0 0.0
      %1101 = vmatmul.mubr.f32.gmra.mxu0 %v959
      %v1102 = vpop.f32.mrf.mxu0
      %v1103 = vadd.f32 0.0, %v1102
      %v1104 = vpop.f32.mrf.mxu0
      %1105 = vmatprep.mubr.f32.mxu0 0.0
      %1106 = vmatmul.mubr.f32.gmra.mxu0 %v962
      %v1107 = vpop.f32.mrf.mxu0
      %v1108 = vadd.f32 0.0, %v1107
      %v1109 = vpop.f32.mrf.mxu0
      %1110 = vmatprep.mubr.f32.mxu0 0.0
      %1111 = vmatmul.mubr.f32.gmra.mxu0 %v965
      %v1112 = vpop.f32.mrf.mxu0
      %v1113 = vadd.f32 0.0, %v1112
      %v1114 = vpop.f32.mrf.mxu0
      %1115 = vdwg.mxu0
      %1116 = vst [vmem:[%s221] sm:$0xff] %v1038
      %1117 = vst [vmem:[%s221 + $0x8] sm:$0xff] %v1043
      %1118 = vst [vmem:[%s221 + $0x10] sm:$0xff] %v1048
      %1119 = vst [vmem:[%s221 + $0x18] sm:$0xff] %v1053
      %1120 = vst [vmem:[%s221 + $0x20] sm:$0xff] %v1058
      %1121 = vst [vmem:[%s221 + $0x28] sm:$0xff] %v1063
      %1122 = vst [vmem:[%s221 + $0x30] sm:$0xff] %v1068
      %1123 = vst [vmem:[%s221 + $0x38] sm:$0xff] %v1073
      %1124 = vst [vmem:[%s221 + $0x40] sm:$0xff] %v1078
      %1125 = vst [vmem:[%s221 + $0x48] sm:$0xff] %v1083
      %1126 = vst [vmem:[%s221 + $0x50] sm:$0xff] %v1088
      %1127 = vst [vmem:[%s221 + $0x58] sm:$0xff] %v1093
      %1128 = vst [vmem:[%s221 + $0x60] sm:$0xff] %v1098
      %1129 = vst [vmem:[%s221 + $0x68] sm:$0xff] %v1103
      %1130 = vst [vmem:[%s221 + $0x70] sm:$0xff] %v1108
      %1131 = vst [vmem:[%s221 + $0x78] sm:$0xff] %v1113
      %v1132 = vadd.f32 %v1038, %v1043
      %v1133 = vadd.f32 %v1132, %v1048
      %v1134 = vadd.f32 %v1133, %v1053
      %v1135 = vadd.f32 %v1134, %v1058
      %v1136 = vadd.f32 %v1135, %v1063
      %v1137 = vadd.f32 %v1136, %v1068
      %v1138 = vadd.f32 %v1137, %v1073
      %v1139 = vadd.f32 %v1138, %v1078
      %v1140 = vadd.f32 %v1139, %v1083
      %v1141 = vadd.f32 %v1140, %v1088
      %v1142 = vadd.f32 %v1141, %v1093
      %v1143 = vadd.f32 %v1142, %v1098
      %v1144 = vadd.f32 %v1143, %v1103
      %v1145 = vadd.f32 %v1144, %v1108
      %v1146 = vadd.f32 %v1145, %v1113
      %v1147 = vrot.slane %v1146, 4
      %v1148 = vadd.f32 %v1146, %v1147
      %v1149 = vrot.slane %v1148, 2
      %v1150 = vadd.f32 %v1148, %v1149
      %v1151 = vrot.slane %v1150, 1
      %v1152 = vadd.f32 %v1150, %v1151
      %v1153 = vmul.f32 %v1038, %v1038
      %v1154 = vmul.f32 %v1043, %v1043
      %v1155 = vmul.f32 %v1048, %v1048
      %v1156 = vmul.f32 %v1053, %v1053
      %v1157 = vmul.f32 %v1058, %v1058
      %v1158 = vmul.f32 %v1063, %v1063
      %v1159 = vmul.f32 %v1068, %v1068
      %v1160 = vmul.f32 %v1073, %v1073
      %v1161 = vmul.f32 %v1078, %v1078
      %v1162 = vmul.f32 %v1083, %v1083
      %v1163 = vmul.f32 %v1088, %v1088
      %v1164 = vmul.f32 %v1093, %v1093
      %v1165 = vmul.f32 %v1098, %v1098
      %v1166 = vmul.f32 %v1103, %v1103
      %v1167 = vmul.f32 %v1108, %v1108
      %v1168 = vmul.f32 %v1113, %v1113
      %v1169 = vadd.f32 %v1153, %v1154
      %v1170 = vadd.f32 %v1169, %v1155
      %v1171 = vadd.f32 %v1170, %v1156
      %v1172 = vadd.f32 %v1171, %v1157
      %v1173 = vadd.f32 %v1172, %v1158
      %v1174 = vadd.f32 %v1173, %v1159
      %v1175 = vadd.f32 %v1174, %v1160
      %v1176 = vadd.f32 %v1175, %v1161
      %v1177 = vadd.f32 %v1176, %v1162
      %v1178 = vadd.f32 %v1177, %v1163
      %v1179 = vadd.f32 %v1178, %v1164
      %v1180 = vadd.f32 %v1179, %v1165
      %v1181 = vadd.f32 %v1180, %v1166
      %v1182 = vadd.f32 %v1181, %v1167
      %v1183 = vadd.f32 %v1182, %v1168
      %v1184 = vrot.slane %v1183, 4
      %v1185 = vadd.f32 %v1183, %v1184
      %v1186 = vrot.slane %v1185, 2
      %v1187 = vadd.f32 %v1185, %v1186
      %v1188 = vrot.slane %v1187, 1
      %v1189 = vadd.f32 %v1187, %v1188
      %vm1190 = vcmask 1040384
      %v1191 = vsel %vm1190, %v1152, %v1189
      %1192 = vst [vmem:[%s230] sm:$0x3] %v1191
      %s1193 = smul.u32 8, %s20
      %p1194 = scmp.lt.s32.totalorder %s19, 1
      %s1195 = scalar_select %p1194, %s19, 1
      %p1196 = scmp.lt.s32.totalorder %s1193, 15
      %s1197 = scalar_select %p1196, %s1193, 15
      %s1198 = smul.addr %s1197, 2
      %s1199 = smul.addr %s1195, 32
      %s1200 = sadd.s32 %s1198, %s1199
      %s1201 = smul.addr %s1200, 8
      %s1202 = scalar_lea.vmem %s2, %s1201
      %p1203 = scmp.lt.s32.totalorder %s19, 1
      %s1204 = scalar_select %p1203, %s19, 1
      %p1205 = scmp.lt.s32.totalorder %s20, 1
      %s1206 = scalar_select %p1205, %s20, 1
      %s1207 = smul.addr %s1204, 2
      %s1208 = sadd.s32 %s1206, %s1207
      %s1209 = smul.addr %s1208, 2
      %s1210 = scalar_lea.vmem %s3, %s1209
      // Predicated region
      $region29: #{inconv_forward.4} parent=27 // pred_check
        %p1211 = pneg %p98
      $region30: #{inconv_forward.4} parent=27 // pred_check_branch
        %1213 = sbr.rel (%p1211) target = $region32
      $region31: #{inconv_forward.4} parent=27 // pred_region
        %s1214 = smul.u32 8, %s20
      $region32: #{inconv_forward.4} parent=27 // pred_fallthru
        _
      // Predicated region
      $region33: #{inconv_forward.4} parent=27 // pred_check
        %p1215 = pneg %p126
      $region34: #{inconv_forward.4} parent=27 // pred_check_branch
        %1217 = sbr.rel (%p1215) target = $region36
      $region35: #{inconv_forward.4} parent=27 // pred_region
        _
      $region36: #{inconv_forward.4} parent=27 // pred_fallthru
        _
    $region28: #{inconv_forward.4} parent=5 // pred_fallthru
      _
    %p1218 = scmp.le.s32.totalorder 2, %s10
    // Predicated region
    $region37: #{inconv_forward.4} parent=5 // pred_check
      %p1219 = pneg %p1218
    $region38: #{inconv_forward.4} parent=5 // pred_check_branch
      %1221 = sbr.rel (%p1219) target = $region40
    $region39: #{inconv_forward.4} parent=5 // pred_region
      %s1222 = ssub.s32 %s10, 2
      // Predicated region
      $region41: #{inconv_forward.4} parent=39 // pred_check
        %p1223 = pneg %p104
      $region42: #{inconv_forward.4} parent=39 // pred_check_branch
        %1225 = sbr.rel (%p1223) target = $region44
      $region43: #{inconv_forward.4} parent=39 // pred_region
        %s1226 = smul.u32 8, %s22
        %p1227 = scmp.lt.s32.totalorder %s21, 1
        %s1228 = scalar_select %p1227, %s21, 1
        %p1229 = scmp.lt.s32.totalorder %s1226, 15
        %s1230 = scalar_select %p1229, %s1226, 15
        %s1231 = smul.addr %s1230, 2
        %s1232 = smul.addr %s1228, 32
        %s1233 = sadd.s32 %s1231, %s1232
        %s1234 = smul.addr %s1233, 8
        %s1235 = scalar_lea.vmem %s2, %s1234
      $region44: #{inconv_forward.4} parent=39 // pred_fallthru
        _
      // Predicated region
      $region45: #{inconv_forward.4} parent=39 // pred_check
        %p1236 = pneg %p132
      $region46: #{inconv_forward.4} parent=39 // pred_check_branch
        %1238 = sbr.rel (%p1236) target = $region48
      $region47: #{inconv_forward.4} parent=39 // pred_region
        %p1239 = scmp.lt.s32.totalorder %s21, 1
        %s1240 = scalar_select %p1239, %s21, 1
        %p1241 = scmp.lt.s32.totalorder %s22, 1
        %s1242 = scalar_select %p1241, %s22, 1
        %s1243 = smul.addr %s1240, 2
        %s1244 = sadd.s32 %s1242, %s1243
        %s1245 = smul.addr %s1244, 2
        %s1246 = scalar_lea.vmem %s3, %s1245
      $region48: #{inconv_forward.4} parent=39 // pred_fallthru
        _
    $region40: #{inconv_forward.4} parent=5 // pred_fallthru
      _
  $region6: #{inconv_forward.4} parent=0 // loop_footer
    %s14 = sadd.s32 1, %s10
  $region7: #{inconv_forward.4} parent=0 // loop_footer_branch
    %9 = sbr.rel target = $region3
  $region8: #{inconv_forward.4} parent=0 // loop_exit
    _

// kernel: inconv_forward.6
$region0: #{inconv_forward.6}
  #allocation0 [shape = 'u32[]', space=smem, size = 0x4, offset = 0x4, fixed_abs, tag = 'smem constant byte address 0x4 - core index']
  #allocation1 [shape = 'u32[144,128]{1,0:T(1,128)}', space=vmem, size = 0x12000, scoped, tag = 'internal scratch']
  %s0 = inlined_call_operand.vmem [shape: f32[4,10,24,128], index: 0, kind: input, shape index: {}]
  %s1 = inlined_call_operand.vmem [shape: f32[1152,128], index: 1, kind: input, shape index: {}]
  %s2 = inlined_call_operand.vmem [shape: f32[2,16,16,128], index: 2, kind: output, shape index: {0}]
  %s3 = inlined_call_operand.vmem [shape: f32[2,2,2,128], index: 3, kind: output, shape index: {1}]
  %4 = xla_tuple %s2, %s3
  %s5 = sld [smem:[#allocation0]]
  $region49: #{inconv_forward.6} parent=0
    _
  %s7 = ssub.s32 1, %s5
  %s8 = scalar_select 0, %s7, %s5
  loop: start=0, step=1, limit=6
  $region2: #{inconv_forward.6} parent=0 // loop_pre_header
    _
  $region3: #{inconv_forward.6} parent=0 // loop_header
    %s10 = sphi 0, %s14
    %p11 = scmp.ge.s32.totalorder %s10, 6
    %s17 = sphi 0, %s29
    %s18 = sphi 0, %s25
    %s19 = sphi 0, %s17
    %s20 = sphi 0, %s18
    %s21 = sphi 0, %s19
    %s22 = sphi 0, %s20
    %s36 = sphi 0, %s38
    %s39 = sphi 0, %s36
    %s40 = sphi 0, %s39
    %s56 = sphi 0, %s40
    %s60 = sphi 0, %s60
    %s62 = sphi 0, %s60
    %s63 = sphi 0, %s62
    %s77 = sphi 0, %s63
    %s85 = sphi 0, %s87
    %s88 = sphi 0, %s85
    %s89 = sphi 0, %s88
    %s105 = sphi 0, %s89
    %s113 = sphi 0, %s115
    %s116 = sphi 0, %s113
    %s117 = sphi 0, %s116
    %s133 = sphi 0, %s117
  $region4: #{inconv_forward.6} parent=0 // loop_header_branch
    %13 = sbr.rel (%p11) target = $region8
  $region5: #{inconv_forward.6} parent=0 // loop_body
    %s15 = ssub.s32 %s10, 1
    %s16 = ssub.s32 %s10, 2
    %s23 = sadd.s32 1, %s18
    %p24 = scmp.ge.s32.totalorder %s23, 2
    %s25 = scalar_select %p24, 0, %s23
    %s26 = sadd.s32 1, %s17
    %s27 = scalar_select %p24, %s26, %s17
    %p28 = scmp.ge.s32.totalorder %s27, 2
    %s29 = scalar_select %p28, 0, %s27
    %s30 = smul.u32 %s17, 2
    %s31 = sadd.s32 %s30, %s18
    %s32 = smul.u32 %s29, 2
    %s33 = sadd.s32 %s32, %s25
    %s34 = ssub.s32 %s31, %s33
    %p35 = scmp.eq.s32.totalorder %s34, 0
    %s37 = sadd.s32 %s36, 1
    %s38 = scalar_select %p35, %s36, %s37
    %p41 = pneg %p35
    %p42 = scmp.eq.s32.totalorder %s10, 3
    %p43 = por %p41, %p42
    %p44 = scmp.ne.s32.totalorder %s36, %s39
    %p45 = scmp.eq.s32.totalorder %s10, 0
    %p46 = por %p44, %p45
    %p47 = scmp.ne.s32.totalorder %s36, %s39
    %p48 = scmp.eq.s32.totalorder %s15, 3
    %p49 = por %p47, %p48
    %p50 = scmp.ne.s32.totalorder %s39, %s40
    %p51 = scmp.eq.s32.totalorder %s15, 0
    %p52 = por %p50, %p51
    %p53 = scmp.ne.s32.totalorder %s39, %s40
    %p54 = scmp.eq.s32.totalorder %s16, 3
    %p55 = por %p53, %p54
    %p57 = scmp.ne.s32.totalorder %s40, %s56
    %p58 = scmp.eq.s32.totalorder %s16, 0
    %p59 = por %p57, %p58
    %s61 = sadd.s32 %s60, 1
    %p64 = scmp.eq.s32.totalorder %s10, 3
    %p65 = scmp.ne.s32.totalorder %s60, %s62
    %p66 = scmp.eq.s32.totalorder %s10, 0
    %p67 = por %p65, %p66
    %p68 = scmp.ne.s32.totalorder %s60, %s62
    %p69 = scmp.eq.s32.totalorder %s15, 3
    %p70 = por %p68, %p69
    %p71 = scmp.ne.s32.totalorder %s62, %s63
    %p72 = scmp.eq.s32.totalorder %s15, 0
    %p73 = por %p71, %p72
    %p74 = scmp.ne.s32.totalorder %s62, %s63
    %p75 = scmp.eq.s32.totalorder %s16, 3
    %p76 = por %p74, %p75
    %p78 = scmp.ne.s32.totalorder %s63, %s77
    %p79 = scmp.eq.s32.totalorder %s16, 0
    %p80 = por %p78, %p79
    %s81 = ssub.s32 %s17, %s29
    %s82 = ssub.s32 %s18, %s25
    %s83 = sor.u32 %s81, %s82
    %p84 = scmp.eq.s32.totalorder %s83, 0
    %s86 = sadd.s32 %s85, 1
    %s87 = scalar_select %p84, %s85, %s86
    %p90 = pneg %p84
    %p91 = scmp.eq.s32.totalorder %s10, 3
    %p92 = por %p90, %p91
    %p93 = scmp.ne.s32.totalorder %s85, %s88
    %p94 = scmp.eq.s32.totalorder %s10, 0
    %p95 = por %p93, %p94
    %p96 = scmp.ne.s32.totalorder %s85, %s88
    %p97 = scmp.eq.s32.totalorder %s15, 3
    %p98 = por %p96, %p97
    %p99 = scmp.ne.s32.totalorder %s88, %s89
    %p100 = scmp.eq.s32.totalorder %s15, 0
    %p101 = por %p99, %p100
    %p102 = scmp.ne.s32.totalorder %s88, %s89
    %p103 = scmp.eq.s32.totalorder %s16, 3
    %p104 = por %p102, %p103
    %p106 = scmp.ne.s32.totalorder %s89, %s105
    %p107 = scmp.eq.s32.totalorder %s16, 0
    %p108 = por %p106, %p107
    %s109 = ssub.s32 %s17, %s29
    %s110 = ssub.s32 %s18, %s25
    %s111 = sor.u32 %s109, %s110
    %p112 = scmp.eq.s32.totalorder %s111, 0
    %s114 = sadd.s32 %s113, 1
    %s115 = scalar_select %p112, %s113, %s114
    %p118 = pneg %p112
    %p119 = scmp.eq.s32.totalorder %s10, 3
    %p120 = por %p118, %p119
    %p121 = scmp.ne.s32.totalorder %s113, %s116
    %p122 = scmp.eq.s32.totalorder %s10, 0
    %p123 = por %p121, %p122
    %p124 = scmp.ne.s32.totalorder %s113, %s116
    %p125 = scmp.eq.s32.totalorder %s15, 3
    %p126 = por %p124, %p125
    %p127 = scmp.ne.s32.totalorder %s116, %s117
    %p128 = scmp.eq.s32.totalorder %s15, 0
    %p129 = por %p127, %p128
    %p130 = scmp.ne.s32.totalorder %s116, %s117
    %p131 = scmp.eq.s32.totalorder %s16, 3
    %p132 = por %p130, %p131
    %p134 = scmp.ne.s32.totalorder %s117, %s133
    %p135 = scmp.eq.s32.totalorder %s16, 0
    %p136 = por %p134, %p135
    %p137 = scmp.le.s32.totalorder 1, %s10
    %p138 = scmp.lt.s32.totalorder %s10, 5
    %p139 = pnand %p137, %p138
    %p140 = pneg %p139
    // Predicated region
    $region9: #{inconv_forward.6} parent=5 // pred_check
      _
    $region10: #{inconv_forward.6} parent=5 // pred_check_branch
      %142 = sbr.rel (%p139) target = $region12
    $region11: #{inconv_forward.6} parent=5 // pred_region
      %s143 = ssub.s32 %s10, 1
      // Predicated region
      $region13: #{inconv_forward.6} parent=11 // pred_check
        %p144 = pneg %p73
      $region14: #{inconv_forward.6} parent=11 // pred_check_branch
        %146 = sbr.rel (%p144) target = $region16
      $region15: #{inconv_forward.6} parent=11 // pred_region
        _
      $region16: #{inconv_forward.6} parent=11 // pred_fallthru
        _
    $region12: #{inconv_forward.6} parent=5 // pred_fallthru
      _
    %p147 = scmp.lt.s32.totalorder %s10, 4
    // Predicated region
    $region17: #{inconv_forward.6} parent=5 // pred_check
      %p148 = pneg %p147
    $region18: #{inconv_forward.6} parent=5 // pred_check_branch
      %150 = sbr.rel (%p148) target = $region20
    $region19: #{inconv_forward.6} parent=5 // pred_region
      // Predicated region
      $region21: #{inconv_forward.6} parent=19 // pred_check
        %p151 = pneg %p46
      $region22: #{inconv_forward.6} parent=19 // pred_check_branch
        %153 = sbr.rel (%p151) target = $region24
      $region23: #{inconv_forward.6} parent=19 // pred_region
        %s154 = smul.u32 %s17, 2
        %s155 = sadd.s32 %s154, %s18
        %p156 = scmp.lt.s32.totalorder %s155, 3
        %s157 = scalar_select %p156, %s155, 3
        %s158 = smul.addr %s157, 30
        %s159 = smul.addr %s158, 8
        %s160 = scalar_lea.vmem %s0, %s159
        %s161 = smul.u32 %s17, 2
        %s162 = sadd.s32 %s161, %s18
      $region24: #{inconv_forward.6} parent=19 // pred_fallthru
        _
    $region20: #{inconv_forward.6} parent=5 // pred_fallthru
      _
    %p163 = scmp.le.s32.totalorder 1, %s10
    %p164 = scmp.lt.s32.totalorder %s10, 5
    %p165 = pnand %p163, %p164
    %p166 = pneg %p165
    // Predicated region
    $region25: #{inconv_forward.6} parent=5 // pred_check
      _
    $region26: #{inconv_forward.6} parent=5 // pred_check_branch
      %168 = sbr.rel (%p165) target = $region28
    $region27: #{inconv_forward.6} parent=5 // pred_region
      %s169 = ssub.s32 %s10, 1
      %s170 = smul.u32 %s19, 2
      %s171 = sadd.s32 %s170, %s20
      %p172 = scmp.lt.s32.totalorder %s171, 3
      %s173 = scalar_select %p172, %s171, 3
      %s174 = smul.addr %s173, 30
      %s175 = smul.addr %s174, 8
      %s176 = scalar_lea.vmem %s0, %s175
      %p177 = pneg %p52
      %p178 = pneg %p49
      %p179 = pneg %p73
      %p180 = pneg %p70
      %p181 = pneg %p101
      %p182 = pneg %p98
      %s183 = smul.u32 8, %s20
      %p184 = scmp.lt.s32.totalorder %s19, 1
      %s185 = scalar_select %p184, %s19, 1
      %p186 = scmp.lt.s32.totalorder %s183, 15
      %s187 = scalar_select %p186, %s183, 15
      %s188 = smul.addr %s187, 2
      %s189 = smul.addr %s185, 32
      %s190 = sadd.s32 %s188, %s189
      %s191 = smul.addr %s190, 8
      %s192 = scalar_lea.vmem %s2, %s191
      %p193 = pneg %p129
      %p194 = pneg %p126
      %p195 = scmp.lt.s32.totalorder %s19, 1
      %s196 = scalar_select %p195, %s19, 1
      %p197 = scmp.lt.s32.totalorder %s20, 1
      %s198 = scalar_select %p197, %s20, 1
      %s199 = smul.addr %s196, 2
      %s200 = sadd.s32 %s198, %s199
      %s201 = smul.addr %s200, 2
      %s202 = scalar_lea.vmem %s3, %s201
      %s203 = smul.u32 %s19, 2
      %s204 = sadd.s32 %s203, %s20
      %p205 = scmp.lt.s32.totalorder %s204, 3
      %s206 = scalar_select %p205, %s204, 3
      %s207 = smul.addr %s206, 30
      %s208 = smul.addr %s207, 8
      %s209 = scalar_lea.vmem %s0, %s208
      %s210 = smul.u32 %s19, 2
      %s211 = sadd.s32 %s210, %s20
      %s212 = smul.u32 8, %s20
      %p213 = scmp.lt.s32.totalorder %s19, 1
      %s214 = scalar_select %p213, %s19, 1
      %p215 = scmp.lt.s32.totalorder %s212, 15
      %s216 = scalar_select %p215, %s212, 15
      %s217 = smul.addr %s216, 2
      %s218 = smul.addr %s214, 32
      %s219 = sadd.s32 %s217, %s218
      %s220 = smul.addr %s219, 8
      %s221 = scalar_lea.vmem %s2, %s220
      %s222 = smul.u32 8, %s20
      %p223 = scmp.lt.s32.totalorder %s19, 1
      %s224 = scalar_select %p223, %s19, 1
      %p225 = scmp.lt.s32.totalorder %s20, 1
      %s226 = scalar_select %p225, %s20, 1
      %s227 = smul.addr %s224, 2
      %s228 = sadd.s32 %s226, %s227
      %s229 = smul.addr %s228, 2
      %s230 = scalar_lea.vmem %s3, %s229
      %v231 = vld [vmem:[%s209] sm:$0xff]
      %v232 = vld [vmem:[%s209 + $0x8] sm:$0xff]
      %v233 = vld [vmem:[%s209 + $0x10] sm:$0xff]
      %v234 = vld [vmem:[%s209 + $0x18] sm:$0xff]
      %v235 = vld [vmem:[%s209 + $0x20] sm:$0xff]
      %v236 = vld [vmem:[%s209 + $0x28] sm:$0xff]
      %v237 = vld [vmem:[%s209 + $0x30] sm:$0xff]
      %v238 = vld [vmem:[%s209 + $0x38] sm:$0xff]
      %v239 = vld [vmem:[%s209 + $0x40] sm:$0xff]
      %v240 = vld [vmem:[%s209 + $0x48] sm:$0xff]
      %v241 = vld [vmem:[%s209 + $0x50] sm:$0xff]
      %v242 = vld [vmem:[%s209 + $0x58] sm:$0xff]
      %v243 = vld [vmem:[%s209 + $0x60] sm:$0xff]
      %v244 = vld [vmem:[%s209 + $0x68] sm:$0xff]
      %v245 = vld [vmem:[%s209 + $0x70] sm:$0xff]
      %v246 = vld [vmem:[%s209 + $0x78] sm:$0xff]
      %v247 = vld [vmem:[%s209 + $0x80] sm:$0xff]
      %v248 = vld [vmem:[%s209 + $0x88] sm:$0xff]
      %v249 = vld [vmem:[%s209 + $0x90] sm:$0xff]
      %v250 = vld [vmem:[%s209 + $0x98] sm:$0xff]
      %v251 = vld [vmem:[%s209 + $0xa0] sm:$0xff]
      %v252 = vld [vmem:[%s209 + $0xa8] sm:$0xff]
      %v253 = vld [vmem:[%s209 + $0xb0] sm:$0xff]
      %v254 = vld [vmem:[%s209 + $0xb8] sm:$0xff]
      %v255 = vld [vmem:[%s209 + $0xc0] sm:$0xff]
      %v256 = vld [vmem:[%s209 + $0xc8] sm:$0xff]
      %v257 = vld [vmem:[%s209 + $0xd0] sm:$0xff]
      %v258 = vld [vmem:[%s209 + $0xd8] sm:$0xff]
      %v259 = vld [vmem:[%s209 + $0xe0] sm:$0xff]
      %v260 = vld [vmem:[%s209 + $0xe8] sm:$0xff]
      %vm285 = vcmask 1046528
      %v286 = vrot.slane %v231, 1
      %v287 = vrot.slane %v232, 1
      %v288 = vsel %vm285, %v286, %v287
      %v289 = vrot.slane %v233, 1
      %v290 = vsel %vm285, %v287, %v289
      %v291 = vrot.slane %v234, 1
      %v292 = vrot.slane %v235, 1
      %v293 = vsel %vm285, %v291, %v292
      %v294 = vrot.slane %v236, 1
      %v295 = vsel %vm285, %v292, %v294
      %v296 = vrot.slane %v237, 1
      %v297 = vrot.slane %v238, 1
      %v298 = vsel %vm285, %v296, %v297
      %v299 = vrot.slane %v239, 1
      %v300 = vsel %vm285, %v297, %v299
      %v301 = vrot.slane %v240, 1
      %v302 = vrot.slane %v241, 1
      %v303 = vsel %vm285, %v301, %v302
      %v304 = vrot.slane %v242, 1
      %v305 = vsel %vm285, %v302, %v304
      %v306 = vrot.slane %v243, 1
      %v307 = vrot.slane %v244, 1
      %v308 = vsel %vm285, %v306, %v307
      %v309 = vrot.slane %v245, 1
      %v310 = vsel %vm285, %v307, %v309
      %v311 = vrot.slane %v246, 1
      %v312 = vrot.slane %v247, 1
      %v313 = vsel %vm285, %v311, %v312
      %v314 = vrot.slane %v248, 1
      %v315 = vsel %vm285, %v312, %v314
      %v316 = vrot.slane %v249, 1
      %v317 = vrot.slane %v250, 1
      %v318 = vsel %vm285, %v316, %v317
      %v319 = vrot.slane %v251, 1
      %v320 = vsel %vm285, %v317, %v319
      %v321 = vrot.slane %v252, 1
      %v322 = vrot.slane %v253, 1
      %v323 = vsel %vm285, %v321, %v322
      %v324 = vrot.slane %v254, 1
      %v325 = vsel %vm285, %v322, %v324
      %vm342 = vcmask 1045504
      %v343 = vrot.slane %v231, 2
      %v344 = vrot.slane %v232, 2
      %v345 = vsel %vm342, %v343, %v344
      %v346 = vrot.slane %v233, 2
      %v347 = vsel %vm342, %v344, %v346
      %v348 = vrot.slane %v234, 2
      %v349 = vrot.slane %v235, 2
      %v350 = vsel %vm342, %v348, %v349
      %v351 = vrot.slane %v236, 2
      %v352 = vsel %vm342, %v349, %v351
      %v353 = vrot.slane %v237, 2
      %v354 = vrot.slane %v238, 2
      %v355 = vsel %vm342, %v353, %v354
      %v356 = vrot.slane %v239, 2
      %v357 = vsel %vm342, %v354, %v356
      %v358 = vrot.slane %v240, 2
      %v359 = vrot.slane %v241, 2
      %v360 = vsel %vm342, %v358, %v359
      %v361 = vrot.slane %v242, 2
      %v362 = vsel %vm342, %v359, %v361
      %v363 = vrot.slane %v243, 2
      %v364 = vrot.slane %v244, 2
      %v365 = vsel %vm342, %v363, %v364
      %v366 = vrot.slane %v245, 2
      %v367 = vsel %vm342, %v364, %v366
      %v368 = vrot.slane %v246, 2
      %v369 = vrot.slane %v247, 2
      %v370 = vsel %vm342, %v368, %v369
      %v371 = vrot.slane %v248, 2
      %v372 = vsel %vm342, %v369, %v371
      %v373 = vrot.slane %v249, 2
      %v374 = vrot.slane %v250, 2
      %v375 = vsel %vm342, %v373, %v374
      %v376 = vrot.slane %v251, 2
      %v377 = vsel %vm342, %v374, %v376
      %v378 = vrot.slane %v252, 2
      %v379 = vrot.slane %v253, 2
      %v380 = vsel %vm342, %v378, %v379
      %v381 = vrot.slane %v254, 2
      %v382 = vsel %vm342, %v379, %v381
      %v402 = vrot.slane %v255, 1
      %v403 = vrot.slane %v256, 1
      %v404 = vsel %vm285, %v402, %v403
      %v405 = vrot.slane %v257, 1
      %v406 = vsel %vm285, %v403, %v405
      %v409 = vrot.slane %v255, 2
      %v410 = vrot.slane %v256, 2
      %v411 = vsel %vm342, %v409, %v410
      %v412 = vrot.slane %v257, 2
      %v413 = vsel %vm342, %v410, %v412
      %v419 = vrot.slane %v258, 1
      %v420 = vrot.slane %v259, 1
      %v421 = vsel %vm285, %v419, %v420
      %v422 = vrot.slane %v260, 1
      %v423 = vsel %vm285, %v420, %v422
      %v426 = vrot.slane %v258, 2
      %v427 = vrot.slane %v259, 2
      %v428 = vsel %vm342, %v426, %v427
      %v429 = vrot.slane %v260, 2
      %v430 = vsel %vm342, %v427, %v429
      %v433 = vld [vmem:[%s1] sm:$0xff]
      %v434 = vld [vmem:[%s1 + $0x8] sm:$0xff]
      %v435 = vld [vmem:[%s1 + $0x10] sm:$0xff]
      %v436 = vld [vmem:[%s1 + $0x18] sm:$0xff]
      %v437 = vld [vmem:[%s1 + $0x20] sm:$0xff]
      %v438 = vld [vmem:[%s1 + $0x28] sm:$0xff]
      %v439 = vld [vmem:[%s1 + $0x30] sm:$0xff]
      %v440 = vld [vmem:[%s1 + $0x38] sm:$0xff]
      %v441 = vld [vmem:[%s1 + $0x40] sm:$0xff]
      %v442 = vld [vmem:[%s1 + $0x48] sm:$0xff]
      %v443 = vld [vmem:[%s1 + $0x50] sm:$0xff]
      %v444 = vld [vmem:[%s1 + $0x58] sm:$0xff]
      %v445 = vld [vmem:[%s1 + $0x60] sm:$0xff]
      %v446 = vld [vmem:[%s1 + $0x68] sm:$0xff]
      %v447 = vld [vmem:[%s1 + $0x70] sm:$0xff]
      %v448 = vld [vmem:[%s1 + $0x78] sm:$0xff]
      %v449 = vld [vmem:[%s1 + $0x80] sm:$0xff]
      %v450 = vld [vmem:[%s1 + $0x88] sm:$0xff]
      %v451 = vld [vmem:[%s1 + $0x90] sm:$0xff]
      %v452 = vld [vmem:[%s1 + $0x98] sm:$0xff]
      %v453 = vld [vmem:[%s1 + $0xa0] sm:$0xff]
      %v454 = vld [vmem:[%s1 + $0xa8] sm:$0xff]
      %v455 = vld [vmem:[%s1 + $0xb0] sm:$0xff]
      %v456 = vld [vmem:[%s1 + $0xb8] sm:$0xff]
      %v457 = vld [vmem:[%s1 + $0xc0] sm:$0xff]
      %v458 = vld [vmem:[%s1 + $0xc8] sm:$0xff]
      %v459 = vld [vmem:[%s1 + $0xd0] sm:$0xff]
      %v460 = vld [vmem:[%s1 + $0xd8] sm:$0xff]
      %v461 = vld [vmem:[%s1 + $0xe0] sm:$0xff]
      %v462 = vld [vmem:[%s1 + $0xe8] sm:$0xff]
      %v463 = vld [vmem:[%s1 + $0xf0] sm:$0xff]
      %v464 = vld [vmem:[%s1 + $0xf8] sm:$0xff]
      %v465 = vld [vmem:[%s1 + $0x100] sm:$0xff]
      %v466 = vld [vmem:[%s1 + $0x108] sm:$0xff]
      %v467 = vld [vmem:[%s1 + $0x110] sm:$0xff]
      %v468 = vld [vmem:[%s1 + $0x118] sm:$0xff]
      %v469 = vld [vmem:[%s1 + $0x120] sm:$0xff]
      %v470 = vld [vmem:[%s1 + $0x128] sm:$0xff]
      %v471 = vld [vmem:[%s1 + $0x130] sm:$0xff]
      %v472 = vld [vmem:[%s1 + $0x138] sm:$0xff]
      %v473 = vld [vmem:[%s1 + $0x140] sm:$0xff]
      %v474 = vld [vmem:[%s1 + $0x148] sm:$0xff]
      %v475 = vld [vmem:[%s1 + $0x150] sm:$0xff]
      %v476 = vld [vmem:[%s1 + $0x158] sm:$0xff]
      %v477 = vld [vmem:[%s1 + $0x160] sm:$0xff]
      %v478 = vld [vmem:[%s1 + $0x168] sm:$0xff]
      %v479 = vld [vmem:[%s1 + $0x170] sm:$0xff]
      %v480 = vld [vmem:[%s1 + $0x178] sm:$0xff]
      %v481 = vld [vmem:[%s1 + $0x180] sm:$0xff]
      %v482 = vld [vmem:[%s1 + $0x188] sm:$0xff]
      %v483 = vld [vmem:[%s1 + $0x190] sm:$0xff]
      %v484 = vld [vmem:[%s1 + $0x198] sm:$0xff]
      %v485 = vld [vmem:[%s1 + $0x1a0] sm:$0xff]
      %v486 = vld [vmem:[%s1 + $0x1a8] sm:$0xff]
      %v487 = vld [vmem:[%s1 + $0x1b0] sm:$0xff]
      %v488 = vld [vmem:[%s1 + $0x1b8] sm:$0xff]
      %v489 = vld [vmem:[%s1 + $0x1c0] sm:$0xff]
      %v490 = vld [vmem:[%s1 + $0x1c8] sm:$0xff]
      %v491 = vld [vmem:[%s1 + $0x1d0] sm:$0xff]
      %v492 = vld [vmem:[%s1 + $0x1d8] sm:$0xff]
      %v493 = vld [vmem:[%s1 + $0x1e0] sm:$0xff]
      %v494 = vld [vmem:[%s1 + $0x1e8] sm:$0xff]
      %v495 = vld [vmem:[%s1 + $0x1f0] sm:$0xff]
      %v496 = vld [vmem:[%s1 + $0x1f8] sm:$0xff]
      %v497 = vld [vmem:[%s1 + $0x200] sm:$0xff]
      %v498 = vld [vmem:[%s1 + $0x208] sm:$0xff]
      %v499 = vld [vmem:[%s1 + $0x210] sm:$0xff]
      %v500 = vld [vmem:[%s1 + $0x218] sm:$0xff]
      %v501 = vld [vmem:[%s1 + $0x220] sm:$0xff]
      %v502 = vld [vmem:[%s1 + $0x228] sm:$0xff]
      %v503 = vld [vmem:[%s1 + $0x230] sm:$0xff]
      %v504 = vld [vmem:[%s1 + $0x238] sm:$0xff]
      %v505 = vld [vmem:[%s1 + $0x240] sm:$0xff]
      %v506 = vld [vmem:[%s1 + $0x248] sm:$0xff]
      %v507 = vld [vmem:[%s1 + $0x250] sm:$0xff]
      %v508 = vld [vmem:[%s1 + $0x258] sm:$0xff]
      %v509 = vld [vmem:[%s1 + $0x260] sm:$0xff]
      %v510 = vld [vmem:[%s1 + $0x268] sm:$0xff]
      %v511 = vld [vmem:[%s1 + $0x270] sm:$0xff]
      %v512 = vld [vmem:[%s1 + $0x278] sm:$0xff]
      %v513 = vld [vmem:[%s1 + $0x280] sm:$0xff]
      %v514 = vld [vmem:[%s1 + $0x288] sm:$0xff]
      %v515 = vld [vmem:[%s1 + $0x290] sm:$0xff]
      %v516 = vld [vmem:[%s1 + $0x298] sm:$0xff]
      %v517 = vld [vmem:[%s1 + $0x2a0] sm:$0xff]
      %v518 = vld [vmem:[%s1 + $0x2a8] sm:$0xff]
      %v519 = vld [vmem:[%s1 + $0x2b0] sm:$0xff]
      %v520 = vld [vmem:[%s1 + $0x2b8] sm:$0xff]
      %v521 = vld [vmem:[%s1 + $0x2c0] sm:$0xff]
      %v522 = vld [vmem:[%s1 + $0x2c8] sm:$0xff]
      %v523 = vld [vmem:[%s1 + $0x2d0] sm:$0xff]
      %v524 = vld [vmem:[%s1 + $0x2d8] sm:$0xff]
      %v525 = vld [vmem:[%s1 + $0x2e0] sm:$0xff]
      %v526 = vld [vmem:[%s1 + $0x2e8] sm:$0xff]
      %v527 = vld [vmem:[%s1 + $0x2f0] sm:$0xff]
      %v528 = vld [vmem:[%s1 + $0x2f8] sm:$0xff]
      %v529 = vld [vmem:[%s1 + $0x300] sm:$0xff]
      %v530 = vld [vmem:[%s1 + $0x308] sm:$0xff]
      %v531 = vld [vmem:[%s1 + $0x310] sm:$0xff]
      %v532 = vld [vmem:[%s1 + $0x318] sm:$0xff]
      %v533 = vld [vmem:[%s1 + $0x320] sm:$0xff]
      %v534 = vld [vmem:[%s1 + $0x328] sm:$0xff]
      %v535 = vld [vmem:[%s1 + $0x330] sm:$0xff]
      %v536 = vld [vmem:[%s1 + $0x338] sm:$0xff]
      %v537 = vld [vmem:[%s1 + $0x340] sm:$0xff]
      %v538 = vld [vmem:[%s1 + $0x348] sm:$0xff]
      %v539 = vld [vmem:[%s1 + $0x350] sm:$0xff]
      %v540 = vld [vmem:[%s1 + $0x358] sm:$0xff]
      %v541 = vld [vmem:[%s1 + $0x360] sm:$0xff]
      %v542 = vld [vmem:[%s1 + $0x368] sm:$0xff]
      %v543 = vld [vmem:[%s1 + $0x370] sm:$0xff]
      %v544 = vld [vmem:[%s1 + $0x378] sm:$0xff]
      %v545 = vld [vmem:[%s1 + $0x380] sm:$0xff]
      %v546 = vld [vmem:[%s1 + $0x388] sm:$0xff]
      %v547 = vld [vmem:[%s1 + $0x390] sm:$0xff]
      %v548 = vld [vmem:[%s1 + $0x398] sm:$0xff]
      %v549 = vld [vmem:[%s1 + $0x3a0] sm:$0xff]
      %v550 = vld [vmem:[%s1 + $0x3a8] sm:$0xff]
      %v551 = vld [vmem:[%s1 + $0x3b0] sm:$0xff]
      %v552 = vld [vmem:[%s1 + $0x3b8] sm:$0xff]
      %v553 = vld [vmem:[%s1 + $0x3c0] sm:$0xff]
      %v554 = vld [vmem:[%s1 + $0x3c8] sm:$0xff]
      %v555 = vld [vmem:[%s1 + $0x3d0] sm:$0xff]
      %v556 = vld [vmem:[%s1 + $0x3d8] sm:$0xff]
      %v557 = vld [vmem:[%s1 + $0x3e0] sm:$0xff]
      %v558 = vld [vmem:[%s1 + $0x3e8] sm:$0xff]
      %v559 = vld [vmem:[%s1 + $0x3f0] sm:$0xff]
      %v560 = vld [vmem:[%s1 + $0x3f8] sm:$0xff]
      %v561 = vld [vmem:[%s1 + $0x400] sm:$0xff]
      %v562 = vld [vmem:[%s1 + $0x408] sm:$0xff]
      %v563 = vld [vmem:[%s1 + $0x410] sm:$0xff]
      %v564 = vld [vmem:[%s1 + $0x418] sm:$0xff]
      %v565 = vld [vmem:[%s1 + $0x420] sm:$0xff]
      %v566 = vld [vmem:[%s1 + $0x428] sm:$0xff]
      %v567 = vld [vmem:[%s1 + $0x430] sm:$0xff]
      %v568 = vld [vmem:[%s1 + $0x438] sm:$0xff]
      %v569 = vld [vmem:[%s1 + $0x440] sm:$0xff]
      %v570 = vld [vmem:[%s1 + $0x448] sm:$0xff]
      %v571 = vld [vmem:[%s1 + $0x450] sm:$0xff]
      %v572 = vld [vmem:[%s1 + $0x458] sm:$0xff]
      %v573 = vld [vmem:[%s1 + $0x460] sm:$0xff]
      %v574 = vld [vmem:[%s1 + $0x468] sm:$0xff]
      %v575 = vld [vmem:[%s1 + $0x470] sm:$0xff]
      %v576 = vld [vmem:[%s1 + $0x478] sm:$0xff]
      %577 = vmatprep.subr.mxu0 0.0
      %578 = vmatpush1.msra.mxu0 %v448
      %579 = vmatprep.subr.mxu0 0.0
      %580 = vmatpush1.msra.mxu0 %v447
      %581 = vmatprep.subr.mxu0 0.0
      %582 = vmatpush1.msra.mxu0 %v446
      %583 = vmatprep.subr.mxu0 0.0
      %584 = vmatpush1.msra.mxu0 %v445
      %585 = vmatprep.subr.mxu0 0.0
      %586 = vmatpush1.msra.mxu0 %v444
      %587 = vmatprep.subr.mxu0 0.0
      %588 = vmatpush1.msra.mxu0 %v443
      %589 = vmatprep.subr.mxu0 0.0
      %590 = vmatpush1.msra.mxu0 %v442
      %591 = vmatprep.subr.mxu0 0.0
      %592 = vmatpush1.msra.mxu0 %v441
      %593 = vmatprep.subr.mxu0 0.0
      %594 = vmatpush1.msra.mxu0 %v440
      %595 = vmatprep.subr.mxu0 0.0
      %596 = vmatpush1.msra.mxu0 %v439
      %597 = vmatprep.subr.mxu0 0.0
      %598 = vmatpush1.msra.mxu0 %v438
      %599 = vmatprep.subr.mxu0 0.0
      %600 = vmatpush1.msra.mxu0 %v437
      %601 = vmatprep.subr.mxu0 0.0
      %602 = vmatpush1.msra.mxu0 %v436
      %603 = vmatprep.subr.mxu0 0.0
      %604 = vmatpush1.msra.mxu0 %v435
      %605 = vmatprep.subr.mxu0 0.0
      %606 = vmatpush1.msra.mxu0 %v434
      %607 = vmatprep.subr.mxu0 0.0
      %608 = vmatpush1.msra.mxu0 %v433
      %609 = vmatprep.subr.mxu0 0.0
      %610 = vmatpush2.msra.mxu0 %v464
      %611 = vmatprep.subr.mxu0 0.0
      %612 = vmatpush2.msra.mxu0 %v463
      %613 = vmatprep.subr.mxu0 0.0
      %614 = vmatpush2.msra.mxu0 %v462
      %615 = vmatprep.subr.mxu0 0.0
      %616 = vmatpush2.msra.mxu0 %v461
      %617 = vmatprep.subr.mxu0 0.0
      %618 = vmatpush2.msra.mxu0 %v460
      %619 = vmatprep.subr.mxu0 0.0
      %620 = vmatpush2.msra.mxu0 %v459
      %621 = vmatprep.subr.mxu0 0.0
      %622 = vmatpush2.msra.mxu0 %v458
      %623 = vmatprep.subr.mxu0 0.0
      %624 = vmatpush2.msra.mxu0 %v457
      %625 = vmatprep.subr.mxu0 0.0
      %626 = vmatpush2.msra.mxu0 %v456
      %627 = vmatprep.subr.mxu0 0.0
      %628 = vmatpush2.msra.mxu0 %v455
      %629 = vmatprep.subr.mxu0 0.0
      %630 = vmatpush2.msra.mxu0 %v454
      %631 = vmatprep.subr.mxu0 0.0
      %632 = vmatpush2.msra.mxu0 %v453
      %633 = vmatprep.subr.mxu0 0.0
      %634 = vmatpush2.msra.mxu0 %v452
      %635 = vmatprep.subr.mxu0 0.0
      %636 = vmatpush2.msra.mxu0 %v451
      %637 = vmatprep.subr.mxu0 0.0
      %638 = vmatpush2.msra.mxu0 %v450
      %639 = vmatprep.subr.mxu0 0.0
      %640 = vmatpush2.msra.mxu0 %v449
      %641 = vmatprep.mubr.f32.mxu0 %v288
      %642 = vmatmul.mubr.f32.gmra.mxu0 %v231
      %v643 = vpop.f32.mrf.mxu0
      %v644 = vadd.f32 0.0, %v643
      %v645 = vpop.f32.mrf.mxu0
      %646 = vmatprep.mubr.f32.mxu0 %v290
      %647 = vmatmul.mubr.f32.gmra.mxu0 %v232
      %v648 = vpop.f32.mrf.mxu0
      %v649 = vadd.f32 0.0, %v648
      %v650 = vpop.f32.mrf.mxu0
      %651 = vmatprep.mubr.f32.mxu0 %v293
      %652 = vmatmul.mubr.f32.gmra.mxu0 %v234
      %v653 = vpop.f32.mrf.mxu0
      %v654 = vadd.f32 0.0, %v653
      %v655 = vpop.f32.mrf.mxu0
      %656 = vmatprep.mubr.f32.mxu0 %v295
      %657 = vmatmul.mubr.f32.gmra.mxu0 %v235
      %v658 = vpop.f32.mrf.mxu0
      %v659 = vadd.f32 0.0, %v658
      %v660 = vpop.f32.mrf.mxu0
      %661 = vmatprep.mubr.f32.mxu0 %v298
      %662 = vmatmul.mubr.f32.gmra.mxu0 %v237
      %v663 = vpop.f32.mrf.mxu0
      %v664 = vadd.f32 0.0, %v663
      %v665 = vpop.f32.mrf.mxu0
      %666 = vmatprep.mubr.f32.mxu0 %v300
      %667 = vmatmul.mubr.f32.gmra.mxu0 %v238
      %v668 = vpop.f32.mrf.mxu0
      %v669 = vadd.f32 0.0, %v668
      %v670 = vpop.f32.mrf.mxu0
      %671 = vmatprep.mubr.f32.mxu0 %v303
      %672 = vmatmul.mubr.f32.gmra.mxu0 %v240
      %v673 = vpop.f32.mrf.mxu0
      %v674 = vadd.f32 0.0, %v673
      %v675 = vpop.f32.mrf.mxu0
      %676 = vmatprep.mubr.f32.mxu0 %v305
      %677 = vmatmul.mubr.f32.gmra.mxu0 %v241
      %v678 = vpop.f32.mrf.mxu0
      %v679 = vadd.f32 0.0, %v678
      %v680 = vpop.f32.mrf.mxu0
      %681 = vmatprep.mubr.f32.mxu0 %v308
      %682 = vmatmul.mubr.f32.gmra.mxu0 %v243
      %v683 = vpop.f32.mrf.mxu0
      %v684 = vadd.f32 0.0, %v683
      %v685 = vpop.f32.mrf.mxu0
      %686 = vmatprep.mubr.f32.mxu0 %v310
      %687 = vmatmul.mubr.f32.gmra.mxu0 %v244
      %v688 = vpop.f32.mrf.mxu0
      %v689 = vadd.f32 0.0, %v688
      %v690 = vpop.f32.mrf.mxu0
      %691 = vmatprep.mubr.f32.mxu0 %v313
      %692 = vmatmul.mubr.f32.gmra.mxu0 %v246
      %v693 = vpop.f32.mrf.mxu0
      %v694 = vadd.f32 0.0, %v693
      %v695 = vpop.f32.mrf.mxu0
      %696 = vmatprep.mubr.f32.mxu0 %v315
      %697 = vmatmul.mubr.f32.gmra.mxu0 %v247
      %v698 = vpop.f32.mrf.mxu0
      %v699 = vadd.f32 0.0, %v698
      %v700 = vpop.f32.mrf.mxu0
      %701 = vmatprep.mubr.f32.mxu0 %v318
      %702 = vmatmul.mubr.f32.gmra.mxu0 %v249
      %v703 = vpop.f32.mrf.mxu0
      %v704 = vadd.f32 0.0, %v703
      %v705 = vpop.f32.mrf.mxu0
      %706 = vmatprep.mubr.f32.mxu0 %v320
      %707 = vmatmul.mubr.f32.gmra.mxu0 %v250
      %v708 = vpop.f32.mrf.mxu0
      %v709 = vadd.f32 0.0, %v708
      %v710 = vpop.f32.mrf.mxu0
      %711 = vmatprep.mubr.f32.mxu0 %v323
      %712 = vmatmul.mubr.f32.gmra.mxu0 %v252
      %v713 = vpop.f32.mrf.mxu0
      %v714 = vadd.f32 0.0, %v713
      %v715 = vpop.f32.mrf.mxu0
      %716 = vmatprep.mubr.f32.mxu0 %v325
      %717 = vmatmul.mubr.f32.gmra.mxu0 %v253
      %v718 = vpop.f32.mrf.mxu0
      %v719 = vadd.f32 0.0, %v718
      %v720 = vpop.f32.mrf.mxu0
      %721 = vdwg.mxu0
      %722 = vmatprep.subr.mxu0 0.0
      %723 = vmatpush1.msra.mxu0 %v480
      %724 = vmatprep.subr.mxu0 0.0
      %725 = vmatpush1.msra.mxu0 %v479
      %726 = vmatprep.subr.mxu0 0.0
      %727 = vmatpush1.msra.mxu0 %v478
      %728 = vmatprep.subr.mxu0 0.0
      %729 = vmatpush1.msra.mxu0 %v477
      %730 = vmatprep.subr.mxu0 0.0
      %731 = vmatpush1.msra.mxu0 %v476
      %732 = vmatprep.subr.mxu0 0.0
      %733 = vmatpush1.msra.mxu0 %v475
      %734 = vmatprep.subr.mxu0 0.0
      %735 = vmatpush1.msra.mxu0 %v474
      %736 = vmatprep.subr.mxu0 0.0
      %737 = vmatpush1.msra.mxu0 %v473
      %738 = vmatprep.subr.mxu0 0.0
      %739 = vmatpush1.msra.mxu0 %v472
      %740 = vmatprep.subr.mxu0 0.0
      %741 = vmatpush1.msra.mxu0 %v471
      %742 = vmatprep.subr.mxu0 0.0
      %743 = vmatpush1.msra.mxu0 %v470
      %744 = vmatprep.subr.mxu0 0.0
      %745 = vmatpush1.msra.mxu0 %v469
      %746 = vmatprep.subr.mxu0 0.0
      %747 = vmatpush1.msra.mxu0 %v468
      %748 = vmatprep.subr.mxu0 0.0
      %749 = vmatpush1.msra.mxu0 %v467
      %750 = vmatprep.subr.mxu0 0.0
      %751 = vmatpush1.msra.mxu0 %v466
      %752 = vmatprep.subr.mxu0 0.0
      %753 = vmatpush1.msra.mxu0 %v465
      %754 = vmatprep.subr.mxu0 0.0
      %755 = vmatpush2.msra.mxu0 %v496
      %756 = vmatprep.subr.mxu0 0.0
      %757 = vmatpush2.msra.mxu0 %v495
      %758 = vmatprep.subr.mxu0 0.0
      %759 = vmatpush2.msra.mxu0 %v494
      %760 = vmatprep.subr.mxu0 0.0
      %761 = vmatpush2.msra.mxu0 %v493
      %762 = vmatprep.subr.mxu0 0.0
      %763 = vmatpush2.msra.mxu0 %v492
      %764 = vmatprep.subr.mxu0 0.0
      %765 = vmatpush2.msra.mxu0 %v491
      %766 = vmatprep.subr.mxu0 0.0
      %767 = vmatpush2.msra.mxu0 %v490
      %768 = vmatprep.subr.mxu0 0.0
      %769 = vmatpush2.msra.mxu0 %v489
      %770 = vmatprep.subr.mxu0 0.0
      %771 = vmatpush2.msra.mxu0 %v488
      %772 = vmatprep.subr.mxu0 0.0
      %773 = vmatpush2.msra.mxu0 %v487
      %774 = vmatprep.subr.mxu0 0.0
      %775 = vmatpush2.msra.mxu0 %v486
      %776 = vmatprep.subr.mxu0 0.0
      %777 = vmatpush2.msra.mxu0 %v485
      %778 = vmatprep.subr.mxu0 0.0
      %779 = vmatpush2.msra.mxu0 %v484
      %780 = vmatprep.subr.mxu0 0.0
      %781 = vmatpush2.msra.mxu0 %v483
      %782 = vmatprep.subr.mxu0 0.0
      %783 = vmatpush2.msra.mxu0 %v482
      %784 = vmatprep.subr.mxu0 0.0
      %785 = vmatpush2.msra.mxu0 %v481
      %786 = vmatprep.mubr.f32.mxu0 %v234
      %787 = vmatmul.mubr.f32.gmra.mxu0 %v345
      %v788 = vpop.f32.mrf.mxu0
      %v789 = vadd.f32 %v644, %v788
      %v790 = vpop.f32.mrf.mxu0
      %791 = vmatprep.mubr.f32.mxu0 %v235
      %792 = vmatmul.mubr.f32.gmra.mxu0 %v347
      %v793 = vpop.f32.mrf.mxu0
      %v794 = vadd.f32 %v649, %v793
      %v795 = vpop.f32.mrf.mxu0
      %796 = vmatprep.mubr.f32.mxu0 %v237
      %797 = vmatmul.mubr.f32.gmra.mxu0 %v350
      %v798 = vpop.f32.mrf.mxu0
      %v799 = vadd.f32 %v654, %v798
      %v800 = vpop.f32.mrf.mxu0
      %801 = vmatprep.mubr.f32.mxu0 %v238
      %802 = vmatmul.mubr.f32.gmra.mxu0 %v352
      %v803 = vpop.f32.mrf.mxu0
      %v804 = vadd.f32 %v659, %v803
      %v805 = vpop.f32.mrf.mxu0
      %806 = vmatprep.mubr.f32.mxu0 %v240
      %807 = vmatmul.mubr.f32.gmra.mxu0 %v355
      %v808 = vpop.f32.mrf.mxu0
      %v809 = vadd.f32 %v664, %v808
      %v810 = vpop.f32.mrf.mxu0
      %811 = vmatprep.mubr.f32.mxu0 %v241
      %812 = vmatmul.mubr.f32.gmra.mxu0 %v357
      %v813 = vpop.f32.mrf.mxu0
      %v814 = vadd.f32 %v669, %v813
      %v815 = vpop.f32.mrf.mxu0
      %816 = vmatprep.mubr.f32.mxu0 %v243
      %817 = vmatmul.mubr.f32.gmra.mxu0 %v360
      %v818 = vpop.f32.mrf.mxu0
      %v819 = vadd.f32 %v674, %v818
      %v820 = vpop.f32.mrf.mxu0
      %821 = vmatprep.mubr.f32.mxu0 %v244
      %822 = vmatmul.mubr.f32.gmra.mxu0 %v362
      %v823 = vpop.f32.mrf.mxu0
      %v824 = vadd.f32 %v679, %v823
      %v825 = vpop.f32.mrf.mxu0
      %826 = vmatprep.mubr.f32.mxu0 %v246
      %827 = vmatmul.mubr.f32.gmra.mxu0 %v365
      %v828 = vpop.f32.mrf.mxu0
      %v829 = vadd.f32 %v684, %v828
      %v830 = vpop.f32.mrf.mxu0
      %831 = vmatprep.mubr.f32.mxu0 %v247
      %832 = vmatmul.mubr.f32.gmra.mxu0 %v367
      %v833 = vpop.f32.mrf.mxu0
      %v834 = vadd.f32 %v689, %v833
      %v835 = vpop.f32.mrf.mxu0
      %836 = vmatprep.mubr.f32.mxu0 %v249
      %837 = vmatmul.mubr.f32.gmra.mxu0 %v370
      %v838 = vpop.f32.mrf.mxu0
      %v839 = vadd.f32 %v694, %v838
      %v840 = vpop.f32.mrf.mxu0
      %841 = vmatprep.mubr.f32.mxu0 %v250
      %842 = vmatmul.mubr.f32.gmra.mxu0 %v372
      %v843 = vpop.f32.mrf.mxu0
      %v844 = vadd.f32 %v699, %v843
      %v845 = vpop.f32.mrf.mxu0
      %846 = vmatprep.mubr.f32.mxu0 %v252
      %847 = vmatmul.mubr.f32.gmra.mxu0 %v375
      %v848 = vpop.f32.mrf.mxu0
      %v849 = vadd.f32 %v704, %v848
      %v850 = vpop.f32.mrf.mxu0
      %851 = vmatprep.mubr.f32.mxu0 %v253
      %852 = vmatmul.mubr.f32.gmra.mxu0 %v377
      %v853 = vpop.f32.mrf.mxu0
      %v854 = vadd.f32 %v709, %v853
      %v855 = vpop.f32.mrf.mxu0
      %856 = vmatprep.mubr.f32.mxu0 %v255
      %857 = vmatmul.mubr.f32.gmra.mxu0 %v380
      %v858 = vpop.f32.mrf.mxu0
      %v859 = vadd.f32 %v714, %v858
      %v860 = vpop.f32.mrf.mxu0
      %861 = vmatprep.mubr.f32.mxu0 %v256
      %862 = vmatmul.mubr.f32.gmra.mxu0 %v382
      %v863 = vpop.f32.mrf.mxu0
      %v864 = vadd.f32 %v719, %v863
      %v865 = vpop.f32.mrf.mxu0
      %866 = vdwg.mxu0
      %867 = vmatprep.subr.mxu0 0.0
      %868 = vmatpush1.msra.mxu0 %v512
      %869 = vmatprep.subr.mxu0 0.0
      %870 = vmatpush1.msra.mxu0 %v511
      %871 = vmatprep.subr.mxu0 0.0
      %872 = vmatpush1.msra.mxu0 %v510
      %873 = vmatprep.subr.mxu0 0.0
      %874 = vmatpush1.msra.mxu0 %v509
      %875 = vmatprep.subr.mxu0 0.0
      %876 = vmatpush1.msra.mxu0 %v508
      %877 = vmatprep.subr.mxu0 0.0
      %878 = vmatpush1.msra.mxu0 %v507
      %879 = vmatprep.subr.mxu0 0.0
      %880 = vmatpush1.msra.mxu0 %v506
      %881 = vmatprep.subr.mxu0 0.0
      %882 = vmatpush1.msra.mxu0 %v505
      %883 = vmatprep.subr.mxu0 0.0
      %884 = vmatpush1.msra.mxu0 %v504
      %885 = vmatprep.subr.mxu0 0.0
      %886 = vmatpush1.msra.mxu0 %v503
      %887 = vmatprep.subr.mxu0 0.0
      %888 = vmatpush1.msra.mxu0 %v502
      %889 = vmatprep.subr.mxu0 0.0
      %890 = vmatpush1.msra.mxu0 %v501
      %891 = vmatprep.subr.mxu0 0.0
      %892 = vmatpush1.msra.mxu0 %v500
      %893 = vmatprep.subr.mxu0 0.0
      %894 = vmatpush1.msra.mxu0 %v499
      %895 = vmatprep.subr.mxu0 0.0
      %896 = vmatpush1.msra.mxu0 %v498
      %897 = vmatprep.subr.mxu0 0.0
      %898 = vmatpush1.msra.mxu0 %v497
      %899 = vmatprep.subr.mxu0 0.0
      %900 = vmatpush2.msra.mxu0 %v528
      %901 = vmatprep.subr.mxu0 0.0
      %902 = vmatpush2.msra.mxu0 %v527
      %903 = vmatprep.subr.mxu0 0.0
      %904 = vmatpush2.msra.mxu0 %v526
      %905 = vmatprep.subr.mxu0 0.0
      %906 = vmatpush2.msra.mxu0 %v525
      %907 = vmatprep.subr.mxu0 0.0
      %908 = vmatpush2.msra.mxu0 %v524
      %909 = vmatprep.subr.mxu0 0.0
      %910 = vmatpush2.msra.mxu0 %v523
      %911 = vmatprep.subr.mxu0 0.0
      %912 = vmatpush2.msra.mxu0 %v522
      %913 = vmatprep.subr.mxu0 0.0
      %914 = vmatpush2.msra.mxu0 %v521
      %915 = vmatprep.subr.mxu0 0.0
      %916 = vmatpush2.msra.mxu0 %v520
      %917 = vmatprep.subr.mxu0 0.0
      %918 = vmatpush2.msra.mxu0 %v519
      %919 = vmatprep.subr.mxu0 0.0
      %920 = vmatpush2.msra.mxu0 %v518
      %921 = vmatprep.subr.mxu0 0.0
      %922 = vmatpush2.msra.mxu0 %v517
      %923 = vmatprep.subr.mxu0 0.0
      %924 = vmatpush2.msra.mxu0 %v516
      %925 = vmatprep.subr.mxu0 0.0
      %926 = vmatpush2.msra.mxu0 %v515
      %927 = vmatprep.subr.mxu0 0.0
      %928 = vmatpush2.msra.mxu0 %v514
      %929 = vmatprep.subr.mxu0 0.0
      %930 = vmatpush2.msra.mxu0 %v513
      %931 = vmatprep.mubr.f32.mxu0 %v350
      %932 = vmatmul.mubr.f32.gmra.mxu0 %v293
      %v933 = vpop.f32.mrf.mxu0
      %v934 = vadd.f32 %v789, %v933
      %v935 = vpop.f32.mrf.mxu0
      %936 = vmatprep.mubr.f32.mxu0 %v352
      %937 = vmatmul.mubr.f32.gmra.mxu0 %v295
      %v938 = vpop.f32.mrf.mxu0
      %v939 = vadd.f32 %v794, %v938
      %v940 = vpop.f32.mrf.mxu0
      %941 = vmatprep.mubr.f32.mxu0 %v355
      %942 = vmatmul.mubr.f32.gmra.mxu0 %v298
      %v943 = vpop.f32.mrf.mxu0
      %v944 = vadd.f32 %v799, %v943
      %v945 = vpop.f32.mrf.mxu0
      %946 = vmatprep.mubr.f32.mxu0 %v357
      %947 = vmatmul.mubr.f32.gmra.mxu0 %v300
      %v948 = vpop.f32.mrf.mxu0
      %v949 = vadd.f32 %v804, %v948
      %v950 = vpop.f32.mrf.mxu0
      %951 = vmatprep.mubr.f32.mxu0 %v360
      %952 = vmatmul.mubr.f32.gmra.mxu0 %v303
      %v953 = vpop.f32.mrf.mxu0
      %v954 = vadd.f32 %v809, %v953
      %v955 = vpop.f32.mrf.mxu0
      %956 = vmatprep.mubr.f32.mxu0 %v362
      %957 = vmatmul.mubr.f32.gmra.mxu0 %v305
      %v958 = vpop.f32.mrf.mxu0
      %v959 = vadd.f32 %v814, %v958
      %v960 = vpop.f32.mrf.mxu0
      %961 = vmatprep.mubr.f32.mxu0 %v365
      %962 = vmatmul.mubr.f32.gmra.mxu0 %v308
      %v963 = vpop.f32.mrf.mxu0
      %v964 = vadd.f32 %v819, %v963
      %v965 = vpop.f32.mrf.mxu0
      %966 = vmatprep.mubr.f32.mxu0 %v367
      %967 = vmatmul.mubr.f32.gmra.mxu0 %v310
      %v968 = vpop.f32.mrf.mxu0
      %v969 = vadd.f32 %v824, %v968
      %v970 = vpop.f32.mrf.mxu0
      %971 = vmatprep.mubr.f32.mxu0 %v370
      %972 = vmatmul.mubr.f32.gmra.mxu0 %v313
      %v973 = vpop.f32.mrf.mxu0
      %v974 = vadd.f32 %v829, %v973
      %v975 = vpop.f32.mrf.mxu0
      %976 = vmatprep.mubr.f32.mxu0 %v372
      %977 = vmatmul.mubr.f32.gmra.mxu0 %v315
      %v978 = vpop.f32.mrf.mxu0
      %v979 = vadd.f32 %v834, %v978
      %v980 = vpop.f32.mrf.mxu0
      %981 = vmatprep.mubr.f32.mxu0 %v375
      %982 = vmatmul.mubr.f32.gmra.mxu0 %v318
      %v983 = vpop.f32.mrf.mxu0
      %v984 = vadd.f32 %v839, %v983
      %v985 = vpop.f32.mrf.mxu0
      %986 = vmatprep.mubr.f32.mxu0 %v377
      %987 = vmatmul.mubr.f32.gmra.mxu0 %v320
      %v988 = vpop.f32.mrf.mxu0
      %v989 = vadd.f32 %v844, %v988
      %v990 = vpop.f32.mrf.mxu0
      %991 = vmatprep.mubr.f32.mxu0 %v380
      %992 = vmatmul.mubr.f32.gmra.mxu0 %v323
      %v993 = vpop.f32.mrf.mxu0
      %v994 = vadd.f32 %v849, %v993
      %v995 = vpop.f32.mrf.mxu0
      %996 = vmatprep.mubr.f32.mxu0 %v382
      %997 = vmatmul.mubr.f32.gmra.mxu0 %v325
      %v998 = vpop.f32.mrf.mxu0
      %v999 = vadd.f32 %v854, %v998
      %v1000 = vpop.f32.mrf.mxu0
      %1001 = vmatprep.mubr.f32.mxu0 %v411
      %1002 = vmatmul.mubr.f32.gmra.mxu0 %v404
      %v1003 = vpop.f32.mrf.mxu0
      %v1004 = vadd.f32 %v859, %v1003
      %v1005 = vpop.f32.mrf.mxu0
      %1006 = vmatprep.mubr.f32.mxu0 %v413
      %1007 = vmatmul.mubr.f32.gmra.mxu0 %v406
      %v1008 = vpop.f32.mrf.mxu0
      %v1009 = vadd.f32 %v864, %v1008
      %v1010 = vpop.f32.mrf.mxu0
      %1011 = vdwg.mxu0
      %1012 = vmatprep.subr.mxu0 0.0
      %1013 = vmatpush1.msra.mxu0 %v544
      %1014 = vmatprep.subr.mxu0 0.0
      %1015 = vmatpush1.msra.mxu0 %v543
      %1016 = vmatprep.subr.mxu0 0.0
      %1017 = vmatpush1.msra.mxu0 %v542
      %1018 = vmatprep.subr.mxu0 0.0
      %1019 = vmatpush1.msra.mxu0 %v541
      %1020 = vmatprep.subr.mxu0 0.0
      %1021 = vmatpush1.msra.mxu0 %v540
      %1022 = vmatprep.subr.mxu0 0.0
      %1023 = vmatpush1.msra.mxu0 %v539
      %1024 = vmatprep.subr.mxu0 0.0
      %1025 = vmatpush1.msra.mxu0 %v538
      %1026 = vmatprep.subr.mxu0 0.0
      %1027 = vmatpush1.msra.mxu0 %v537
      %1028 = vmatprep.subr.mxu0 0.0
      %1029 = vmatpush1.msra.mxu0 %v536
      %1030 = vmatprep.subr.mxu0 0.0
      %1031 = vmatpush1.msra.mxu0 %v535
      %1032 = vmatprep.subr.mxu0 0.0
      %1033 = vmatpush1.msra.mxu0 %v534
      %1034 = vmatprep.subr.mxu0 0.0
      %1035 = vmatpush1.msra.mxu0 %v533
      %1036 = vmatprep.subr.mxu0 0.0
      %1037 = vmatpush1.msra.mxu0 %v532
      %1038 = vmatprep.subr.mxu0 0.0
      %1039 = vmatpush1.msra.mxu0 %v531
      %1040 = vmatprep.subr.mxu0 0.0
      %1041 = vmatpush1.msra.mxu0 %v530
      %1042 = vmatprep.subr.mxu0 0.0
      %1043 = vmatpush1.msra.mxu0 %v529
      %1044 = vmatprep.subr.mxu0 0.0
      %1045 = vmatpush2.msra.mxu0 %v560
      %1046 = vmatprep.subr.mxu0 0.0
      %1047 = vmatpush2.msra.mxu0 %v559
      %1048 = vmatprep.subr.mxu0 0.0
      %1049 = vmatpush2.msra.mxu0 %v558
      %1050 = vmatprep.subr.mxu0 0.0
      %1051 = vmatpush2.msra.mxu0 %v557
      %1052 = vmatprep.subr.mxu0 0.0
      %1053 = vmatpush2.msra.mxu0 %v556
      %1054 = vmatprep.subr.mxu0 0.0
      %1055 = vmatpush2.msra.mxu0 %v555
      %1056 = vmatprep.subr.mxu0 0.0
      %1057 = vmatpush2.msra.mxu0 %v554
      %1058 = vmatprep.subr.mxu0 0.0
      %1059 = vmatpush2.msra.mxu0 %v553
      %1060 = vmatprep.subr.mxu0 0.0
      %1061 = vmatpush2.msra.mxu0 %v552
      %1062 = vmatprep.subr.mxu0 0.0
      %1063 = vmatpush2.msra.mxu0 %v551
      %1064 = vmatprep.subr.mxu0 0.0
      %1065 = vmatpush2.msra.mxu0 %v550
      %1066 = vmatprep.subr.mxu0 0.0
      %1067 = vmatpush2.msra.mxu0 %v549
      %1068 = vmatprep.subr.mxu0 0.0
      %1069 = vmatpush2.msra.mxu0 %v548
      %1070 = vmatprep.subr.mxu0 0.0
      %1071 = vmatpush2.msra.mxu0 %v547
      %1072 = vmatprep.subr.mxu0 0.0
      %1073 = vmatpush2.msra.mxu0 %v546
      %1074 = vmatprep.subr.mxu0 0.0
      %1075 = vmatpush2.msra.mxu0 %v545
      %1076 = vmatprep.mubr.f32.mxu0 %v298
      %1077 = vmatmul.mubr.f32.gmra.mxu0 %v237
      %v1078 = vpop.f32.mrf.mxu0
      %v1079 = vadd.f32 %v934, %v1078
      %v1080 = vpop.f32.mrf.mxu0
      %1081 = vmatprep.mubr.f32.mxu0 %v300
      %1082 = vmatmul.mubr.f32.gmra.mxu0 %v238
      %v1083 = vpop.f32.mrf.mxu0
      %v1084 = vadd.f32 %v939, %v1083
      %v1085 = vpop.f32.mrf.mxu0
      %1086 = vmatprep.mubr.f32.mxu0 %v303
      %1087 = vmatmul.mubr.f32.gmra.mxu0 %v240
      %v1088 = vpop.f32.mrf.mxu0
      %v1089 = vadd.f32 %v944, %v1088
      %v1090 = vpop.f32.mrf.mxu0
      %1091 = vmatprep.mubr.f32.mxu0 %v305
      %1092 = vmatmul.mubr.f32.gmra.mxu0 %v241
      %v1093 = vpop.f32.mrf.mxu0
      %v1094 = vadd.f32 %v949, %v1093
      %v1095 = vpop.f32.mrf.mxu0
      %1096 = vmatprep.mubr.f32.mxu0 %v308
      %1097 = vmatmul.mubr.f32.gmra.mxu0 %v243
      %v1098 = vpop.f32.mrf.mxu0
      %v1099 = vadd.f32 %v954, %v1098
      %v1100 = vpop.f32.mrf.mxu0
      %1101 = vmatprep.mubr.f32.mxu0 %v310
      %1102 = vmatmul.mubr.f32.gmra.mxu0 %v244
      %v1103 = vpop.f32.mrf.mxu0
      %v1104 = vadd.f32 %v959, %v1103
      %v1105 = vpop.f32.mrf.mxu0
      %1106 = vmatprep.mubr.f32.mxu0 %v313
      %1107 = vmatmul.mubr.f32.gmra.mxu0 %v246
      %v1108 = vpop.f32.mrf.mxu0
      %v1109 = vadd.f32 %v964, %v1108
      %v1110 = vpop.f32.mrf.mxu0
      %1111 = vmatprep.mubr.f32.mxu0 %v315
      %1112 = vmatmul.mubr.f32.gmra.mxu0 %v247
      %v1113 = vpop.f32.mrf.mxu0
      %v1114 = vadd.f32 %v969, %v1113
      %v1115 = vpop.f32.mrf.mxu0
      %1116 = vmatprep.mubr.f32.mxu0 %v318
      %1117 = vmatmul.mubr.f32.gmra.mxu0 %v249
      %v1118 = vpop.f32.mrf.mxu0
      %v1119 = vadd.f32 %v974, %v1118
      %v1120 = vpop.f32.mrf.mxu0
      %1121 = vmatprep.mubr.f32.mxu0 %v320
      %1122 = vmatmul.mubr.f32.gmra.mxu0 %v250
      %v1123 = vpop.f32.mrf.mxu0
      %v1124 = vadd.f32 %v979, %v1123
      %v1125 = vpop.f32.mrf.mxu0
      %1126 = vmatprep.mubr.f32.mxu0 %v323
      %1127 = vmatmul.mubr.f32.gmra.mxu0 %v252
      %v1128 = vpop.f32.mrf.mxu0
      %v1129 = vadd.f32 %v984, %v1128
      %v1130 = vpop.f32.mrf.mxu0
      %1131 = vmatprep.mubr.f32.mxu0 %v325
      %1132 = vmatmul.mubr.f32.gmra.mxu0 %v253
      %v1133 = vpop.f32.mrf.mxu0
      %v1134 = vadd.f32 %v989, %v1133
      %v1135 = vpop.f32.mrf.mxu0
      %1136 = vmatprep.mubr.f32.mxu0 %v404
      %1137 = vmatmul.mubr.f32.gmra.mxu0 %v255
      %v1138 = vpop.f32.mrf.mxu0
      %v1139 = vadd.f32 %v994, %v1138
      %v1140 = vpop.f32.mrf.mxu0
      %1141 = vmatprep.mubr.f32.mxu0 %v406
      %1142 = vmatmul.mubr.f32.gmra.mxu0 %v256
      %v1143 = vpop.f32.mrf.mxu0
      %v1144 = vadd.f32 %v999, %v1143
      %v1145 = vpop.f32.mrf.mxu0
      %1146 = vmatprep.mubr.f32.mxu0 %v421
      %1147 = vmatmul.mubr.f32.gmra.mxu0 %v258
      %v1148 = vpop.f32.mrf.mxu0
      %v1149 = vadd.f32 %v1004, %v1148
      %v1150 = vpop.f32.mrf.mxu0
      %1151 = vmatprep.mubr.f32.mxu0 %v423
      %1152 = vmatmul.mubr.f32.gmra.mxu0 %v259
      %v1153 = vpop.f32.mrf.mxu0
      %v1154 = vadd.f32 %v1009, %v1153
      %v1155 = vpop.f32.mrf.mxu0
      %1156 = vdwg.mxu0
      %1157 = vmatprep.subr.mxu0 0.0
      %1158 = vmatpush1.msra.mxu0 %v576
      %1159 = vmatprep.subr.mxu0 0.0
      %1160 = vmatpush1.msra.mxu0 %v575
      %1161 = vmatprep.subr.mxu0 0.0
      %1162 = vmatpush1.msra.mxu0 %v574
      %1163 = vmatprep.subr.mxu0 0.0
      %1164 = vmatpush1.msra.mxu0 %v573
      %1165 = vmatprep.subr.mxu0 0.0
      %1166 = vmatpush1.msra.mxu0 %v572
      %1167 = vmatprep.subr.mxu0 0.0
      %1168 = vmatpush1.msra.mxu0 %v571
      %1169 = vmatprep.subr.mxu0 0.0
      %1170 = vmatpush1.msra.mxu0 %v570
      %1171 = vmatprep.subr.mxu0 0.0
      %1172 = vmatpush1.msra.mxu0 %v569
      %1173 = vmatprep.subr.mxu0 0.0
      %1174 = vmatpush1.msra.mxu0 %v568
      %1175 = vmatprep.subr.mxu0 0.0
      %1176 = vmatpush1.msra.mxu0 %v567
      %1177 = vmatprep.subr.mxu0 0.0
      %1178 = vmatpush1.msra.mxu0 %v566
      %1179 = vmatprep.subr.mxu0 0.0
      %1180 = vmatpush1.msra.mxu0 %v565
      %1181 = vmatprep.subr.mxu0 0.0
      %1182 = vmatpush1.msra.mxu0 %v564
      %1183 = vmatprep.subr.mxu0 0.0
      %1184 = vmatpush1.msra.mxu0 %v563
      %1185 = vmatprep.subr.mxu0 0.0
      %1186 = vmatpush1.msra.mxu0 %v562
      %1187 = vmatprep.subr.mxu0 0.0
      %1188 = vmatpush1.msra.mxu0 %v561
      %1189 = vmatprep.subr.mxu0 0.0
      %1190 = vmatpush2.msra.mxu0 0.0
      %1191 = vmatprep.subr.mxu0 0.0
      %1192 = vmatpush2.msra.mxu0 0.0
      %1193 = vmatprep.subr.mxu0 0.0
      %1194 = vmatpush2.msra.mxu0 0.0
      %1195 = vmatprep.subr.mxu0 0.0
      %1196 = vmatpush2.msra.mxu0 0.0
      %1197 = vmatprep.subr.mxu0 0.0
      %1198 = vmatpush2.msra.mxu0 0.0
      %1199 = vmatprep.subr.mxu0 0.0
      %1200 = vmatpush2.msra.mxu0 0.0
      %1201 = vmatprep.subr.mxu0 0.0
      %1202 = vmatpush2.msra.mxu0 0.0
      %1203 = vmatprep.subr.mxu0 0.0
      %1204 = vmatpush2.msra.mxu0 0.0
      %1205 = vmatprep.subr.mxu0 0.0
      %1206 = vmatpush2.msra.mxu0 0.0
      %1207 = vmatprep.subr.mxu0 0.0
      %1208 = vmatpush2.msra.mxu0 0.0
      %1209 = vmatprep.subr.mxu0 0.0
      %1210 = vmatpush2.msra.mxu0 0.0
      %1211 = vmatprep.subr.mxu0 0.0
      %1212 = vmatpush2.msra.mxu0 0.0
      %1213 = vmatprep.subr.mxu0 0.0
      %1214 = vmatpush2.msra.mxu0 0.0
      %1215 = vmatprep.subr.mxu0 0.0
      %1216 = vmatpush2.msra.mxu0 0.0
      %1217 = vmatprep.subr.mxu0 0.0
      %1218 = vmatpush2.msra.mxu0 0.0
      %1219 = vmatprep.subr.mxu0 0.0
      %1220 = vmatpush2.msra.mxu0 0.0
      %1221 = vmatprep.mubr.f32.mxu0 0.0
      %1222 = vmatmul.mubr.f32.gmra.mxu0 %v355
      %v1223 = vpop.f32.mrf.mxu0
      %v1224 = vadd.f32 %v1079, %v1223
      %v1225 = vpop.f32.mrf.mxu0
      %1226 = vmatprep.mubr.f32.mxu0 0.0
      %1227 = vmatmul.mubr.f32.gmra.mxu0 %v357
      %v1228 = vpop.f32.mrf.mxu0
      %v1229 = vadd.f32 %v1084, %v1228
      %v1230 = vpop.f32.mrf.mxu0
      %1231 = vmatprep.mubr.f32.mxu0 0.0
      %1232 = vmatmul.mubr.f32.gmra.mxu0 %v360
      %v1233 = vpop.f32.mrf.mxu0
      %v1234 = vadd.f32 %v1089, %v1233
      %v1235 = vpop.f32.mrf.mxu0
      %1236 = vmatprep.mubr.f32.mxu0 0.0
      %1237 = vmatmul.mubr.f32.gmra.mxu0 %v362
      %v1238 = vpop.f32.mrf.mxu0
      %v1239 = vadd.f32 %v1094, %v1238
      %v1240 = vpop.f32.mrf.mxu0
      %1241 = vmatprep.mubr.f32.mxu0 0.0
      %1242 = vmatmul.mubr.f32.gmra.mxu0 %v365
      %v1243 = vpop.f32.mrf.mxu0
      %v1244 = vadd.f32 %v1099, %v1243
      %v1245 = vpop.f32.mrf.mxu0
      %1246 = vmatprep.mubr.f32.mxu0 0.0
      %1247 = vmatmul.mubr.f32.gmra.mxu0 %v367
      %v1248 = vpop.f32.mrf.mxu0
      %v1249 = vadd.f32 %v1104, %v1248
      %v1250 = vpop.f32.mrf.mxu0
      %1251 = vmatprep.mubr.f32.mxu0 0.0
      %1252 = vmatmul.mubr.f32.gmra.mxu0 %v370
      %v1253 = vpop.f32.mrf.mxu0
      %v1254 = vadd.f32 %v1109, %v1253
      %v1255 = vpop.f32.mrf.mxu0
      %1256 = vmatprep.mubr.f32.mxu0 0.0
      %1257 = vmatmul.mubr.f32.gmra.mxu0 %v372
      %v1258 = vpop.f32.mrf.mxu0
      %v1259 = vadd.f32 %v1114, %v1258
      %v1260 = vpop.f32.mrf.mxu0
      %1261 = vmatprep.mubr.f32.mxu0 0.0
      %1262 = vmatmul.mubr.f32.gmra.mxu0 %v375
      %v1263 = vpop.f32.mrf.mxu0
      %v1264 = vadd.f32 %v1119, %v1263
      %v1265 = vpop.f32.mrf.mxu0
      %1266 = vmatprep.mubr.f32.mxu0 0.0
      %1267 = vmatmul.mubr.f32.gmra.mxu0 %v377
      %v1268 = vpop.f32.mrf.mxu0
      %v1269 = vadd.f32 %v1124, %v1268
      %v1270 = vpop.f32.mrf.mxu0
      %1271 = vmatprep.mubr.f32.mxu0 0.0
      %1272 = vmatmul.mubr.f32.gmra.mxu0 %v380
      %v1273 = vpop.f32.mrf.mxu0
      %v1274 = vadd.f32 %v1129, %v1273
      %v1275 = vpop.f32.mrf.mxu0
      %1276 = vmatprep.mubr.f32.mxu0 0.0
      %1277 = vmatmul.mubr.f32.gmra.mxu0 %v382
      %v1278 = vpop.f32.mrf.mxu0
      %v1279 = vadd.f32 %v1134, %v1278
      %v1280 = vpop.f32.mrf.mxu0
      %1281 = vmatprep.mubr.f32.mxu0 0.0
      %1282 = vmatmul.mubr.f32.gmra.mxu0 %v411
      %v1283 = vpop.f32.mrf.mxu0
      %v1284 = vadd.f32 %v1139, %v1283
      %v1285 = vpop.f32.mrf.mxu0
      %1286 = vmatprep.mubr.f32.mxu0 0.0
      %1287 = vmatmul.mubr.f32.gmra.mxu0 %v413
      %v1288 = vpop.f32.mrf.mxu0
      %v1289 = vadd.f32 %v1144, %v1288
      %v1290 = vpop.f32.mrf.mxu0
      %1291 = vmatprep.mubr.f32.mxu0 0.0
      %1292 = vmatmul.mubr.f32.gmra.mxu0 %v428
      %v1293 = vpop.f32.mrf.mxu0
      %v1294 = vadd.f32 %v1149, %v1293
      %v1295 = vpop.f32.mrf.mxu0
      %1296 = vmatprep.mubr.f32.mxu0 0.0
      %1297 = vmatmul.mubr.f32.gmra.mxu0 %v430
      %v1298 = vpop.f32.mrf.mxu0
      %v1299 = vadd.f32 %v1154, %v1298
      %v1300 = vpop.f32.mrf.mxu0
      %1301 = vdwg.mxu0
      %1302 = vst [vmem:[%s221] sm:$0xff] %v1224
      %1303 = vst [vmem:[%s221 + $0x8] sm:$0xff] %v1229
      %1304 = vst [vmem:[%s221 + $0x10] sm:$0xff] %v1234
      %1305 = vst [vmem:[%s221 + $0x18] sm:$0xff] %v1239
      %1306 = vst [vmem:[%s221 + $0x20] sm:$0xff] %v1244
      %1307 = vst [vmem:[%s221 + $0x28] sm:$0xff] %v1249
      %1308 = vst [vmem:[%s221 + $0x30] sm:$0xff] %v1254
      %1309 = vst [vmem:[%s221 + $0x38] sm:$0xff] %v1259
      %1310 = vst [vmem:[%s221 + $0x40] sm:$0xff] %v1264
      %1311 = vst [vmem:[%s221 + $0x48] sm:$0xff] %v1269
      %1312 = vst [vmem:[%s221 + $0x50] sm:$0xff] %v1274
      %1313 = vst [vmem:[%s221 + $0x58] sm:$0xff] %v1279
      %1314 = vst [vmem:[%s221 + $0x60] sm:$0xff] %v1284
      %1315 = vst [vmem:[%s221 + $0x68] sm:$0xff] %v1289
      %1316 = vst [vmem:[%s221 + $0x70] sm:$0xff] %v1294
      %1317 = vst [vmem:[%s221 + $0x78] sm:$0xff] %v1299
      %v1318 = vadd.f32 %v1224, %v1229
      %v1319 = vadd.f32 %v1318, %v1234
      %v1320 = vadd.f32 %v1319, %v1239
      %v1321 = vadd.f32 %v1320, %v1244
      %v1322 = vadd.f32 %v1321, %v1249
      %v1323 = vadd.f32 %v1322, %v1254
      %v1324 = vadd.f32 %v1323, %v1259
      %v1325 = vadd.f32 %v1324, %v1264
      %v1326 = vadd.f32 %v1325, %v1269
      %v1327 = vadd.f32 %v1326, %v1274
      %v1328 = vadd.f32 %v1327, %v1279
      %v1329 = vadd.f32 %v1328, %v1284
      %v1330 = vadd.f32 %v1329, %v1289
      %v1331 = vadd.f32 %v1330, %v1294
      %v1332 = vadd.f32 %v1331, %v1299
      %v1333 = vrot.slane %v1332, 4
      %v1334 = vadd.f32 %v1332, %v1333
      %v1335 = vrot.slane %v1334, 2
      %v1336 = vadd.f32 %v1334, %v1335
      %v1337 = vrot.slane %v1336, 1
      %v1338 = vadd.f32 %v1336, %v1337
      %v1339 = vmul.f32 %v1224, %v1224
      %v1340 = vmul.f32 %v1229, %v1229
      %v1341 = vmul.f32 %v1234, %v1234
      %v1342 = vmul.f32 %v1239, %v1239
      %v1343 = vmul.f32 %v1244, %v1244
      %v1344 = vmul.f32 %v1249, %v1249
      %v1345 = vmul.f32 %v1254, %v1254
      %v1346 = vmul.f32 %v1259, %v1259
      %v1347 = vmul.f32 %v1264, %v1264
      %v1348 = vmul.f32 %v1269, %v1269
      %v1349 = vmul.f32 %v1274, %v1274
      %v1350 = vmul.f32 %v1279, %v1279
      %v1351 = vmul.f32 %v1284, %v1284
      %v1352 = vmul.f32 %v1289, %v1289
      %v1353 = vmul.f32 %v1294, %v1294
      %v1354 = vmul.f32 %v1299, %v1299
      %v1355 = vadd.f32 %v1339, %v1340
      %v1356 = vadd.f32 %v1355, %v1341
      %v1357 = vadd.f32 %v1356, %v1342
      %v1358 = vadd.f32 %v1357, %v1343
      %v1359 = vadd.f32 %v1358, %v1344
      %v1360 = vadd.f32 %v1359, %v1345
      %v1361 = vadd.f32 %v1360, %v1346
      %v1362 = vadd.f32 %v1361, %v1347
      %v1363 = vadd.f32 %v1362, %v1348
      %v1364 = vadd.f32 %v1363, %v1349
      %v1365 = vadd.f32 %v1364, %v1350
      %v1366 = vadd.f32 %v1365, %v1351
      %v1367 = vadd.f32 %v1366, %v1352
      %v1368 = vadd.f32 %v1367, %v1353
      %v1369 = vadd.f32 %v1368, %v1354
      %v1370 = vrot.slane %v1369, 4
      %v1371 = vadd.f32 %v1369, %v1370
      %v1372 = vrot.slane %v1371, 2
      %v1373 = vadd.f32 %v1371, %v1372
      %v1374 = vrot.slane %v1373, 1
      %v1375 = vadd.f32 %v1373, %v1374
      %vm1376 = vcmask 1040384
      %v1377 = vsel %vm1376, %v1338, %v1375
      %1378 = vst [vmem:[%s230] sm:$0x3] %v1377
      %s1379 = smul.u32 8, %s20
      %p1380 = scmp.lt.s32.totalorder %s19, 1
      %s1381 = scalar_select %p1380, %s19, 1
      %p1382 = scmp.lt.s32.totalorder %s1379, 15
      %s1383 = scalar_select %p1382, %s1379, 15
      %s1384 = smul.addr %s1383, 2
      %s1385 = smul.addr %s1381, 32
      %s1386 = sadd.s32 %s1384, %s1385
      %s1387 = smul.addr %s1386, 8
      %s1388 = scalar_lea.vmem %s2, %s1387
      %p1389 = scmp.lt.s32.totalorder %s19, 1
      %s1390 = scalar_select %p1389, %s19, 1
      %p1391 = scmp.lt.s32.totalorder %s20, 1
      %s1392 = scalar_select %p1391, %s20, 1
      %s1393 = smul.addr %s1390, 2
      %s1394 = sadd.s32 %s1392, %s1393
      %s1395 = smul.addr %s1394, 2
      %s1396 = scalar_lea.vmem %s3, %s1395
      // Predicated region
      $region29: #{inconv_forward.6} parent=27 // pred_check
        %p1397 = pneg %p98
      $region30: #{inconv_forward.6} parent=27 // pred_check_branch
        %1399 = sbr.rel (%p1397) target = $region32
      $region31: #{inconv_forward.6} parent=27 // pred_region
        %s1400 = smul.u32 8, %s20
      $region32: #{inconv_forward.6} parent=27 // pred_fallthru
        _
      // Predicated region
      $region33: #{inconv_forward.6} parent=27 // pred_check
        %p1401 = pneg %p126
      $region34: #{inconv_forward.6} parent=27 // pred_check_branch
        %1403 = sbr.rel (%p1401) target = $region36
      $region35: #{inconv_forward.6} parent=27 // pred_region
        _
      $region36: #{inconv_forward.6} parent=27 // pred_fallthru
        _
    $region28: #{inconv_forward.6} parent=5 // pred_fallthru
      _
    %p1404 = scmp.le.s32.totalorder 2, %s10
    // Predicated region
    $region37: #{inconv_forward.6} parent=5 // pred_check
      %p1405 = pneg %p1404
    $region38: #{inconv_forward.6} parent=5 // pred_check_branch
      %1407 = sbr.rel (%p1405) target = $region40
    $region39: #{inconv_forward.6} parent=5 // pred_region
      %s1408 = ssub.s32 %s10, 2
      // Predicated region
      $region41: #{inconv_forward.6} parent=39 // pred_check
        %p1409 = pneg %p104
      $region42: #{inconv_forward.6} parent=39 // pred_check_branch
        %1411 = sbr.rel (%p1409) target = $region44
      $region43: #{inconv_forward.6} parent=39 // pred_region
        %s1412 = smul.u32 8, %s22
        %p1413 = scmp.lt.s32.totalorder %s21, 1
        %s1414 = scalar_select %p1413, %s21, 1
        %p1415 = scmp.lt.s32.totalorder %s1412, 15
        %s1416 = scalar_select %p1415, %s1412, 15
        %s1417 = smul.addr %s1416, 2
        %s1418 = smul.addr %s1414, 32
        %s1419 = sadd.s32 %s1417, %s1418
        %s1420 = smul.addr %s1419, 8
        %s1421 = scalar_lea.vmem %s2, %s1420
      $region44: #{inconv_forward.6} parent=39 // pred_fallthru
        _
      // Predicated region
      $region45: #{inconv_forward.6} parent=39 // pred_check
        %p1422 = pneg %p132
      $region46: #{inconv_forward.6} parent=39 // pred_check_branch
        %1424 = sbr.rel (%p1422) target = $region48
      $region47: #{inconv_forward.6} parent=39 // pred_region
        %p1425 = scmp.lt.s32.totalorder %s21, 1
        %s1426 = scalar_select %p1425, %s21, 1
        %p1427 = scmp.lt.s32.totalorder %s22, 1
        %s1428 = scalar_select %p1427, %s22, 1
        %s1429 = smul.addr %s1426, 2
        %s1430 = sadd.s32 %s1428, %s1429
        %s1431 = smul.addr %s1430, 2
        %s1432 = scalar_lea.vmem %s3, %s1431
      $region48: #{inconv_forward.6} parent=39 // pred_fallthru
        _
    $region40: #{inconv_forward.6} parent=5 // pred_fallthru
      _
  $region6: #{inconv_forward.6} parent=0 // loop_footer
    %s14 = sadd.s32 1, %s10
  $region7: #{inconv_forward.6} parent=0 // loop_footer_branch
    %9 = sbr.rel target = $region3
  $region8: #{inconv_forward.6} parent=0 // loop_exit
    _

</llo_original>
